<compile_context>
chip_gen: v7x
topology: tpu7x:2x2x1
jax: 0.10.0
libtpu: 0.0.40
codegen_flags: <defaults>
</compile_context>

<pallas_src>
import functools

import numpy as np
import jax
import jax.numpy as jnp
from jax.experimental import pallas as pl
from jax.experimental.pallas import tpu as pltpu


NEG = -1e9  # large finite negative instead of -inf (avoids -inf - -inf = NaN risk)


# ----------------------------------------------------------------------------
# Glue helpers (mirror the torch helpers, built with numpy)
# ----------------------------------------------------------------------------
def get_relative_indices(window_size):
    idx = np.array([[x, y] for x in range(window_size) for y in range(window_size)],
                   dtype=np.int64)
    dist = idx[None, :, :] - idx[:, None, :]
    return dist + window_size - 1  # (ws^2, ws^2, 2), values in [0, 2*ws-2]


def build_window_masks(window_size, nw_h, nw_w, shifted):
    """Per-window additive shift mask (nw, ws^2, ws^2). Zeros when not shifted."""
    ws2 = window_size * window_size
    nw = nw_h * nw_w
    mask = np.zeros((nw, ws2, ws2), dtype=np.float32)
    if shifted:
        d = window_size // 2
        # upper/lower mask (applied to the last row of windows)
        ul = np.zeros((ws2, ws2), dtype=np.float32)
        ul[-d * window_size:, :-d * window_size] = NEG
        ul[:-d * window_size, -d * window_size:] = NEG
        # left/right mask (applied to the last column of windows)
        lr = np.zeros((window_size, window_size, window_size, window_size),
                      dtype=np.float32)
        lr[:, -d:, :, :-d] = NEG
        lr[:, :-d, :, -d:] = NEG
        lr = lr.reshape(ws2, ws2)
        for w in range(nw):
            if w >= nw - nw_w:          # dots[:, :, -nw_w:] += upper_lower_mask
                mask[w] += ul
            if (w % nw_w) == nw_w - 1:  # dots[:, :, nw_w-1::nw_w] += left_right_mask
                mask[w] += lr
    return jnp.asarray(mask)


def _num_tensorcores():
    """TensorCores visible per JAX device (megacore chips report 2)."""
    try:
        kind = jax.devices()[0].device_kind.lower()
    except Exception:
        return 1
    if "lite" in kind or "v5e" in kind or "v6" in kind:
        return 1
    if "7x" in kind or "v7" in kind or "v4" in kind or "v5p" in kind:
        return 2
    return 1  # safe default: collapsed grid is always correct


# ----------------------------------------------------------------------------
# Pallas kernel: one grid step processes `bs` batch elements, all windows,
# all heads, with everything packed into (N = bs * nw * ws^2)-row matmuls.
# ----------------------------------------------------------------------------
def window_attn_kernel(x_ref, wqkv_ref, bias_ref, wout_ref, bout_ref, out_ref, *,
                       heads, head_dim, scale):
    bs, n, dim = x_ref.shape
    inner = heads * head_dim
    N = bs * n

    # Leading-dim regroup only (n is a multiple of 8) — no relayout.
    x = x_ref[...].reshape(N, dim)

    # Single QKV projection: one (N, dim) @ (dim, 3*inner) MXU matmul.
    qkv = jnp.dot(x, wqkv_ref[...], preferred_element_type=jnp.float32)  # (N, 3*inner)

    # Per-head 8-lane slices stacked on a leading head axis (lane shifts only,
    # no sublane transposes).
    def head_stack(base):
        return jnp.stack(
            [qkv[:, base + h * head_dim: base + (h + 1) * head_dim]
             for h in range(heads)],
            axis=0)                                       # (heads, N, head_dim)

    q = head_stack(0) * scale
    k = head_stack(inner)
    v = head_stack(2 * inner)

    # Packed-window scores: `heads` matmuls with N-wide outputs. Cross-window /
    # cross-batch positions are killed by the block-diagonal additive bias.
    dots = jnp.einsum('hid,hjd->hij', q, k,
                      preferred_element_type=jnp.float32)  # (heads, N, N)
    dots = dots + bias_ref[...]                            # (N, N) broadcast over heads

    # Numerically-stable softmax; denominator via EUP approximate reciprocal,
    # applied to the (much smaller) attn@V result.
    m = jnp.max(dots, axis=-1, keepdims=True)
    p = jnp.exp(dots - m)
    s = jnp.sum(p, axis=-1, keepdims=True)

    o = jnp.einsum('hij,hjd->hid', p, v,
                   preferred_element_type=jnp.float32)     # (heads, N, head_dim)
    o = o * pl.reciprocal(s, approx=True)

    # Output projection with head-major weights: sum_h o_h @ W_out[h] == concat @ W_out.
    per_head = jnp.einsum('hnd,hdc->hnc', o, wout_ref[...],
                          preferred_element_type=jnp.float32)  # (heads, N, dim)
    out = jnp.sum(per_head, axis=0) + bout_ref[...]            # (N, dim)
    out_ref[...] = out.reshape(bs, n, dim)


# ----------------------------------------------------------------------------
# Wrapper
# ----------------------------------------------------------------------------
def window_attention(x, wqkv, pos_table, wout, bout, *,
                     heads, head_dim, window_size, shifted, batch_per_step=None):
    b, n_h, n_w, dim = x.shape
    ws = window_size
    ws2 = ws * ws
    disp = ws // 2
    nw_h, nw_w = n_h // ws, n_w // ws
    nw = nw_h * nw_w
    n = nw * ws2
    inner = heads * head_dim
    scale = head_dim ** -0.5

    # Grid choice: one step per TensorCore's worth of batch.  Single-TC chips
    # (v5e/v6e) collapse to grid=(1,) (batch folded into the matmul rows);
    # v7x keeps grid=(b,) so megacore sharding uses both cores.
    if batch_per_step is None:
        steps = min(b, _num_tensorcores())
        while b % steps:
            steps -= 1
        batch_per_step = b // steps
    bs = batch_per_step
    steps = b // bs
    N = bs * n

    if shifted:
        x = jnp.roll(x, shift=(-disp, -disp), axis=(1, 2))

    # Window partition: (b, n_h, n_w, dim) -> (b, nw*ws2, dim)
    xw = (x.reshape(b, nw_h, ws, nw_w, ws, dim)
            .transpose(0, 1, 3, 2, 4, 5)
            .reshape(b, n, dim))

    # qkv weight stays in its natural (dim, 3*inner) layout (single matmul in
    # the kernel); out-projection weight goes head-major for the per-head sum.
    w_out_h = wout.reshape(heads, head_dim, dim)
    bout2 = bout.reshape(1, dim)

    # Block-diagonal additive bias for the packed-window scores: pos-table +
    # per-window shift mask on the diagonal (ws2, ws2) blocks, NEG elsewhere
    # (cross-window AND cross-batch).  Not replicated per head.
    win_mask = build_window_masks(ws, nw_h, nw_w, shifted)          # (nw, ws2, ws2)
    diag = pos_table[None, :, :] + win_mask                         # (nw, ws2, ws2)
    diag = jnp.tile(diag, (bs, 1, 1))                                # (bs*nw, ws2, ws2)
    nb = bs * nw
    bias = jnp.full((nb, ws2, nb, ws2), NEG, dtype=jnp.float32)
    idx = jnp.arange(nb)
    bias = bias.at[idx, :, idx, :].set(diag).reshape(N, N)

    kernel = functools.partial(window_attn_kernel, heads=heads, head_dim=head_dim,
                               scale=scale)

    out = pl.pallas_call(
        kernel,
        out_shape=jax.ShapeDtypeStruct((b, n, dim), jnp.float32),
        grid_spec=pltpu.PrefetchScalarGridSpec(
            num_scalar_prefetch=0,
            grid=(steps,),
            in_specs=[
                pl.BlockSpec((bs, n, dim), lambda i: (i, 0, 0)),
                pl.BlockSpec((dim, 3 * inner), lambda i: (0, 0)),
                pl.BlockSpec((N, N), lambda i: (0, 0)),
                pl.BlockSpec((heads, head_dim, dim), lambda i: (0, 0, 0)),
                pl.BlockSpec((1, dim), lambda i: (0, 0)),
            ],
            out_specs=pl.BlockSpec((bs, n, dim), lambda i: (i, 0, 0)),
        ),
        compiler_params=pltpu.CompilerParams(
            dimension_semantics=("parallel",)),
    )(xw, wqkv, bias, w_out_h, bout2)

    # Window merge: (b, nw*ws2, dim) -> (b, n_h, n_w, dim)
    out = (out.reshape(b, nw_h, nw_w, ws, ws, dim)
              .transpose(0, 1, 3, 2, 4, 5)
              .reshape(b, n_h, n_w, dim))

    if shifted:
        out = jnp.roll(out, shift=(disp, disp), axis=(1, 2))
    return out


# ----------------------------------------------------------------------------
# Pure-JAX reference (mirrors the torch forward) for a correctness check
# ----------------------------------------------------------------------------
def reference_forward(x, wqkv, pos_table, wout, bout, *,
                      heads, head_dim, window_size, shifted):
    b, n_h, n_w, dim = x.shape
    ws = window_size
    disp = ws // 2
    inner = heads * head_dim
    nw_h, nw_w = n_h // ws, n_w // ws
    scale = head_dim ** -0.5
    win_mask = build_window_masks(ws, nw_h, nw_w, shifted)  # (nw, ws2, ws2)

    if shifted:
        x = jnp.roll(x, shift=(-disp, -disp), axis=(1, 2))

    qkv = x @ wqkv
    q, k, v = jnp.split(qkv, 3, axis=-1)

    def win(t):
        t = t.reshape(b, nw_h, ws, nw_w, ws, heads, head_dim)
        t = t.transpose(0, 5, 1, 3, 2, 4, 6)
        return t.reshape(b, heads, nw_h * nw_w, ws * ws, head_dim)

    q, k, v = map(win, (q, k, v))
    dots = jnp.einsum('bhwid,bhwjd->bhwij', q, k) * scale
    dots = dots + pos_table[None, None, None]
    dots = dots + win_mask[None, None]
    attn = jax.nn.softmax(dots, axis=-1)
    out = jnp.einsum('bhwij,bhwjd->bhwid', attn, v)
    out = out.reshape(b, heads, nw_h, nw_w, ws, ws, head_dim)
    out = out.transpose(0, 2, 4, 3, 5, 1, 6).reshape(b, n_h, n_w, inner)
    out = out @ wout + bout.reshape(-1)
    if shifted:
        out = jnp.roll(out, shift=(disp, disp), axis=(1, 2))
    return out


# ----------------------------------------------------------------------------
# Main
# ----------------------------------------------------------------------------
if __name__ == "__main__":
    # Module config
    dim = 32
    heads = 4
    head_dim = 8
    window_size = 4
    shifted = True
    relative_pos_embedding = True
    inner = heads * head_dim

    # Input: (b, n_h, n_w, dim)
    b, n_h, n_w = 2, 8, 8

    key = jax.random.PRNGKey(0)
    kx, kq, kp, kw, kb = jax.random.split(key, 5)

    x = jax.random.normal(kx, (b, n_h, n_w, dim), dtype=jnp.float32)

    # Deterministic parameter init (shapes match nn.Linear / nn.Parameter in __init__)
    wqkv = jax.random.normal(kq, (dim, 3 * inner), dtype=jnp.float32) * 0.05
    wout = jax.random.normal(kw, (inner, dim), dtype=jnp.float32) * 0.05
    bout = jax.random.normal(kb, (dim,), dtype=jnp.float32) * 0.05

    if relative_pos_embedding:
        pos_embedding = jax.random.normal(kp, (2 * window_size - 1, 2 * window_size - 1),
                                          dtype=jnp.float32)
        rel_idx = get_relative_indices(window_size)  # (ws2, ws2, 2)
        pos_table = pos_embedding[rel_idx[:, :, 0], rel_idx[:, :, 1]]  # (ws2, ws2)
    else:
        pos_table = jax.random.normal(kp, (window_size ** 2, window_size ** 2),
                                      dtype=jnp.float32)

    out = window_attention(x, wqkv, pos_table, wout, bout,
                           heads=heads, head_dim=head_dim,
                           window_size=window_size, shifted=shifted)
    out = jax.block_until_ready(out)

    ref = reference_forward(x, wqkv, pos_table, wout, bout,
                            heads=heads, head_dim=head_dim,
                            window_size=window_size, shifted=shifted)
    ref = jax.block_until_ready(ref)

    # Tolerance accounts for the approximate (EUP) reciprocal in the softmax.
    np.testing.assert_allclose(np.asarray(out), np.asarray(ref), rtol=2e-3, atol=2e-3)
    print("KERNEL_OK")
</pallas_src>

<mosaic_0001>
module attributes {stable_mosaic.version = 11 : i64} {
  func.func @window_attn_kernel(%arg0: i32, %arg1: memref<2x64x32xf32, #tpu.memory_space<vmem>>, %arg2: memref<32x96xf32, #tpu.memory_space<vmem>>, %arg3: memref<128x128xf32, #tpu.memory_space<vmem>>, %arg4: memref<4x8x32xf32, #tpu.memory_space<vmem>>, %arg5: memref<1x32xf32, #tpu.memory_space<vmem>>, %arg6: memref<2x64x32xf32, #tpu.memory_space<vmem>>) attributes {dimension_semantics = [#tpu.dimension_semantics<parallel>], iteration_bounds = array<i64: 1>, scalar_prefetch = 0 : i64, scratch_operands = 0 : i64, tpu.core_type = #tpu.core_type<tc>, window_params = [{transform_indices = @transform_0, window_bounds = array<i64: 2, 64, 32>}, {pipeline_mode = #tpu.pipeline_mode<synchronous>, transform_indices = @transform_1, window_bounds = array<i64: 32, 96>}, {pipeline_mode = #tpu.pipeline_mode<synchronous>, transform_indices = @transform_2, window_bounds = array<i64: 128, 128>}, {pipeline_mode = #tpu.pipeline_mode<synchronous>, transform_indices = @transform_3, window_bounds = array<i64: 4, 8, 32>}, {pipeline_mode = #tpu.pipeline_mode<synchronous>, transform_indices = @transform_4, window_bounds = array<i64: 1, 32>}, {transform_indices = @transform_5, window_bounds = array<i64: 2, 64, 32>}]} {
    %c0 = arith.constant 0 : index
    %c0_0 = arith.constant 0 : index
    %c0_1 = arith.constant 0 : index
    %0 = vector.load %arg1[%c0, %c0_0, %c0_1] : memref<2x64x32xf32, #tpu.memory_space<vmem>>, vector<2x64x32xf32>
    %1 = vector.shape_cast %0 : vector<2x64x32xf32> to vector<128x32xf32>
    %c0_2 = arith.constant 0 : index
    %c0_3 = arith.constant 0 : index
    %2 = vector.load %arg2[%c0_2, %c0_3] : memref<32x96xf32, #tpu.memory_space<vmem>>, vector<32x96xf32>
    %cst = arith.constant dense<0.000000e+00> : vector<128x96xf32>
    %3 = tpu.matmul %1, %2, %cst {dimension_numbers = #tpu.dot_dimension_numbers<[1], [0], [0], [1], [0, 0, 1, 1], [], []>} : vector<128x32xf32>, vector<32x96xf32>, vector<128x96xf32> -> vector<128x96xf32>
    %4 = vector.extract_strided_slice %3 {offsets = [0, 0], sizes = [128, 8], strides = [1, 1]} : vector<128x96xf32> to vector<128x8xf32>
    %5 = vector.extract_strided_slice %3 {offsets = [0, 8], sizes = [128, 8], strides = [1, 1]} : vector<128x96xf32> to vector<128x8xf32>
    %6 = vector.extract_strided_slice %3 {offsets = [0, 16], sizes = [128, 8], strides = [1, 1]} : vector<128x96xf32> to vector<128x8xf32>
    %7 = vector.extract_strided_slice %3 {offsets = [0, 24], sizes = [128, 8], strides = [1, 1]} : vector<128x96xf32> to vector<128x8xf32>
    %8 = vector.shape_cast %4 : vector<128x8xf32> to vector<1x128x8xf32>
    %9 = vector.shape_cast %5 : vector<128x8xf32> to vector<1x128x8xf32>
    %10 = vector.shape_cast %6 : vector<128x8xf32> to vector<1x128x8xf32>
    %11 = vector.shape_cast %7 : vector<128x8xf32> to vector<1x128x8xf32>
    %12 = tpu.concatenate %8, %9, %10, %11 in 0 : vector<1x128x8xf32>, vector<1x128x8xf32>, vector<1x128x8xf32>, vector<1x128x8xf32> -> vector<4x128x8xf32>
    %cst_4 = arith.constant 0.353553385 : f32
    %13 = vector.broadcast %cst_4 : f32 to vector<4x128x8xf32>
    %14 = arith.mulf %12, %13 : vector<4x128x8xf32>
    %15 = vector.extract_strided_slice %3 {offsets = [0, 32], sizes = [128, 8], strides = [1, 1]} : vector<128x96xf32> to vector<128x8xf32>
    %16 = vector.extract_strided_slice %3 {offsets = [0, 40], sizes = [128, 8], strides = [1, 1]} : vector<128x96xf32> to vector<128x8xf32>
    %17 = vector.extract_strided_slice %3 {offsets = [0, 48], sizes = [128, 8], strides = [1, 1]} : vector<128x96xf32> to vector<128x8xf32>
    %18 = vector.extract_strided_slice %3 {offsets = [0, 56], sizes = [128, 8], strides = [1, 1]} : vector<128x96xf32> to vector<128x8xf32>
    %19 = vector.shape_cast %15 : vector<128x8xf32> to vector<1x128x8xf32>
    %20 = vector.shape_cast %16 : vector<128x8xf32> to vector<1x128x8xf32>
    %21 = vector.shape_cast %17 : vector<128x8xf32> to vector<1x128x8xf32>
    %22 = vector.shape_cast %18 : vector<128x8xf32> to vector<1x128x8xf32>
    %23 = tpu.concatenate %19, %20, %21, %22 in 0 : vector<1x128x8xf32>, vector<1x128x8xf32>, vector<1x128x8xf32>, vector<1x128x8xf32> -> vector<4x128x8xf32>
    %24 = vector.extract_strided_slice %3 {offsets = [0, 64], sizes = [128, 8], strides = [1, 1]} : vector<128x96xf32> to vector<128x8xf32>
    %25 = vector.extract_strided_slice %3 {offsets = [0, 72], sizes = [128, 8], strides = [1, 1]} : vector<128x96xf32> to vector<128x8xf32>
    %26 = vector.extract_strided_slice %3 {offsets = [0, 80], sizes = [128, 8], strides = [1, 1]} : vector<128x96xf32> to vector<128x8xf32>
    %27 = vector.extract_strided_slice %3 {offsets = [0, 88], sizes = [128, 8], strides = [1, 1]} : vector<128x96xf32> to vector<128x8xf32>
    %28 = vector.shape_cast %24 : vector<128x8xf32> to vector<1x128x8xf32>
    %29 = vector.shape_cast %25 : vector<128x8xf32> to vector<1x128x8xf32>
    %30 = vector.shape_cast %26 : vector<128x8xf32> to vector<1x128x8xf32>
    %31 = vector.shape_cast %27 : vector<128x8xf32> to vector<1x128x8xf32>
    %32 = tpu.concatenate %28, %29, %30, %31 in 0 : vector<1x128x8xf32>, vector<1x128x8xf32>, vector<1x128x8xf32>, vector<1x128x8xf32> -> vector<4x128x8xf32>
    "tpu.trace_start"() <{level = 10 : i32, message = "hid,hjd->hij"}> : () -> ()
    %cst_5 = arith.constant dense<0.000000e+00> : vector<4x128x128xf32>
    %33 = tpu.matmul %14, %23, %cst_5 {dimension_numbers = #tpu.dot_dimension_numbers<[2], [2], [1], [1], [0, 0, 0, 1, 1, 1], [0], [0]>} : vector<4x128x8xf32>, vector<4x128x8xf32>, vector<4x128x128xf32> -> vector<4x128x128xf32>
    "tpu.trace_stop"() : () -> ()
    %c0_6 = arith.constant 0 : index
    %c0_7 = arith.constant 0 : index
    %34 = vector.load %arg3[%c0_6, %c0_7] : memref<128x128xf32, #tpu.memory_space<vmem>>, vector<128x128xf32>
    %35 = vector.shape_cast %34 : vector<128x128xf32> to vector<1x128x128xf32>
    %36 = vector.broadcast %35 : vector<1x128x128xf32> to vector<4x128x128xf32>
    %37 = arith.addf %33, %36 : vector<4x128x128xf32>
    %cst_8 = arith.constant dense<0xFF800000> : vector<4x128xf32>
    %38 = vector.multi_reduction <maximumf>, %37, %cst_8 [2] : vector<4x128x128xf32> to vector<4x128xf32>
    %39 = vector.shape_cast %38 : vector<4x128xf32> to vector<4x128x1xf32>
    %40 = vector.broadcast %39 : vector<4x128x1xf32> to vector<4x128x128xf32>
    %41 = arith.subf %37, %40 : vector<4x128x128xf32>
    %42 = math.exp %41 : vector<4x128x128xf32>
    %cst_9 = arith.constant dense<0.000000e+00> : vector<4x128xf32>
    %43 = vector.multi_reduction <add>, %42, %cst_9 [2] : vector<4x128x128xf32> to vector<4x128xf32>
    %44 = vector.shape_cast %43 : vector<4x128xf32> to vector<4x128x1xf32>
    "tpu.trace_start"() <{level = 10 : i32, message = "hij,hjd->hid"}> : () -> ()
    %cst_10 = arith.constant dense<0.000000e+00> : vector<4x128x8xf32>
    %45 = tpu.matmul %42, %32, %cst_10 {dimension_numbers = #tpu.dot_dimension_numbers<[2], [1], [1], [2], [0, 0, 0, 1, 1, 2], [0], [0]>} : vector<4x128x128xf32>, vector<4x128x8xf32>, vector<4x128x8xf32> -> vector<4x128x8xf32>
    "tpu.trace_stop"() : () -> ()
    %46 = tpu.reciprocal %44 {approx = true} : vector<4x128x1xf32> -> vector<4x128x1xf32>
    %47 = vector.broadcast %46 : vector<4x128x1xf32> to vector<4x128x8xf32>
    %48 = arith.mulf %45, %47 : vector<4x128x8xf32>
    %c0_11 = arith.constant 0 : index
    %c0_12 = arith.constant 0 : index
    %c0_13 = arith.constant 0 : index
    %49 = vector.load %arg4[%c0_11, %c0_12, %c0_13] : memref<4x8x32xf32, #tpu.memory_space<vmem>>, vector<4x8x32xf32>
    "tpu.trace_start"() <{level = 10 : i32, message = "hnd,hdc->hnc"}> : () -> ()
    %cst_14 = arith.constant dense<0.000000e+00> : vector<4x128x32xf32>
    %50 = tpu.matmul %48, %49, %cst_14 {dimension_numbers = #tpu.dot_dimension_numbers<[2], [1], [1], [2], [0, 0, 0, 1, 1, 2], [0], [0]>} : vector<4x128x8xf32>, vector<4x8x32xf32>, vector<4x128x32xf32> -> vector<4x128x32xf32>
    "tpu.trace_stop"() : () -> ()
    %cst_15 = arith.constant dense<0.000000e+00> : vector<128x32xf32>
    %51 = vector.multi_reduction <add>, %50, %cst_15 [0] : vector<4x128x32xf32> to vector<128x32xf32>
    %c0_16 = arith.constant 0 : index
    %c0_17 = arith.constant 0 : index
    %52 = vector.load %arg5[%c0_16, %c0_17] : memref<1x32xf32, #tpu.memory_space<vmem>>, vector<1x32xf32>
    %53 = vector.broadcast %52 : vector<1x32xf32> to vector<128x32xf32>
    %54 = arith.addf %51, %53 : vector<128x32xf32>
    %55 = vector.shape_cast %54 : vector<128x32xf32> to vector<2x64x32xf32>
    %c0_18 = arith.constant 0 : index
    %c0_19 = arith.constant 0 : index
    %c0_20 = arith.constant 0 : index
    %56 = vector.load %arg6[%c0_18, %c0_19, %c0_20] : memref<2x64x32xf32, #tpu.memory_space<vmem>>, vector<2x64x32xf32>
    tpu.vector_store %arg6[%c0_18, %c0_19, %c0_20], %55 {strides = array<i32>} : memref<2x64x32xf32, #tpu.memory_space<vmem>>, vector<2x64x32xf32>,
    return
  }
  func.func @transform_0(%arg0: i32) -> (i32, i32, i32) {
    %c0_i32 = arith.constant 0 : i32
    %c0_i32_0 = arith.constant 0 : i32
    %c0_i32_1 = arith.constant 0 : i32
    return %arg0, %c0_i32, %c0_i32_0 : i32, i32, i32
  }
  func.func @transform_1(%arg0: i32) -> (i32, i32) {
    %c0_i32 = arith.constant 0 : i32
    %c0_i32_0 = arith.constant 0 : i32
    %c0_i32_1 = arith.constant 0 : i32
    return %c0_i32, %c0_i32_0 : i32, i32
  }
  func.func @transform_2(%arg0: i32) -> (i32, i32) {
    %c0_i32 = arith.constant 0 : i32
    %c0_i32_0 = arith.constant 0 : i32
    %c0_i32_1 = arith.constant 0 : i32
    return %c0_i32, %c0_i32_0 : i32, i32
  }
  func.func @transform_3(%arg0: i32) -> (i32, i32, i32) {
    %c0_i32 = arith.constant 0 : i32
    %c0_i32_0 = arith.constant 0 : i32
    %c0_i32_1 = arith.constant 0 : i32
    %c0_i32_2 = arith.constant 0 : i32
    return %c0_i32, %c0_i32_0, %c0_i32_1 : i32, i32, i32
  }
  func.func @transform_4(%arg0: i32) -> (i32, i32) {
    %c0_i32 = arith.constant 0 : i32
    %c0_i32_0 = arith.constant 0 : i32
    %c0_i32_1 = arith.constant 0 : i32
    return %c0_i32, %c0_i32_0 : i32, i32
  }
  func.func @transform_5(%arg0: i32) -> (i32, i32, i32) {
    %c0_i32 = arith.constant 0 : i32
    %c0_i32_0 = arith.constant 0 : i32
    %c0_i32_1 = arith.constant 0 : i32
    return %arg0, %c0_i32, %c0_i32_0 : i32, i32, i32
  }
}

</mosaic_0001>

<llo_original>
// kernel: tpu_custom_call.1
$region0: #{tpu_custom_call.1}
  #allocation0 [shape = 'u32[]', space=smem, size = 0x4, offset = 0x4, fixed_abs, tag = 'smem constant byte address 0x4 - core index']
  #allocation1 [shape = 'u32[144,128]{1,0:T(1,128)}', space=vmem, size = 0x12000, scoped, tag = 'internal scratch']
  %s0 = inlined_call_operand.vmem [shape: f32[2,64,32], index: 0, kind: input, shape index: {}]
  %s1 = inlined_call_operand.vmem [shape: f32[32,96], index: 1, kind: input, shape index: {}]
  %s2 = inlined_call_operand.vmem [shape: f32[128,128], index: 2, kind: input, shape index: {}]
  %s3 = inlined_call_operand.vmem [shape: f32[4,8,32], index: 3, kind: input, shape index: {}]
  %s4 = inlined_call_operand.vmem [shape: f32[1,32], index: 4, kind: input, shape index: {}]
  %s5 = inlined_call_operand.vmem [shape: f32[2,64,32], index: 5, kind: output, shape index: {}]
  %s6 = sld [smem:[#allocation0]]
  $region30: #{tpu_custom_call.1} parent=0
    _
  %s8 = ssub.s32 1, %s6
  %s9 = scalar_select 0, %s8, %s6
  // Predicated region
  $region2: #{tpu_custom_call.1} parent=0 // pred_check
    _
  $region3: #{tpu_custom_call.1} parent=0 // pred_check_branch
    %11 = sbr.rel (0) target = $region5
  $region4: #{tpu_custom_call.1} parent=0 // pred_region
    _
  $region5: #{tpu_custom_call.1} parent=0 // pred_fallthru
    _
  // Predicated region
  $region6: #{tpu_custom_call.1} parent=0 // pred_check
    _
  $region7: #{tpu_custom_call.1} parent=0 // pred_check_branch
    %13 = sbr.rel (0) target = $region9
  $region8: #{tpu_custom_call.1} parent=0 // pred_region
    _
  $region9: #{tpu_custom_call.1} parent=0 // pred_fallthru
    _
  // Predicated region
  $region10: #{tpu_custom_call.1} parent=0 // pred_check
    _
  $region11: #{tpu_custom_call.1} parent=0 // pred_check_branch
    %15 = sbr.rel (0) target = $region13
  $region12: #{tpu_custom_call.1} parent=0 // pred_region
    _
  $region13: #{tpu_custom_call.1} parent=0 // pred_fallthru
    _
  // Predicated region
  $region14: #{tpu_custom_call.1} parent=0 // pred_check
    _
  $region15: #{tpu_custom_call.1} parent=0 // pred_check_branch
    %17 = sbr.rel (0) target = $region17
  $region16: #{tpu_custom_call.1} parent=0 // pred_region
    _
  $region17: #{tpu_custom_call.1} parent=0 // pred_fallthru
    _
  // Predicated region
  $region18: #{tpu_custom_call.1} parent=0 // pred_check
    _
  $region19: #{tpu_custom_call.1} parent=0 // pred_check_branch
    %19 = sbr.rel (0) target = $region21
  $region20: #{tpu_custom_call.1} parent=0 // pred_region
    _
  $region21: #{tpu_custom_call.1} parent=0 // pred_fallthru
    _
  %v20 = vld [vmem:[%s0] sm:$0xff]
  %v21 = vld [vmem:[%s0 + $0x8] sm:$0xff]
  %v22 = vld [vmem:[%s0 + $0x10] sm:$0xff]
  %v23 = vld [vmem:[%s0 + $0x18] sm:$0xff]
  %v24 = vld [vmem:[%s0 + $0x20] sm:$0xff]
  %v25 = vld [vmem:[%s0 + $0x28] sm:$0xff]
  %v26 = vld [vmem:[%s0 + $0x30] sm:$0xff]
  %v27 = vld [vmem:[%s0 + $0x38] sm:$0xff]
  %v28 = vld [vmem:[%s0 + $0x40] sm:$0xff]
  %v29 = vld [vmem:[%s0 + $0x48] sm:$0xff]
  %v30 = vld [vmem:[%s0 + $0x50] sm:$0xff]
  %v31 = vld [vmem:[%s0 + $0x58] sm:$0xff]
  %v32 = vld [vmem:[%s0 + $0x60] sm:$0xff]
  %v33 = vld [vmem:[%s0 + $0x68] sm:$0xff]
  %v34 = vld [vmem:[%s0 + $0x70] sm:$0xff]
  %v35 = vld [vmem:[%s0 + $0x78] sm:$0xff]
  %v36 = vld [vmem:[%s1] sm:$0xff]
  %v37 = vld [vmem:[%s1 + $0x8] sm:$0xff]
  %v38 = vld [vmem:[%s1 + $0x10] sm:$0xff]
  %v39 = vld [vmem:[%s1 + $0x18] sm:$0xff]
  %vm40 = vcmask 261120
  %v42 = vsel %vm40, %v20, 0
  %v45 = vsel %vm40, %v21, 0
  %v48 = vsel %vm40, %v22, 0
  %v51 = vsel %vm40, %v23, 0
  %v54 = vsel %vm40, %v24, 0
  %v57 = vsel %vm40, %v25, 0
  %v60 = vsel %vm40, %v26, 0
  %v63 = vsel %vm40, %v27, 0
  %v66 = vsel %vm40, %v28, 0
  %v69 = vsel %vm40, %v29, 0
  %v72 = vsel %vm40, %v30, 0
  %v75 = vsel %vm40, %v31, 0
  %v78 = vsel %vm40, %v32, 0
  %v81 = vsel %vm40, %v33, 0
  %v84 = vsel %vm40, %v34, 0
  %v87 = vsel %vm40, %v35, 0
  %89 = vmatprep.subr.mxu0 0.0
  %90 = vmatpush1.msra.mxu0 %v36
  %91 = vmatprep.subr.mxu0 0.0
  %92 = vmatpush1.msra.mxu0 %v37
  %93 = vmatprep.subr.mxu0 0.0
  %94 = vmatpush1.msra.mxu0 %v38
  %95 = vmatprep.subr.mxu0 0.0
  %96 = vmatpush1.msra.mxu0 %v39
  %97 = vmatprep.subr.mxu0 0.0
  %98 = vmatpush1.msra.mxu0 0.0
  %99 = vmatprep.subr.mxu0 0.0
  %100 = vmatpush1.msra.mxu0 0.0
  %101 = vmatprep.subr.mxu0 0.0
  %102 = vmatpush1.msra.mxu0 0.0
  %103 = vmatprep.subr.mxu0 0.0
  %104 = vmatpush1.msra.mxu0 0.0
  %105 = vmatprep.subr.mxu0 0.0
  %106 = vmatpush1.msra.mxu0 0.0
  %107 = vmatprep.subr.mxu0 0.0
  %108 = vmatpush1.msra.mxu0 0.0
  %109 = vmatprep.subr.mxu0 0.0
  %110 = vmatpush1.msra.mxu0 0.0
  %111 = vmatprep.subr.mxu0 0.0
  %112 = vmatpush1.msra.mxu0 0.0
  %113 = vmatprep.subr.mxu0 0.0
  %114 = vmatpush1.msra.mxu0 0.0
  %115 = vmatprep.subr.mxu0 0.0
  %116 = vmatpush1.msra.mxu0 0.0
  %117 = vmatprep.subr.mxu0 0.0
  %118 = vmatpush1.msra.mxu0 0.0
  %119 = vmatprep.subr.mxu0 0.0
  %120 = vmatpush1.msra.mxu0 0.0
  %121 = vmatprep.subr.mxu0 0.0
  %122 = vmatpush1.msra.mxu0 0.0
  %123 = vmatprep.subr.mxu0 0.0
  %124 = vmatpush1.msra.mxu0 0.0
  %125 = vmatprep.subr.mxu0 0.0
  %126 = vmatpush1.msra.mxu0 0.0
  %127 = vmatprep.subr.mxu0 0.0
  %128 = vmatpush1.msra.mxu0 0.0
  %129 = vmatprep.subr.mxu0 0.0
  %130 = vmatpush1.msra.mxu0 0.0
  %131 = vmatprep.subr.mxu0 0.0
  %132 = vmatpush1.msra.mxu0 0.0
  %133 = vmatprep.subr.mxu0 0.0
  %134 = vmatpush1.msra.mxu0 0.0
  %135 = vmatprep.subr.mxu0 0.0
  %136 = vmatpush1.msra.mxu0 0.0
  %137 = vmatprep.subr.mxu0 0.0
  %138 = vmatpush1.msra.mxu0 0.0
  %139 = vmatprep.subr.mxu0 0.0
  %140 = vmatpush1.msra.mxu0 0.0
  %141 = vmatprep.subr.mxu0 0.0
  %142 = vmatpush1.msra.mxu0 0.0
  %143 = vmatprep.subr.mxu0 0.0
  %144 = vmatpush1.msra.mxu0 0.0
  %145 = vmatprep.subr.mxu0 0.0
  %146 = vmatpush1.msra.mxu0 0.0
  %147 = vmatprep.subr.mxu0 0.0
  %148 = vmatpush1.msra.mxu0 0.0
  %149 = vmatprep.subr.mxu0 0.0
  %150 = vmatpush1.msra.mxu0 0.0
  %151 = vmatprep.subr.mxu0 0.0
  %152 = vmatpush1.msra.mxu0 0.0
  %153 = vmatprep.mubr.f32.mxu0 0.0
  %154 = vmatmul.mubr.f32.gmra.mrb[0].mxu0 %v42
  %v155 = vpop.f32.mrb[0].mxu0
  %v156 = vadd.f32 0.0, %v155
  %v157 = vpop.f32.mrb[0].mxu0
  %158 = vmatprep.mubr.f32.mxu0 0.0
  %159 = vmatmul.mubr.f32.gmra.mrb[0].mxu0 %v45
  %v160 = vpop.f32.mrb[0].mxu0
  %v161 = vadd.f32 0.0, %v160
  %v162 = vpop.f32.mrb[0].mxu0
  %163 = vmatprep.mubr.f32.mxu0 0.0
  %164 = vmatmul.mubr.f32.gmra.mrb[0].mxu0 %v48
  %v165 = vpop.f32.mrb[0].mxu0
  %v166 = vadd.f32 0.0, %v165
  %v167 = vpop.f32.mrb[0].mxu0
  %168 = vmatprep.mubr.f32.mxu0 0.0
  %169 = vmatmul.mubr.f32.gmra.mrb[0].mxu0 %v51
  %v170 = vpop.f32.mrb[0].mxu0
  %v171 = vadd.f32 0.0, %v170
  %v172 = vpop.f32.mrb[0].mxu0
  %173 = vmatprep.mubr.f32.mxu0 0.0
  %174 = vmatmul.mubr.f32.gmra.mrb[0].mxu0 %v54
  %v175 = vpop.f32.mrb[0].mxu0
  %v176 = vadd.f32 0.0, %v175
  %v177 = vpop.f32.mrb[0].mxu0
  %178 = vmatprep.mubr.f32.mxu0 0.0
  %179 = vmatmul.mubr.f32.gmra.mrb[0].mxu0 %v57
  %v180 = vpop.f32.mrb[0].mxu0
  %v181 = vadd.f32 0.0, %v180
  %v182 = vpop.f32.mrb[0].mxu0
  %183 = vmatprep.mubr.f32.mxu0 0.0
  %184 = vmatmul.mubr.f32.gmra.mrb[0].mxu0 %v60
  %v185 = vpop.f32.mrb[0].mxu0
  %v186 = vadd.f32 0.0, %v185
  %v187 = vpop.f32.mrb[0].mxu0
  %188 = vmatprep.mubr.f32.mxu0 0.0
  %189 = vmatmul.mubr.f32.gmra.mrb[0].mxu0 %v63
  %v190 = vpop.f32.mrb[0].mxu0
  %v191 = vadd.f32 0.0, %v190
  %v192 = vpop.f32.mrb[0].mxu0
  %193 = vmatprep.mubr.f32.mxu0 0.0
  %194 = vmatmul.mubr.f32.gmra.mrb[0].mxu0 %v66
  %v195 = vpop.f32.mrb[0].mxu0
  %v196 = vadd.f32 0.0, %v195
  %v197 = vpop.f32.mrb[0].mxu0
  %198 = vmatprep.mubr.f32.mxu0 0.0
  %199 = vmatmul.mubr.f32.gmra.mrb[0].mxu0 %v69
  %v200 = vpop.f32.mrb[0].mxu0
  %v201 = vadd.f32 0.0, %v200
  %v202 = vpop.f32.mrb[0].mxu0
  %203 = vmatprep.mubr.f32.mxu0 0.0
  %204 = vmatmul.mubr.f32.gmra.mrb[0].mxu0 %v72
  %v205 = vpop.f32.mrb[0].mxu0
  %v206 = vadd.f32 0.0, %v205
  %v207 = vpop.f32.mrb[0].mxu0
  %208 = vmatprep.mubr.f32.mxu0 0.0
  %209 = vmatmul.mubr.f32.gmra.mrb[0].mxu0 %v75
  %v210 = vpop.f32.mrb[0].mxu0
  %v211 = vadd.f32 0.0, %v210
  %v212 = vpop.f32.mrb[0].mxu0
  %213 = vmatprep.mubr.f32.mxu0 0.0
  %214 = vmatmul.mubr.f32.gmra.mrb[0].mxu0 %v78
  %v215 = vpop.f32.mrb[0].mxu0
  %v216 = vadd.f32 0.0, %v215
  %v217 = vpop.f32.mrb[0].mxu0
  %218 = vmatprep.mubr.f32.mxu0 0.0
  %219 = vmatmul.mubr.f32.gmra.mrb[0].mxu0 %v81
  %v220 = vpop.f32.mrb[0].mxu0
  %v221 = vadd.f32 0.0, %v220
  %v222 = vpop.f32.mrb[0].mxu0
  %223 = vmatprep.mubr.f32.mxu0 0.0
  %224 = vmatmul.mubr.f32.gmra.mrb[0].mxu0 %v84
  %v225 = vpop.f32.mrb[0].mxu0
  %v226 = vadd.f32 0.0, %v225
  %v227 = vpop.f32.mrb[0].mxu0
  %228 = vmatprep.mubr.f32.mxu0 0.0
  %229 = vmatmul.mubr.f32.gmra.mrb[0].mxu0 %v87
  %v230 = vpop.f32.mrb[0].mxu0
  %v231 = vadd.f32 0.0, %v230
  %v232 = vpop.f32.mrb[0].mxu0
  %233 = vdwg.mxu0
  %250 = vrot.lane.b32.xlu0 %v156, 120
  %v251 = vpop.permute.xlu0 %250
  %252 = vrot.lane.b32.xlu0 %v161, 120
  %v253 = vpop.permute.xlu0 %252
  %254 = vrot.lane.b32.xlu0 %v166, 120
  %v255 = vpop.permute.xlu0 %254
  %256 = vrot.lane.b32.xlu0 %v171, 120
  %v257 = vpop.permute.xlu0 %256
  %258 = vrot.lane.b32.xlu0 %v176, 120
  %v259 = vpop.permute.xlu0 %258
  %260 = vrot.lane.b32.xlu0 %v181, 120
  %v261 = vpop.permute.xlu0 %260
  %262 = vrot.lane.b32.xlu0 %v186, 120
  %v263 = vpop.permute.xlu0 %262
  %264 = vrot.lane.b32.xlu0 %v191, 120
  %v265 = vpop.permute.xlu0 %264
  %266 = vrot.lane.b32.xlu0 %v196, 120
  %v267 = vpop.permute.xlu0 %266
  %268 = vrot.lane.b32.xlu0 %v201, 120
  %v269 = vpop.permute.xlu0 %268
  %270 = vrot.lane.b32.xlu0 %v206, 120
  %v271 = vpop.permute.xlu0 %270
  %272 = vrot.lane.b32.xlu0 %v211, 120
  %v273 = vpop.permute.xlu0 %272
  %274 = vrot.lane.b32.xlu0 %v216, 120
  %v275 = vpop.permute.xlu0 %274
  %276 = vrot.lane.b32.xlu0 %v221, 120
  %v277 = vpop.permute.xlu0 %276
  %278 = vrot.lane.b32.xlu0 %v226, 120
  %v279 = vpop.permute.xlu0 %278
  %280 = vrot.lane.b32.xlu0 %v231, 120
  %v281 = vpop.permute.xlu0 %280
  %298 = vrot.lane.b32.xlu0 %v156, 112
  %v299 = vpop.permute.xlu0 %298
  %300 = vrot.lane.b32.xlu0 %v161, 112
  %v301 = vpop.permute.xlu0 %300
  %302 = vrot.lane.b32.xlu0 %v166, 112
  %v303 = vpop.permute.xlu0 %302
  %304 = vrot.lane.b32.xlu0 %v171, 112
  %v305 = vpop.permute.xlu0 %304
  %306 = vrot.lane.b32.xlu0 %v176, 112
  %v307 = vpop.permute.xlu0 %306
  %308 = vrot.lane.b32.xlu0 %v181, 112
  %v309 = vpop.permute.xlu0 %308
  %310 = vrot.lane.b32.xlu0 %v186, 112
  %v311 = vpop.permute.xlu0 %310
  %312 = vrot.lane.b32.xlu0 %v191, 112
  %v313 = vpop.permute.xlu0 %312
  %314 = vrot.lane.b32.xlu0 %v196, 112
  %v315 = vpop.permute.xlu0 %314
  %316 = vrot.lane.b32.xlu0 %v201, 112
  %v317 = vpop.permute.xlu0 %316
  %318 = vrot.lane.b32.xlu0 %v206, 112
  %v319 = vpop.permute.xlu0 %318
  %320 = vrot.lane.b32.xlu0 %v211, 112
  %v321 = vpop.permute.xlu0 %320
  %322 = vrot.lane.b32.xlu0 %v216, 112
  %v323 = vpop.permute.xlu0 %322
  %324 = vrot.lane.b32.xlu0 %v221, 112
  %v325 = vpop.permute.xlu0 %324
  %326 = vrot.lane.b32.xlu0 %v226, 112
  %v327 = vpop.permute.xlu0 %326
  %328 = vrot.lane.b32.xlu0 %v231, 112
  %v329 = vpop.permute.xlu0 %328
  %346 = vrot.lane.b32.xlu0 %v156, 104
  %v347 = vpop.permute.xlu0 %346
  %348 = vrot.lane.b32.xlu0 %v161, 104
  %v349 = vpop.permute.xlu0 %348
  %350 = vrot.lane.b32.xlu0 %v166, 104
  %v351 = vpop.permute.xlu0 %350
  %352 = vrot.lane.b32.xlu0 %v171, 104
  %v353 = vpop.permute.xlu0 %352
  %354 = vrot.lane.b32.xlu0 %v176, 104
  %v355 = vpop.permute.xlu0 %354
  %356 = vrot.lane.b32.xlu0 %v181, 104
  %v357 = vpop.permute.xlu0 %356
  %358 = vrot.lane.b32.xlu0 %v186, 104
  %v359 = vpop.permute.xlu0 %358
  %360 = vrot.lane.b32.xlu0 %v191, 104
  %v361 = vpop.permute.xlu0 %360
  %362 = vrot.lane.b32.xlu0 %v196, 104
  %v363 = vpop.permute.xlu0 %362
  %364 = vrot.lane.b32.xlu0 %v201, 104
  %v365 = vpop.permute.xlu0 %364
  %366 = vrot.lane.b32.xlu0 %v206, 104
  %v367 = vpop.permute.xlu0 %366
  %368 = vrot.lane.b32.xlu0 %v211, 104
  %v369 = vpop.permute.xlu0 %368
  %370 = vrot.lane.b32.xlu0 %v216, 104
  %v371 = vpop.permute.xlu0 %370
  %372 = vrot.lane.b32.xlu0 %v221, 104
  %v373 = vpop.permute.xlu0 %372
  %374 = vrot.lane.b32.xlu0 %v226, 104
  %v375 = vpop.permute.xlu0 %374
  %376 = vrot.lane.b32.xlu0 %v231, 104
  %v377 = vpop.permute.xlu0 %376
  %v394 = vmul.f32 %v156, 0.35355338
  %v395 = vmul.f32 %v161, 0.35355338
  %v396 = vmul.f32 %v166, 0.35355338
  %v397 = vmul.f32 %v171, 0.35355338
  %v398 = vmul.f32 %v176, 0.35355338
  %v399 = vmul.f32 %v181, 0.35355338
  %v400 = vmul.f32 %v186, 0.35355338
  %v401 = vmul.f32 %v191, 0.35355338
  %v402 = vmul.f32 %v196, 0.35355338
  %v403 = vmul.f32 %v201, 0.35355338
  %v404 = vmul.f32 %v206, 0.35355338
  %v405 = vmul.f32 %v211, 0.35355338
  %v406 = vmul.f32 %v216, 0.35355338
  %v407 = vmul.f32 %v221, 0.35355338
  %v408 = vmul.f32 %v226, 0.35355338
  %v409 = vmul.f32 %v231, 0.35355338
  %v410 = vmul.f32 %v251, 0.35355338
  %v411 = vmul.f32 %v253, 0.35355338
  %v412 = vmul.f32 %v255, 0.35355338
  %v413 = vmul.f32 %v257, 0.35355338
  %v414 = vmul.f32 %v259, 0.35355338
  %v415 = vmul.f32 %v261, 0.35355338
  %v416 = vmul.f32 %v263, 0.35355338
  %v417 = vmul.f32 %v265, 0.35355338
  %v418 = vmul.f32 %v267, 0.35355338
  %v419 = vmul.f32 %v269, 0.35355338
  %v420 = vmul.f32 %v271, 0.35355338
  %v421 = vmul.f32 %v273, 0.35355338
  %v422 = vmul.f32 %v275, 0.35355338
  %v423 = vmul.f32 %v277, 0.35355338
  %v424 = vmul.f32 %v279, 0.35355338
  %v425 = vmul.f32 %v281, 0.35355338
  %v426 = vmul.f32 %v299, 0.35355338
  %v427 = vmul.f32 %v301, 0.35355338
  %v428 = vmul.f32 %v303, 0.35355338
  %v429 = vmul.f32 %v305, 0.35355338
  %v430 = vmul.f32 %v307, 0.35355338
  %v431 = vmul.f32 %v309, 0.35355338
  %v432 = vmul.f32 %v311, 0.35355338
  %v433 = vmul.f32 %v313, 0.35355338
  %v434 = vmul.f32 %v315, 0.35355338
  %v435 = vmul.f32 %v317, 0.35355338
  %v436 = vmul.f32 %v319, 0.35355338
  %v437 = vmul.f32 %v321, 0.35355338
  %v438 = vmul.f32 %v323, 0.35355338
  %v439 = vmul.f32 %v325, 0.35355338
  %v440 = vmul.f32 %v327, 0.35355338
  %v441 = vmul.f32 %v329, 0.35355338
  %v442 = vmul.f32 %v347, 0.35355338
  %v443 = vmul.f32 %v349, 0.35355338
  %v444 = vmul.f32 %v351, 0.35355338
  %v445 = vmul.f32 %v353, 0.35355338
  %v446 = vmul.f32 %v355, 0.35355338
  %v447 = vmul.f32 %v357, 0.35355338
  %v448 = vmul.f32 %v359, 0.35355338
  %v449 = vmul.f32 %v361, 0.35355338
  %v450 = vmul.f32 %v363, 0.35355338
  %v451 = vmul.f32 %v365, 0.35355338
  %v452 = vmul.f32 %v367, 0.35355338
  %v453 = vmul.f32 %v369, 0.35355338
  %v454 = vmul.f32 %v371, 0.35355338
  %v455 = vmul.f32 %v373, 0.35355338
  %v456 = vmul.f32 %v375, 0.35355338
  %v457 = vmul.f32 %v377, 0.35355338
  %v458 = vld [vmem:[%s2] sm:$0xff]
  %v459 = vld [vmem:[%s2 + $0x8] sm:$0xff]
  %v460 = vld [vmem:[%s2 + $0x10] sm:$0xff]
  %v461 = vld [vmem:[%s2 + $0x18] sm:$0xff]
  %v462 = vld [vmem:[%s2 + $0x20] sm:$0xff]
  %v463 = vld [vmem:[%s2 + $0x28] sm:$0xff]
  %v464 = vld [vmem:[%s2 + $0x30] sm:$0xff]
  %v465 = vld [vmem:[%s2 + $0x38] sm:$0xff]
  %v466 = vld [vmem:[%s2 + $0x40] sm:$0xff]
  %v467 = vld [vmem:[%s2 + $0x48] sm:$0xff]
  %v468 = vld [vmem:[%s2 + $0x50] sm:$0xff]
  %v469 = vld [vmem:[%s2 + $0x58] sm:$0xff]
  %v470 = vld [vmem:[%s2 + $0x60] sm:$0xff]
  %v471 = vld [vmem:[%s2 + $0x68] sm:$0xff]
  %v472 = vld [vmem:[%s2 + $0x70] sm:$0xff]
  %v473 = vld [vmem:[%s2 + $0x78] sm:$0xff]
  %474 = vrot.lane.b32.xlu0 %v156, 96
  %v475 = vpop.permute.xlu0 %474
  %476 = vrot.lane.b32.xlu0 %v161, 96
  %v477 = vpop.permute.xlu0 %476
  %478 = vrot.lane.b32.xlu0 %v166, 96
  %v479 = vpop.permute.xlu0 %478
  %480 = vrot.lane.b32.xlu0 %v171, 96
  %v481 = vpop.permute.xlu0 %480
  %482 = vrot.lane.b32.xlu0 %v176, 96
  %v483 = vpop.permute.xlu0 %482
  %484 = vrot.lane.b32.xlu0 %v181, 96
  %v485 = vpop.permute.xlu0 %484
  %486 = vrot.lane.b32.xlu0 %v186, 96
  %v487 = vpop.permute.xlu0 %486
  %488 = vrot.lane.b32.xlu0 %v191, 96
  %v489 = vpop.permute.xlu0 %488
  %490 = vrot.lane.b32.xlu0 %v196, 96
  %v491 = vpop.permute.xlu0 %490
  %492 = vrot.lane.b32.xlu0 %v201, 96
  %v493 = vpop.permute.xlu0 %492
  %494 = vrot.lane.b32.xlu0 %v206, 96
  %v495 = vpop.permute.xlu0 %494
  %496 = vrot.lane.b32.xlu0 %v211, 96
  %v497 = vpop.permute.xlu0 %496
  %498 = vrot.lane.b32.xlu0 %v216, 96
  %v499 = vpop.permute.xlu0 %498
  %500 = vrot.lane.b32.xlu0 %v221, 96
  %v501 = vpop.permute.xlu0 %500
  %502 = vrot.lane.b32.xlu0 %v226, 96
  %v503 = vpop.permute.xlu0 %502
  %504 = vrot.lane.b32.xlu0 %v231, 96
  %v505 = vpop.permute.xlu0 %504
  %vm506 = vcmask 64512
  %v508 = vsel %vm506, %v394, 0
  %v511 = vsel %vm506, %v395, 0
  %v514 = vsel %vm506, %v396, 0
  %v517 = vsel %vm506, %v397, 0
  %v520 = vsel %vm506, %v398, 0
  %v523 = vsel %vm506, %v399, 0
  %v526 = vsel %vm506, %v400, 0
  %v529 = vsel %vm506, %v401, 0
  %v532 = vsel %vm506, %v402, 0
  %v535 = vsel %vm506, %v403, 0
  %v538 = vsel %vm506, %v404, 0
  %v541 = vsel %vm506, %v405, 0
  %v544 = vsel %vm506, %v406, 0
  %v547 = vsel %vm506, %v407, 0
  %v550 = vsel %vm506, %v408, 0
  %v553 = vsel %vm506, %v409, 0
  %v555 = vsel %vm506, %v475, 0
  %v557 = vsel %vm506, %v477, 0
  %v559 = vsel %vm506, %v479, 0
  %v561 = vsel %vm506, %v481, 0
  %v563 = vsel %vm506, %v483, 0
  %v565 = vsel %vm506, %v485, 0
  %v567 = vsel %vm506, %v487, 0
  %v569 = vsel %vm506, %v489, 0
  %v571 = vsel %vm506, %v491, 0
  %v573 = vsel %vm506, %v493, 0
  %v575 = vsel %vm506, %v495, 0
  %v577 = vsel %vm506, %v497, 0
  %v579 = vsel %vm506, %v499, 0
  %v581 = vsel %vm506, %v501, 0
  %v583 = vsel %vm506, %v503, 0
  %v585 = vsel %vm506, %v505, 0
  %587 = vmatprep.subr.mxu0 0.0
  %588 = vmatpush1.xpose.msra.mxu0 %v555
  %589 = vmatprep.subr.mxu0 0.0
  %590 = vmatpush1.xpose.msra.mxu0 %v557
  %591 = vmatprep.subr.mxu0 0.0
  %592 = vmatpush1.xpose.msra.mxu0 %v559
  %593 = vmatprep.subr.mxu0 0.0
  %594 = vmatpush1.xpose.msra.mxu0 %v561
  %595 = vmatprep.subr.mxu0 0.0
  %596 = vmatpush1.xpose.msra.mxu0 %v563
  %597 = vmatprep.subr.mxu0 0.0
  %598 = vmatpush1.xpose.msra.mxu0 %v565
  %599 = vmatprep.subr.mxu0 0.0
  %600 = vmatpush1.xpose.msra.mxu0 %v567
  %601 = vmatprep.subr.mxu0 0.0
  %602 = vmatpush1.xpose.msra.mxu0 %v569
  %603 = vmatprep.subr.mxu0 0.0
  %604 = vmatpush1.xpose.msra.mxu0 %v571
  %605 = vmatprep.subr.mxu0 0.0
  %606 = vmatpush1.xpose.msra.mxu0 %v573
  %607 = vmatprep.subr.mxu0 0.0
  %608 = vmatpush1.xpose.msra.mxu0 %v575
  %609 = vmatprep.subr.mxu0 0.0
  %610 = vmatpush1.xpose.msra.mxu0 %v577
  %611 = vmatprep.subr.mxu0 0.0
  %612 = vmatpush1.xpose.msra.mxu0 %v579
  %613 = vmatprep.subr.mxu0 0.0
  %614 = vmatpush1.xpose.msra.mxu0 %v581
  %615 = vmatprep.subr.mxu0 0.0
  %616 = vmatpush1.xpose.msra.mxu0 %v583
  %617 = vmatprep.subr.mxu0 0.0
  %618 = vmatpush1.xpose.msra.mxu0 %v585
  %619 = vmatprep.subr.mxu0 0.0
  %620 = vmatpush1.xpose.msra.mxu0 0.0
  %621 = vmatprep.subr.mxu0 0.0
  %622 = vmatpush1.xpose.msra.mxu0 0.0
  %623 = vmatprep.subr.mxu0 0.0
  %624 = vmatpush1.xpose.msra.mxu0 0.0
  %625 = vmatprep.subr.mxu0 0.0
  %626 = vmatpush1.xpose.msra.mxu0 0.0
  %627 = vmatprep.subr.mxu0 0.0
  %628 = vmatpush1.xpose.msra.mxu0 0.0
  %629 = vmatprep.subr.mxu0 0.0
  %630 = vmatpush1.xpose.msra.mxu0 0.0
  %631 = vmatprep.subr.mxu0 0.0
  %632 = vmatpush1.xpose.msra.mxu0 0.0
  %633 = vmatprep.subr.mxu0 0.0
  %634 = vmatpush1.xpose.msra.mxu0 0.0
  %635 = vmatprep.subr.mxu0 0.0
  %636 = vmatpush1.xpose.msra.mxu0 0.0
  %637 = vmatprep.subr.mxu0 0.0
  %638 = vmatpush1.xpose.msra.mxu0 0.0
  %639 = vmatprep.subr.mxu0 0.0
  %640 = vmatpush1.xpose.msra.mxu0 0.0
  %641 = vmatprep.subr.mxu0 0.0
  %642 = vmatpush1.xpose.msra.mxu0 0.0
  %643 = vmatprep.subr.mxu0 0.0
  %644 = vmatpush1.xpose.msra.mxu0 0.0
  %645 = vmatprep.subr.mxu0 0.0
  %646 = vmatpush1.xpose.msra.mxu0 0.0
  %647 = vmatprep.subr.mxu0 0.0
  %648 = vmatpush1.xpose.msra.mxu0 0.0
  %649 = vmatprep.subr.mxu0 0.0
  %650 = vmatpush1.xpose.msra.mxu0 0.0
  %651 = vmatprep.mubr.f32.mxu0 0.0
  %652 = vmatmul.mubr.f32.gmra.mrb[0].mxu0 %v508
  %v653 = vpop.f32.mrb[0].mxu0
  %v654 = vadd.f32 %v458, %v653
  %v655 = vpop.f32.mrb[0].mxu0
  %656 = vmatprep.mubr.f32.mxu0 0.0
  %657 = vmatmul.mubr.f32.gmra.mrb[0].mxu0 %v511
  %v658 = vpop.f32.mrb[0].mxu0
  %v659 = vadd.f32 %v459, %v658
  %v660 = vpop.f32.mrb[0].mxu0
  %661 = vmatprep.mubr.f32.mxu0 0.0
  %662 = vmatmul.mubr.f32.gmra.mrb[0].mxu0 %v514
  %v663 = vpop.f32.mrb[0].mxu0
  %v664 = vadd.f32 %v460, %v663
  %v665 = vpop.f32.mrb[0].mxu0
  %666 = vmatprep.mubr.f32.mxu0 0.0
  %667 = vmatmul.mubr.f32.gmra.mrb[0].mxu0 %v517
  %v668 = vpop.f32.mrb[0].mxu0
  %v669 = vadd.f32 %v461, %v668
  %v670 = vpop.f32.mrb[0].mxu0
  %671 = vmatprep.mubr.f32.mxu0 0.0
  %672 = vmatmul.mubr.f32.gmra.mrb[0].mxu0 %v520
  %v673 = vpop.f32.mrb[0].mxu0
  %v674 = vadd.f32 %v462, %v673
  %v675 = vpop.f32.mrb[0].mxu0
  %676 = vmatprep.mubr.f32.mxu0 0.0
  %677 = vmatmul.mubr.f32.gmra.mrb[0].mxu0 %v523
  %v678 = vpop.f32.mrb[0].mxu0
  %v679 = vadd.f32 %v463, %v678
  %v680 = vpop.f32.mrb[0].mxu0
  %681 = vmatprep.mubr.f32.mxu0 0.0
  %682 = vmatmul.mubr.f32.gmra.mrb[0].mxu0 %v526
  %v683 = vpop.f32.mrb[0].mxu0
  %v684 = vadd.f32 %v464, %v683
  %v685 = vpop.f32.mrb[0].mxu0
  %686 = vmatprep.mubr.f32.mxu0 0.0
  %687 = vmatmul.mubr.f32.gmra.mrb[0].mxu0 %v529
  %v688 = vpop.f32.mrb[0].mxu0
  %v689 = vadd.f32 %v465, %v688
  %v690 = vpop.f32.mrb[0].mxu0
  %691 = vmatprep.mubr.f32.mxu0 0.0
  %692 = vmatmul.mubr.f32.gmra.mrb[0].mxu0 %v532
  %v693 = vpop.f32.mrb[0].mxu0
  %v694 = vadd.f32 %v466, %v693
  %v695 = vpop.f32.mrb[0].mxu0
  %696 = vmatprep.mubr.f32.mxu0 0.0
  %697 = vmatmul.mubr.f32.gmra.mrb[0].mxu0 %v535
  %v698 = vpop.f32.mrb[0].mxu0
  %v699 = vadd.f32 %v467, %v698
  %v700 = vpop.f32.mrb[0].mxu0
  %701 = vmatprep.mubr.f32.mxu0 0.0
  %702 = vmatmul.mubr.f32.gmra.mrb[0].mxu0 %v538
  %v703 = vpop.f32.mrb[0].mxu0
  %v704 = vadd.f32 %v468, %v703
  %v705 = vpop.f32.mrb[0].mxu0
  %706 = vmatprep.mubr.f32.mxu0 0.0
  %707 = vmatmul.mubr.f32.gmra.mrb[0].mxu0 %v541
  %v708 = vpop.f32.mrb[0].mxu0
  %v709 = vadd.f32 %v469, %v708
  %v710 = vpop.f32.mrb[0].mxu0
  %711 = vmatprep.mubr.f32.mxu0 0.0
  %712 = vmatmul.mubr.f32.gmra.mrb[0].mxu0 %v544
  %v713 = vpop.f32.mrb[0].mxu0
  %v714 = vadd.f32 %v470, %v713
  %v715 = vpop.f32.mrb[0].mxu0
  %716 = vmatprep.mubr.f32.mxu0 0.0
  %717 = vmatmul.mubr.f32.gmra.mrb[0].mxu0 %v547
  %v718 = vpop.f32.mrb[0].mxu0
  %v719 = vadd.f32 %v471, %v718
  %v720 = vpop.f32.mrb[0].mxu0
  %721 = vmatprep.mubr.f32.mxu0 0.0
  %722 = vmatmul.mubr.f32.gmra.mrb[0].mxu0 %v550
  %v723 = vpop.f32.mrb[0].mxu0
  %v724 = vadd.f32 %v472, %v723
  %v725 = vpop.f32.mrb[0].mxu0
  %726 = vmatprep.mubr.f32.mxu0 0.0
  %727 = vmatmul.mubr.f32.gmra.mrb[0].mxu0 %v553
  %v728 = vpop.f32.mrb[0].mxu0
  %v729 = vadd.f32 %v473, %v728
  %v730 = vpop.f32.mrb[0].mxu0
  %731 = vdwg.mxu0
  %732 = vrot.lane.b32.xlu0 %v251, 96
  %v733 = vpop.permute.xlu0 %732
  %734 = vrot.lane.b32.xlu0 %v253, 96
  %v735 = vpop.permute.xlu0 %734
  %736 = vrot.lane.b32.xlu0 %v255, 96
  %v737 = vpop.permute.xlu0 %736
  %738 = vrot.lane.b32.xlu0 %v257, 96
  %v739 = vpop.permute.xlu0 %738
  %740 = vrot.lane.b32.xlu0 %v259, 96
  %v741 = vpop.permute.xlu0 %740
  %742 = vrot.lane.b32.xlu0 %v261, 96
  %v743 = vpop.permute.xlu0 %742
  %744 = vrot.lane.b32.xlu0 %v263, 96
  %v745 = vpop.permute.xlu0 %744
  %746 = vrot.lane.b32.xlu0 %v265, 96
  %v747 = vpop.permute.xlu0 %746
  %748 = vrot.lane.b32.xlu0 %v267, 96
  %v749 = vpop.permute.xlu0 %748
  %750 = vrot.lane.b32.xlu0 %v269, 96
  %v751 = vpop.permute.xlu0 %750
  %752 = vrot.lane.b32.xlu0 %v271, 96
  %v753 = vpop.permute.xlu0 %752
  %754 = vrot.lane.b32.xlu0 %v273, 96
  %v755 = vpop.permute.xlu0 %754
  %756 = vrot.lane.b32.xlu0 %v275, 96
  %v757 = vpop.permute.xlu0 %756
  %758 = vrot.lane.b32.xlu0 %v277, 96
  %v759 = vpop.permute.xlu0 %758
  %760 = vrot.lane.b32.xlu0 %v279, 96
  %v761 = vpop.permute.xlu0 %760
  %762 = vrot.lane.b32.xlu0 %v281, 96
  %v763 = vpop.permute.xlu0 %762
  %v765 = vsel %vm506, %v410, 0
  %v768 = vsel %vm506, %v411, 0
  %v771 = vsel %vm506, %v412, 0
  %v774 = vsel %vm506, %v413, 0
  %v777 = vsel %vm506, %v414, 0
  %v780 = vsel %vm506, %v415, 0
  %v783 = vsel %vm506, %v416, 0
  %v786 = vsel %vm506, %v417, 0
  %v789 = vsel %vm506, %v418, 0
  %v792 = vsel %vm506, %v419, 0
  %v795 = vsel %vm506, %v420, 0
  %v798 = vsel %vm506, %v421, 0
  %v801 = vsel %vm506, %v422, 0
  %v804 = vsel %vm506, %v423, 0
  %v807 = vsel %vm506, %v424, 0
  %v810 = vsel %vm506, %v425, 0
  %v812 = vsel %vm506, %v733, 0
  %v814 = vsel %vm506, %v735, 0
  %v816 = vsel %vm506, %v737, 0
  %v818 = vsel %vm506, %v739, 0
  %v820 = vsel %vm506, %v741, 0
  %v822 = vsel %vm506, %v743, 0
  %v824 = vsel %vm506, %v745, 0
  %v826 = vsel %vm506, %v747, 0
  %v828 = vsel %vm506, %v749, 0
  %v830 = vsel %vm506, %v751, 0
  %v832 = vsel %vm506, %v753, 0
  %v834 = vsel %vm506, %v755, 0
  %v836 = vsel %vm506, %v757, 0
  %v838 = vsel %vm506, %v759, 0
  %v840 = vsel %vm506, %v761, 0
  %v842 = vsel %vm506, %v763, 0
  %844 = vmatprep.subr.mxu0 0.0
  %845 = vmatpush1.xpose.msra.mxu0 %v812
  %846 = vmatprep.subr.mxu0 0.0
  %847 = vmatpush1.xpose.msra.mxu0 %v814
  %848 = vmatprep.subr.mxu0 0.0
  %849 = vmatpush1.xpose.msra.mxu0 %v816
  %850 = vmatprep.subr.mxu0 0.0
  %851 = vmatpush1.xpose.msra.mxu0 %v818
  %852 = vmatprep.subr.mxu0 0.0
  %853 = vmatpush1.xpose.msra.mxu0 %v820
  %854 = vmatprep.subr.mxu0 0.0
  %855 = vmatpush1.xpose.msra.mxu0 %v822
  %856 = vmatprep.subr.mxu0 0.0
  %857 = vmatpush1.xpose.msra.mxu0 %v824
  %858 = vmatprep.subr.mxu0 0.0
  %859 = vmatpush1.xpose.msra.mxu0 %v826
  %860 = vmatprep.subr.mxu0 0.0
  %861 = vmatpush1.xpose.msra.mxu0 %v828
  %862 = vmatprep.subr.mxu0 0.0
  %863 = vmatpush1.xpose.msra.mxu0 %v830
  %864 = vmatprep.subr.mxu0 0.0
  %865 = vmatpush1.xpose.msra.mxu0 %v832
  %866 = vmatprep.subr.mxu0 0.0
  %867 = vmatpush1.xpose.msra.mxu0 %v834
  %868 = vmatprep.subr.mxu0 0.0
  %869 = vmatpush1.xpose.msra.mxu0 %v836
  %870 = vmatprep.subr.mxu0 0.0
  %871 = vmatpush1.xpose.msra.mxu0 %v838
  %872 = vmatprep.subr.mxu0 0.0
  %873 = vmatpush1.xpose.msra.mxu0 %v840
  %874 = vmatprep.subr.mxu0 0.0
  %875 = vmatpush1.xpose.msra.mxu0 %v842
  %876 = vmatprep.subr.mxu0 0.0
  %877 = vmatpush1.xpose.msra.mxu0 0.0
  %878 = vmatprep.subr.mxu0 0.0
  %879 = vmatpush1.xpose.msra.mxu0 0.0
  %880 = vmatprep.subr.mxu0 0.0
  %881 = vmatpush1.xpose.msra.mxu0 0.0
  %882 = vmatprep.subr.mxu0 0.0
  %883 = vmatpush1.xpose.msra.mxu0 0.0
  %884 = vmatprep.subr.mxu0 0.0
  %885 = vmatpush1.xpose.msra.mxu0 0.0
  %886 = vmatprep.subr.mxu0 0.0
  %887 = vmatpush1.xpose.msra.mxu0 0.0
  %888 = vmatprep.subr.mxu0 0.0
  %889 = vmatpush1.xpose.msra.mxu0 0.0
  %890 = vmatprep.subr.mxu0 0.0
  %891 = vmatpush1.xpose.msra.mxu0 0.0
  %892 = vmatprep.subr.mxu0 0.0
  %893 = vmatpush1.xpose.msra.mxu0 0.0
  %894 = vmatprep.subr.mxu0 0.0
  %895 = vmatpush1.xpose.msra.mxu0 0.0
  %896 = vmatprep.subr.mxu0 0.0
  %897 = vmatpush1.xpose.msra.mxu0 0.0
  %898 = vmatprep.subr.mxu0 0.0
  %899 = vmatpush1.xpose.msra.mxu0 0.0
  %900 = vmatprep.subr.mxu0 0.0
  %901 = vmatpush1.xpose.msra.mxu0 0.0
  %902 = vmatprep.subr.mxu0 0.0
  %903 = vmatpush1.xpose.msra.mxu0 0.0
  %904 = vmatprep.subr.mxu0 0.0
  %905 = vmatpush1.xpose.msra.mxu0 0.0
  %906 = vmatprep.subr.mxu0 0.0
  %907 = vmatpush1.xpose.msra.mxu0 0.0
  %908 = vmatprep.mubr.f32.mxu0 0.0
  %909 = vmatmul.mubr.f32.gmra.mrb[0].mxu0 %v765
  %v910 = vpop.f32.mrb[0].mxu0
  %v911 = vadd.f32 %v458, %v910
  %v912 = vpop.f32.mrb[0].mxu0
  %913 = vmatprep.mubr.f32.mxu0 0.0
  %914 = vmatmul.mubr.f32.gmra.mrb[0].mxu0 %v768
  %v915 = vpop.f32.mrb[0].mxu0
  %v916 = vadd.f32 %v459, %v915
  %v917 = vpop.f32.mrb[0].mxu0
  %918 = vmatprep.mubr.f32.mxu0 0.0
  %919 = vmatmul.mubr.f32.gmra.mrb[0].mxu0 %v771
  %v920 = vpop.f32.mrb[0].mxu0
  %v921 = vadd.f32 %v460, %v920
  %v922 = vpop.f32.mrb[0].mxu0
  %923 = vmatprep.mubr.f32.mxu0 0.0
  %924 = vmatmul.mubr.f32.gmra.mrb[0].mxu0 %v774
  %v925 = vpop.f32.mrb[0].mxu0
  %v926 = vadd.f32 %v461, %v925
  %v927 = vpop.f32.mrb[0].mxu0
  %928 = vmatprep.mubr.f32.mxu0 0.0
  %929 = vmatmul.mubr.f32.gmra.mrb[0].mxu0 %v777
  %v930 = vpop.f32.mrb[0].mxu0
  %v931 = vadd.f32 %v462, %v930
  %v932 = vpop.f32.mrb[0].mxu0
  %933 = vmatprep.mubr.f32.mxu0 0.0
  %934 = vmatmul.mubr.f32.gmra.mrb[0].mxu0 %v780
  %v935 = vpop.f32.mrb[0].mxu0
  %v936 = vadd.f32 %v463, %v935
  %v937 = vpop.f32.mrb[0].mxu0
  %938 = vmatprep.mubr.f32.mxu0 0.0
  %939 = vmatmul.mubr.f32.gmra.mrb[0].mxu0 %v783
  %v940 = vpop.f32.mrb[0].mxu0
  %v941 = vadd.f32 %v464, %v940
  %v942 = vpop.f32.mrb[0].mxu0
  %943 = vmatprep.mubr.f32.mxu0 0.0
  %944 = vmatmul.mubr.f32.gmra.mrb[0].mxu0 %v786
  %v945 = vpop.f32.mrb[0].mxu0
  %v946 = vadd.f32 %v465, %v945
  %v947 = vpop.f32.mrb[0].mxu0
  %948 = vmatprep.mubr.f32.mxu0 0.0
  %949 = vmatmul.mubr.f32.gmra.mrb[0].mxu0 %v789
  %v950 = vpop.f32.mrb[0].mxu0
  %v951 = vadd.f32 %v466, %v950
  %v952 = vpop.f32.mrb[0].mxu0
  %953 = vmatprep.mubr.f32.mxu0 0.0
  %954 = vmatmul.mubr.f32.gmra.mrb[0].mxu0 %v792
  %v955 = vpop.f32.mrb[0].mxu0
  %v956 = vadd.f32 %v467, %v955
  %v957 = vpop.f32.mrb[0].mxu0
  %958 = vmatprep.mubr.f32.mxu0 0.0
  %959 = vmatmul.mubr.f32.gmra.mrb[0].mxu0 %v795
  %v960 = vpop.f32.mrb[0].mxu0
  %v961 = vadd.f32 %v468, %v960
  %v962 = vpop.f32.mrb[0].mxu0
  %963 = vmatprep.mubr.f32.mxu0 0.0
  %964 = vmatmul.mubr.f32.gmra.mrb[0].mxu0 %v798
  %v965 = vpop.f32.mrb[0].mxu0
  %v966 = vadd.f32 %v469, %v965
  %v967 = vpop.f32.mrb[0].mxu0
  %968 = vmatprep.mubr.f32.mxu0 0.0
  %969 = vmatmul.mubr.f32.gmra.mrb[0].mxu0 %v801
  %v970 = vpop.f32.mrb[0].mxu0
  %v971 = vadd.f32 %v470, %v970
  %v972 = vpop.f32.mrb[0].mxu0
  %973 = vmatprep.mubr.f32.mxu0 0.0
  %974 = vmatmul.mubr.f32.gmra.mrb[0].mxu0 %v804
  %v975 = vpop.f32.mrb[0].mxu0
  %v976 = vadd.f32 %v471, %v975
  %v977 = vpop.f32.mrb[0].mxu0
  %978 = vmatprep.mubr.f32.mxu0 0.0
  %979 = vmatmul.mubr.f32.gmra.mrb[0].mxu0 %v807
  %v980 = vpop.f32.mrb[0].mxu0
  %v981 = vadd.f32 %v472, %v980
  %v982 = vpop.f32.mrb[0].mxu0
  %983 = vmatprep.mubr.f32.mxu0 0.0
  %984 = vmatmul.mubr.f32.gmra.mrb[0].mxu0 %v810
  %v985 = vpop.f32.mrb[0].mxu0
  %v986 = vadd.f32 %v473, %v985
  %v987 = vpop.f32.mrb[0].mxu0
  %988 = vdwg.mxu0
  %989 = vrot.lane.b32.xlu0 %v299, 96
  %v990 = vpop.permute.xlu0 %989
  %991 = vrot.lane.b32.xlu0 %v301, 96
  %v992 = vpop.permute.xlu0 %991
  %993 = vrot.lane.b32.xlu0 %v303, 96
  %v994 = vpop.permute.xlu0 %993
  %995 = vrot.lane.b32.xlu0 %v305, 96
  %v996 = vpop.permute.xlu0 %995
  %997 = vrot.lane.b32.xlu0 %v307, 96
  %v998 = vpop.permute.xlu0 %997
  %999 = vrot.lane.b32.xlu0 %v309, 96
  %v1000 = vpop.permute.xlu0 %999
  %1001 = vrot.lane.b32.xlu0 %v311, 96
  %v1002 = vpop.permute.xlu0 %1001
  %1003 = vrot.lane.b32.xlu0 %v313, 96
  %v1004 = vpop.permute.xlu0 %1003
  %1005 = vrot.lane.b32.xlu0 %v315, 96
  %v1006 = vpop.permute.xlu0 %1005
  %1007 = vrot.lane.b32.xlu0 %v317, 96
  %v1008 = vpop.permute.xlu0 %1007
  %1009 = vrot.lane.b32.xlu0 %v319, 96
  %v1010 = vpop.permute.xlu0 %1009
  %1011 = vrot.lane.b32.xlu0 %v321, 96
  %v1012 = vpop.permute.xlu0 %1011
  %1013 = vrot.lane.b32.xlu0 %v323, 96
  %v1014 = vpop.permute.xlu0 %1013
  %1015 = vrot.lane.b32.xlu0 %v325, 96
  %v1016 = vpop.permute.xlu0 %1015
  %1017 = vrot.lane.b32.xlu0 %v327, 96
  %v1018 = vpop.permute.xlu0 %1017
  %1019 = vrot.lane.b32.xlu0 %v329, 96
  %v1020 = vpop.permute.xlu0 %1019
  %v1022 = vsel %vm506, %v426, 0
  %v1025 = vsel %vm506, %v427, 0
  %v1028 = vsel %vm506, %v428, 0
  %v1031 = vsel %vm506, %v429, 0
  %v1034 = vsel %vm506, %v430, 0
  %v1037 = vsel %vm506, %v431, 0
  %v1040 = vsel %vm506, %v432, 0
  %v1043 = vsel %vm506, %v433, 0
  %v1046 = vsel %vm506, %v434, 0
  %v1049 = vsel %vm506, %v435, 0
  %v1052 = vsel %vm506, %v436, 0
  %v1055 = vsel %vm506, %v437, 0
  %v1058 = vsel %vm506, %v438, 0
  %v1061 = vsel %vm506, %v439, 0
  %v1064 = vsel %vm506, %v440, 0
  %v1067 = vsel %vm506, %v441, 0
  %v1069 = vsel %vm506, %v990, 0
  %v1071 = vsel %vm506, %v992, 0
  %v1073 = vsel %vm506, %v994, 0
  %v1075 = vsel %vm506, %v996, 0
  %v1077 = vsel %vm506, %v998, 0
  %v1079 = vsel %vm506, %v1000, 0
  %v1081 = vsel %vm506, %v1002, 0
  %v1083 = vsel %vm506, %v1004, 0
  %v1085 = vsel %vm506, %v1006, 0
  %v1087 = vsel %vm506, %v1008, 0
  %v1089 = vsel %vm506, %v1010, 0
  %v1091 = vsel %vm506, %v1012, 0
  %v1093 = vsel %vm506, %v1014, 0
  %v1095 = vsel %vm506, %v1016, 0
  %v1097 = vsel %vm506, %v1018, 0
  %v1099 = vsel %vm506, %v1020, 0
  %1101 = vmatprep.subr.mxu0 0.0
  %1102 = vmatpush1.xpose.msra.mxu0 %v1069
  %1103 = vmatprep.subr.mxu0 0.0
  %1104 = vmatpush1.xpose.msra.mxu0 %v1071
  %1105 = vmatprep.subr.mxu0 0.0
  %1106 = vmatpush1.xpose.msra.mxu0 %v1073
  %1107 = vmatprep.subr.mxu0 0.0
  %1108 = vmatpush1.xpose.msra.mxu0 %v1075
  %1109 = vmatprep.subr.mxu0 0.0
  %1110 = vmatpush1.xpose.msra.mxu0 %v1077
  %1111 = vmatprep.subr.mxu0 0.0
  %1112 = vmatpush1.xpose.msra.mxu0 %v1079
  %1113 = vmatprep.subr.mxu0 0.0
  %1114 = vmatpush1.xpose.msra.mxu0 %v1081
  %1115 = vmatprep.subr.mxu0 0.0
  %1116 = vmatpush1.xpose.msra.mxu0 %v1083
  %1117 = vmatprep.subr.mxu0 0.0
  %1118 = vmatpush1.xpose.msra.mxu0 %v1085
  %1119 = vmatprep.subr.mxu0 0.0
  %1120 = vmatpush1.xpose.msra.mxu0 %v1087
  %1121 = vmatprep.subr.mxu0 0.0
  %1122 = vmatpush1.xpose.msra.mxu0 %v1089
  %1123 = vmatprep.subr.mxu0 0.0
  %1124 = vmatpush1.xpose.msra.mxu0 %v1091
  %1125 = vmatprep.subr.mxu0 0.0
  %1126 = vmatpush1.xpose.msra.mxu0 %v1093
  %1127 = vmatprep.subr.mxu0 0.0
  %1128 = vmatpush1.xpose.msra.mxu0 %v1095
  %1129 = vmatprep.subr.mxu0 0.0
  %1130 = vmatpush1.xpose.msra.mxu0 %v1097
  %1131 = vmatprep.subr.mxu0 0.0
  %1132 = vmatpush1.xpose.msra.mxu0 %v1099
  %1133 = vmatprep.subr.mxu0 0.0
  %1134 = vmatpush1.xpose.msra.mxu0 0.0
  %1135 = vmatprep.subr.mxu0 0.0
  %1136 = vmatpush1.xpose.msra.mxu0 0.0
  %1137 = vmatprep.subr.mxu0 0.0
  %1138 = vmatpush1.xpose.msra.mxu0 0.0
  %1139 = vmatprep.subr.mxu0 0.0
  %1140 = vmatpush1.xpose.msra.mxu0 0.0
  %1141 = vmatprep.subr.mxu0 0.0
  %1142 = vmatpush1.xpose.msra.mxu0 0.0
  %1143 = vmatprep.subr.mxu0 0.0
  %1144 = vmatpush1.xpose.msra.mxu0 0.0
  %1145 = vmatprep.subr.mxu0 0.0
  %1146 = vmatpush1.xpose.msra.mxu0 0.0
  %1147 = vmatprep.subr.mxu0 0.0
  %1148 = vmatpush1.xpose.msra.mxu0 0.0
  %1149 = vmatprep.subr.mxu0 0.0
  %1150 = vmatpush1.xpose.msra.mxu0 0.0
  %1151 = vmatprep.subr.mxu0 0.0
  %1152 = vmatpush1.xpose.msra.mxu0 0.0
  %1153 = vmatprep.subr.mxu0 0.0
  %1154 = vmatpush1.xpose.msra.mxu0 0.0
  %1155 = vmatprep.subr.mxu0 0.0
  %1156 = vmatpush1.xpose.msra.mxu0 0.0
  %1157 = vmatprep.subr.mxu0 0.0
  %1158 = vmatpush1.xpose.msra.mxu0 0.0
  %1159 = vmatprep.subr.mxu0 0.0
  %1160 = vmatpush1.xpose.msra.mxu0 0.0
  %1161 = vmatprep.subr.mxu0 0.0
  %1162 = vmatpush1.xpose.msra.mxu0 0.0
  %1163 = vmatprep.subr.mxu0 0.0
  %1164 = vmatpush1.xpose.msra.mxu0 0.0
  %1165 = vmatprep.mubr.f32.mxu0 0.0
  %1166 = vmatmul.mubr.f32.gmra.mrb[0].mxu0 %v1022
  %v1167 = vpop.f32.mrb[0].mxu0
  %v1168 = vadd.f32 %v458, %v1167
  %v1169 = vpop.f32.mrb[0].mxu0
  %1170 = vmatprep.mubr.f32.mxu0 0.0
  %1171 = vmatmul.mubr.f32.gmra.mrb[0].mxu0 %v1025
  %v1172 = vpop.f32.mrb[0].mxu0
  %v1173 = vadd.f32 %v459, %v1172
  %v1174 = vpop.f32.mrb[0].mxu0
  %1175 = vmatprep.mubr.f32.mxu0 0.0
  %1176 = vmatmul.mubr.f32.gmra.mrb[0].mxu0 %v1028
  %v1177 = vpop.f32.mrb[0].mxu0
  %v1178 = vadd.f32 %v460, %v1177
  %v1179 = vpop.f32.mrb[0].mxu0
  %1180 = vmatprep.mubr.f32.mxu0 0.0
  %1181 = vmatmul.mubr.f32.gmra.mrb[0].mxu0 %v1031
  %v1182 = vpop.f32.mrb[0].mxu0
  %v1183 = vadd.f32 %v461, %v1182
  %v1184 = vpop.f32.mrb[0].mxu0
  %1185 = vmatprep.mubr.f32.mxu0 0.0
  %1186 = vmatmul.mubr.f32.gmra.mrb[0].mxu0 %v1034
  %v1187 = vpop.f32.mrb[0].mxu0
  %v1188 = vadd.f32 %v462, %v1187
  %v1189 = vpop.f32.mrb[0].mxu0
  %1190 = vmatprep.mubr.f32.mxu0 0.0
  %1191 = vmatmul.mubr.f32.gmra.mrb[0].mxu0 %v1037
  %v1192 = vpop.f32.mrb[0].mxu0
  %v1193 = vadd.f32 %v463, %v1192
  %v1194 = vpop.f32.mrb[0].mxu0
  %1195 = vmatprep.mubr.f32.mxu0 0.0
  %1196 = vmatmul.mubr.f32.gmra.mrb[0].mxu0 %v1040
  %v1197 = vpop.f32.mrb[0].mxu0
  %v1198 = vadd.f32 %v464, %v1197
  %v1199 = vpop.f32.mrb[0].mxu0
  %1200 = vmatprep.mubr.f32.mxu0 0.0
  %1201 = vmatmul.mubr.f32.gmra.mrb[0].mxu0 %v1043
  %v1202 = vpop.f32.mrb[0].mxu0
  %v1203 = vadd.f32 %v465, %v1202
  %v1204 = vpop.f32.mrb[0].mxu0
  %1205 = vmatprep.mubr.f32.mxu0 0.0
  %1206 = vmatmul.mubr.f32.gmra.mrb[0].mxu0 %v1046
  %v1207 = vpop.f32.mrb[0].mxu0
  %v1208 = vadd.f32 %v466, %v1207
  %v1209 = vpop.f32.mrb[0].mxu0
  %1210 = vmatprep.mubr.f32.mxu0 0.0
  %1211 = vmatmul.mubr.f32.gmra.mrb[0].mxu0 %v1049
  %v1212 = vpop.f32.mrb[0].mxu0
  %v1213 = vadd.f32 %v467, %v1212
  %v1214 = vpop.f32.mrb[0].mxu0
  %1215 = vmatprep.mubr.f32.mxu0 0.0
  %1216 = vmatmul.mubr.f32.gmra.mrb[0].mxu0 %v1052
  %v1217 = vpop.f32.mrb[0].mxu0
  %v1218 = vadd.f32 %v468, %v1217
  %v1219 = vpop.f32.mrb[0].mxu0
  %1220 = vmatprep.mubr.f32.mxu0 0.0
  %1221 = vmatmul.mubr.f32.gmra.mrb[0].mxu0 %v1055
  %v1222 = vpop.f32.mrb[0].mxu0
  %v1223 = vadd.f32 %v469, %v1222
  %v1224 = vpop.f32.mrb[0].mxu0
  %1225 = vmatprep.mubr.f32.mxu0 0.0
  %1226 = vmatmul.mubr.f32.gmra.mrb[0].mxu0 %v1058
  %v1227 = vpop.f32.mrb[0].mxu0
  %v1228 = vadd.f32 %v470, %v1227
  %v1229 = vpop.f32.mrb[0].mxu0
  %1230 = vmatprep.mubr.f32.mxu0 0.0
  %1231 = vmatmul.mubr.f32.gmra.mrb[0].mxu0 %v1061
  %v1232 = vpop.f32.mrb[0].mxu0
  %v1233 = vadd.f32 %v471, %v1232
  %v1234 = vpop.f32.mrb[0].mxu0
  %1235 = vmatprep.mubr.f32.mxu0 0.0
  %1236 = vmatmul.mubr.f32.gmra.mrb[0].mxu0 %v1064
  %v1237 = vpop.f32.mrb[0].mxu0
  %v1238 = vadd.f32 %v472, %v1237
  %v1239 = vpop.f32.mrb[0].mxu0
  %1240 = vmatprep.mubr.f32.mxu0 0.0
  %1241 = vmatmul.mubr.f32.gmra.mrb[0].mxu0 %v1067
  %v1242 = vpop.f32.mrb[0].mxu0
  %v1243 = vadd.f32 %v473, %v1242
  %v1244 = vpop.f32.mrb[0].mxu0
  %1245 = vdwg.mxu0
  %1246 = vrot.lane.b32.xlu0 %v347, 96
  %v1247 = vpop.permute.xlu0 %1246
  %1248 = vrot.lane.b32.xlu0 %v349, 96
  %v1249 = vpop.permute.xlu0 %1248
  %1250 = vrot.lane.b32.xlu0 %v351, 96
  %v1251 = vpop.permute.xlu0 %1250
  %1252 = vrot.lane.b32.xlu0 %v353, 96
  %v1253 = vpop.permute.xlu0 %1252
  %1254 = vrot.lane.b32.xlu0 %v355, 96
  %v1255 = vpop.permute.xlu0 %1254
  %1256 = vrot.lane.b32.xlu0 %v357, 96
  %v1257 = vpop.permute.xlu0 %1256
  %1258 = vrot.lane.b32.xlu0 %v359, 96
  %v1259 = vpop.permute.xlu0 %1258
  %1260 = vrot.lane.b32.xlu0 %v361, 96
  %v1261 = vpop.permute.xlu0 %1260
  %1262 = vrot.lane.b32.xlu0 %v363, 96
  %v1263 = vpop.permute.xlu0 %1262
  %1264 = vrot.lane.b32.xlu0 %v365, 96
  %v1265 = vpop.permute.xlu0 %1264
  %1266 = vrot.lane.b32.xlu0 %v367, 96
  %v1267 = vpop.permute.xlu0 %1266
  %1268 = vrot.lane.b32.xlu0 %v369, 96
  %v1269 = vpop.permute.xlu0 %1268
  %1270 = vrot.lane.b32.xlu0 %v371, 96
  %v1271 = vpop.permute.xlu0 %1270
  %1272 = vrot.lane.b32.xlu0 %v373, 96
  %v1273 = vpop.permute.xlu0 %1272
  %1274 = vrot.lane.b32.xlu0 %v375, 96
  %v1275 = vpop.permute.xlu0 %1274
  %1276 = vrot.lane.b32.xlu0 %v377, 96
  %v1277 = vpop.permute.xlu0 %1276
  %v1279 = vsel %vm506, %v442, 0
  %v1282 = vsel %vm506, %v443, 0
  %v1285 = vsel %vm506, %v444, 0
  %v1288 = vsel %vm506, %v445, 0
  %v1291 = vsel %vm506, %v446, 0
  %v1294 = vsel %vm506, %v447, 0
  %v1297 = vsel %vm506, %v448, 0
  %v1300 = vsel %vm506, %v449, 0
  %v1303 = vsel %vm506, %v450, 0
  %v1306 = vsel %vm506, %v451, 0
  %v1309 = vsel %vm506, %v452, 0
  %v1312 = vsel %vm506, %v453, 0
  %v1315 = vsel %vm506, %v454, 0
  %v1318 = vsel %vm506, %v455, 0
  %v1321 = vsel %vm506, %v456, 0
  %v1324 = vsel %vm506, %v457, 0
  %v1326 = vsel %vm506, %v1247, 0
  %v1328 = vsel %vm506, %v1249, 0
  %v1330 = vsel %vm506, %v1251, 0
  %v1332 = vsel %vm506, %v1253, 0
  %v1334 = vsel %vm506, %v1255, 0
  %v1336 = vsel %vm506, %v1257, 0
  %v1338 = vsel %vm506, %v1259, 0
  %v1340 = vsel %vm506, %v1261, 0
  %v1342 = vsel %vm506, %v1263, 0
  %v1344 = vsel %vm506, %v1265, 0
  %v1346 = vsel %vm506, %v1267, 0
  %v1348 = vsel %vm506, %v1269, 0
  %v1350 = vsel %vm506, %v1271, 0
  %v1352 = vsel %vm506, %v1273, 0
  %v1354 = vsel %vm506, %v1275, 0
  %v1356 = vsel %vm506, %v1277, 0
  %1358 = vmatprep.subr.mxu0 0.0
  %1359 = vmatpush1.xpose.msra.mxu0 %v1326
  %1360 = vmatprep.subr.mxu0 0.0
  %1361 = vmatpush1.xpose.msra.mxu0 %v1328
  %1362 = vmatprep.subr.mxu0 0.0
  %1363 = vmatpush1.xpose.msra.mxu0 %v1330
  %1364 = vmatprep.subr.mxu0 0.0
  %1365 = vmatpush1.xpose.msra.mxu0 %v1332
  %1366 = vmatprep.subr.mxu0 0.0
  %1367 = vmatpush1.xpose.msra.mxu0 %v1334
  %1368 = vmatprep.subr.mxu0 0.0
  %1369 = vmatpush1.xpose.msra.mxu0 %v1336
  %1370 = vmatprep.subr.mxu0 0.0
  %1371 = vmatpush1.xpose.msra.mxu0 %v1338
  %1372 = vmatprep.subr.mxu0 0.0
  %1373 = vmatpush1.xpose.msra.mxu0 %v1340
  %1374 = vmatprep.subr.mxu0 0.0
  %1375 = vmatpush1.xpose.msra.mxu0 %v1342
  %1376 = vmatprep.subr.mxu0 0.0
  %1377 = vmatpush1.xpose.msra.mxu0 %v1344
  %1378 = vmatprep.subr.mxu0 0.0
  %1379 = vmatpush1.xpose.msra.mxu0 %v1346
  %1380 = vmatprep.subr.mxu0 0.0
  %1381 = vmatpush1.xpose.msra.mxu0 %v1348
  %1382 = vmatprep.subr.mxu0 0.0
  %1383 = vmatpush1.xpose.msra.mxu0 %v1350
  %1384 = vmatprep.subr.mxu0 0.0
  %1385 = vmatpush1.xpose.msra.mxu0 %v1352
  %1386 = vmatprep.subr.mxu0 0.0
  %1387 = vmatpush1.xpose.msra.mxu0 %v1354
  %1388 = vmatprep.subr.mxu0 0.0
  %1389 = vmatpush1.xpose.msra.mxu0 %v1356
  %1390 = vmatprep.subr.mxu0 0.0
  %1391 = vmatpush1.xpose.msra.mxu0 0.0
  %1392 = vmatprep.subr.mxu0 0.0
  %1393 = vmatpush1.xpose.msra.mxu0 0.0
  %1394 = vmatprep.subr.mxu0 0.0
  %1395 = vmatpush1.xpose.msra.mxu0 0.0
  %1396 = vmatprep.subr.mxu0 0.0
  %1397 = vmatpush1.xpose.msra.mxu0 0.0
  %1398 = vmatprep.subr.mxu0 0.0
  %1399 = vmatpush1.xpose.msra.mxu0 0.0
  %1400 = vmatprep.subr.mxu0 0.0
  %1401 = vmatpush1.xpose.msra.mxu0 0.0
  %1402 = vmatprep.subr.mxu0 0.0
  %1403 = vmatpush1.xpose.msra.mxu0 0.0
  %1404 = vmatprep.subr.mxu0 0.0
  %1405 = vmatpush1.xpose.msra.mxu0 0.0
  %1406 = vmatprep.subr.mxu0 0.0
  %1407 = vmatpush1.xpose.msra.mxu0 0.0
  %1408 = vmatprep.subr.mxu0 0.0
  %1409 = vmatpush1.xpose.msra.mxu0 0.0
  %1410 = vmatprep.subr.mxu0 0.0
  %1411 = vmatpush1.xpose.msra.mxu0 0.0
  %1412 = vmatprep.subr.mxu0 0.0
  %1413 = vmatpush1.xpose.msra.mxu0 0.0
  %1414 = vmatprep.subr.mxu0 0.0
  %1415 = vmatpush1.xpose.msra.mxu0 0.0
  %1416 = vmatprep.subr.mxu0 0.0
  %1417 = vmatpush1.xpose.msra.mxu0 0.0
  %1418 = vmatprep.subr.mxu0 0.0
  %1419 = vmatpush1.xpose.msra.mxu0 0.0
  %1420 = vmatprep.subr.mxu0 0.0
  %1421 = vmatpush1.xpose.msra.mxu0 0.0
  %1422 = vmatprep.mubr.f32.mxu0 0.0
  %1423 = vmatmul.mubr.f32.gmra.mrb[0].mxu0 %v1279
  %v1424 = vpop.f32.mrb[0].mxu0
  %v1425 = vadd.f32 %v458, %v1424
  %v1426 = vpop.f32.mrb[0].mxu0
  %1427 = vmatprep.mubr.f32.mxu0 0.0
  %1428 = vmatmul.mubr.f32.gmra.mrb[0].mxu0 %v1282
  %v1429 = vpop.f32.mrb[0].mxu0
  %v1430 = vadd.f32 %v459, %v1429
  %v1431 = vpop.f32.mrb[0].mxu0
  %1432 = vmatprep.mubr.f32.mxu0 0.0
  %1433 = vmatmul.mubr.f32.gmra.mrb[0].mxu0 %v1285
  %v1434 = vpop.f32.mrb[0].mxu0
  %v1435 = vadd.f32 %v460, %v1434
  %v1436 = vpop.f32.mrb[0].mxu0
  %1437 = vmatprep.mubr.f32.mxu0 0.0
  %1438 = vmatmul.mubr.f32.gmra.mrb[0].mxu0 %v1288
  %v1439 = vpop.f32.mrb[0].mxu0
  %v1440 = vadd.f32 %v461, %v1439
  %v1441 = vpop.f32.mrb[0].mxu0
  %1442 = vmatprep.mubr.f32.mxu0 0.0
  %1443 = vmatmul.mubr.f32.gmra.mrb[0].mxu0 %v1291
  %v1444 = vpop.f32.mrb[0].mxu0
  %v1445 = vadd.f32 %v462, %v1444
  %v1446 = vpop.f32.mrb[0].mxu0
  %1447 = vmatprep.mubr.f32.mxu0 0.0
  %1448 = vmatmul.mubr.f32.gmra.mrb[0].mxu0 %v1294
  %v1449 = vpop.f32.mrb[0].mxu0
  %v1450 = vadd.f32 %v463, %v1449
  %v1451 = vpop.f32.mrb[0].mxu0
  %1452 = vmatprep.mubr.f32.mxu0 0.0
  %1453 = vmatmul.mubr.f32.gmra.mrb[0].mxu0 %v1297
  %v1454 = vpop.f32.mrb[0].mxu0
  %v1455 = vadd.f32 %v464, %v1454
  %v1456 = vpop.f32.mrb[0].mxu0
  %1457 = vmatprep.mubr.f32.mxu0 0.0
  %1458 = vmatmul.mubr.f32.gmra.mrb[0].mxu0 %v1300
  %v1459 = vpop.f32.mrb[0].mxu0
  %v1460 = vadd.f32 %v465, %v1459
  %v1461 = vpop.f32.mrb[0].mxu0
  %1462 = vmatprep.mubr.f32.mxu0 0.0
  %1463 = vmatmul.mubr.f32.gmra.mrb[0].mxu0 %v1303
  %v1464 = vpop.f32.mrb[0].mxu0
  %v1465 = vadd.f32 %v466, %v1464
  %v1466 = vpop.f32.mrb[0].mxu0
  %1467 = vmatprep.mubr.f32.mxu0 0.0
  %1468 = vmatmul.mubr.f32.gmra.mrb[0].mxu0 %v1306
  %v1469 = vpop.f32.mrb[0].mxu0
  %v1470 = vadd.f32 %v467, %v1469
  %v1471 = vpop.f32.mrb[0].mxu0
  %1472 = vmatprep.mubr.f32.mxu0 0.0
  %1473 = vmatmul.mubr.f32.gmra.mrb[0].mxu0 %v1309
  %v1474 = vpop.f32.mrb[0].mxu0
  %v1475 = vadd.f32 %v468, %v1474
  %v1476 = vpop.f32.mrb[0].mxu0
  %1477 = vmatprep.mubr.f32.mxu0 0.0
  %1478 = vmatmul.mubr.f32.gmra.mrb[0].mxu0 %v1312
  %v1479 = vpop.f32.mrb[0].mxu0
  %v1480 = vadd.f32 %v469, %v1479
  %v1481 = vpop.f32.mrb[0].mxu0
  %1482 = vmatprep.mubr.f32.mxu0 0.0
  %1483 = vmatmul.mubr.f32.gmra.mrb[0].mxu0 %v1315
  %v1484 = vpop.f32.mrb[0].mxu0
  %v1485 = vadd.f32 %v470, %v1484
  %v1486 = vpop.f32.mrb[0].mxu0
  %1487 = vmatprep.mubr.f32.mxu0 0.0
  %1488 = vmatmul.mubr.f32.gmra.mrb[0].mxu0 %v1318
  %v1489 = vpop.f32.mrb[0].mxu0
  %v1490 = vadd.f32 %v471, %v1489
  %v1491 = vpop.f32.mrb[0].mxu0
  %1492 = vmatprep.mubr.f32.mxu0 0.0
  %1493 = vmatmul.mubr.f32.gmra.mrb[0].mxu0 %v1321
  %v1494 = vpop.f32.mrb[0].mxu0
  %v1495 = vadd.f32 %v472, %v1494
  %v1496 = vpop.f32.mrb[0].mxu0
  %1497 = vmatprep.mubr.f32.mxu0 0.0
  %1498 = vmatmul.mubr.f32.gmra.mrb[0].mxu0 %v1324
  %v1499 = vpop.f32.mrb[0].mxu0
  %v1500 = vadd.f32 %v473, %v1499
  %v1501 = vpop.f32.mrb[0].mxu0
  %1502 = vdwg.mxu0
  %1503 = vmax.xlane.f32.xlu0 %v654
  %v1504 = vpop.xlane.xlu0 %1503
  %1505 = vmax.xlane.f32.xlu0 %v659
  %v1506 = vpop.xlane.xlu0 %1505
  %1507 = vmax.xlane.f32.xlu0 %v664
  %v1508 = vpop.xlane.xlu0 %1507
  %1509 = vmax.xlane.f32.xlu0 %v669
  %v1510 = vpop.xlane.xlu0 %1509
  %1511 = vmax.xlane.f32.xlu0 %v674
  %v1512 = vpop.xlane.xlu0 %1511
  %1513 = vmax.xlane.f32.xlu0 %v679
  %v1514 = vpop.xlane.xlu0 %1513
  %1515 = vmax.xlane.f32.xlu0 %v684
  %v1516 = vpop.xlane.xlu0 %1515
  %1517 = vmax.xlane.f32.xlu0 %v689
  %v1518 = vpop.xlane.xlu0 %1517
  %1519 = vmax.xlane.f32.xlu0 %v694
  %v1520 = vpop.xlane.xlu0 %1519
  %1521 = vmax.xlane.f32.xlu0 %v699
  %v1522 = vpop.xlane.xlu0 %1521
  %1523 = vmax.xlane.f32.xlu0 %v704
  %v1524 = vpop.xlane.xlu0 %1523
  %1525 = vmax.xlane.f32.xlu0 %v709
  %v1526 = vpop.xlane.xlu0 %1525
  %1527 = vmax.xlane.f32.xlu0 %v714
  %v1528 = vpop.xlane.xlu0 %1527
  %1529 = vmax.xlane.f32.xlu0 %v719
  %v1530 = vpop.xlane.xlu0 %1529
  %1531 = vmax.xlane.f32.xlu0 %v724
  %v1532 = vpop.xlane.xlu0 %1531
  %1533 = vmax.xlane.f32.xlu0 %v729
  %v1534 = vpop.xlane.xlu0 %1533
  %1535 = vmax.xlane.f32.xlu0 %v911
  %v1536 = vpop.xlane.xlu0 %1535
  %1537 = vmax.xlane.f32.xlu0 %v916
  %v1538 = vpop.xlane.xlu0 %1537
  %1539 = vmax.xlane.f32.xlu0 %v921
  %v1540 = vpop.xlane.xlu0 %1539
  %1541 = vmax.xlane.f32.xlu0 %v926
  %v1542 = vpop.xlane.xlu0 %1541
  %1543 = vmax.xlane.f32.xlu0 %v931
  %v1544 = vpop.xlane.xlu0 %1543
  %1545 = vmax.xlane.f32.xlu0 %v936
  %v1546 = vpop.xlane.xlu0 %1545
  %1547 = vmax.xlane.f32.xlu0 %v941
  %v1548 = vpop.xlane.xlu0 %1547
  %1549 = vmax.xlane.f32.xlu0 %v946
  %v1550 = vpop.xlane.xlu0 %1549
  %1551 = vmax.xlane.f32.xlu0 %v951
  %v1552 = vpop.xlane.xlu0 %1551
  %1553 = vmax.xlane.f32.xlu0 %v956
  %v1554 = vpop.xlane.xlu0 %1553
  %1555 = vmax.xlane.f32.xlu0 %v961
  %v1556 = vpop.xlane.xlu0 %1555
  %1557 = vmax.xlane.f32.xlu0 %v966
  %v1558 = vpop.xlane.xlu0 %1557
  %1559 = vmax.xlane.f32.xlu0 %v971
  %v1560 = vpop.xlane.xlu0 %1559
  %1561 = vmax.xlane.f32.xlu0 %v976
  %v1562 = vpop.xlane.xlu0 %1561
  %1563 = vmax.xlane.f32.xlu0 %v981
  %v1564 = vpop.xlane.xlu0 %1563
  %1565 = vmax.xlane.f32.xlu0 %v986
  %v1566 = vpop.xlane.xlu0 %1565
  %1567 = vmax.xlane.f32.xlu0 %v1168
  %v1568 = vpop.xlane.xlu0 %1567
  %1569 = vmax.xlane.f32.xlu0 %v1173
  %v1570 = vpop.xlane.xlu0 %1569
  %1571 = vmax.xlane.f32.xlu0 %v1178
  %v1572 = vpop.xlane.xlu0 %1571
  %1573 = vmax.xlane.f32.xlu0 %v1183
  %v1574 = vpop.xlane.xlu0 %1573
  %1575 = vmax.xlane.f32.xlu0 %v1188
  %v1576 = vpop.xlane.xlu0 %1575
  %1577 = vmax.xlane.f32.xlu0 %v1193
  %v1578 = vpop.xlane.xlu0 %1577
  %1579 = vmax.xlane.f32.xlu0 %v1198
  %v1580 = vpop.xlane.xlu0 %1579
  %1581 = vmax.xlane.f32.xlu0 %v1203
  %v1582 = vpop.xlane.xlu0 %1581
  %1583 = vmax.xlane.f32.xlu0 %v1208
  %v1584 = vpop.xlane.xlu0 %1583
  %1585 = vmax.xlane.f32.xlu0 %v1213
  %v1586 = vpop.xlane.xlu0 %1585
  %1587 = vmax.xlane.f32.xlu0 %v1218
  %v1588 = vpop.xlane.xlu0 %1587
  %1589 = vmax.xlane.f32.xlu0 %v1223
  %v1590 = vpop.xlane.xlu0 %1589
  %1591 = vmax.xlane.f32.xlu0 %v1228
  %v1592 = vpop.xlane.xlu0 %1591
  %1593 = vmax.xlane.f32.xlu0 %v1233
  %v1594 = vpop.xlane.xlu0 %1593
  %1595 = vmax.xlane.f32.xlu0 %v1238
  %v1596 = vpop.xlane.xlu0 %1595
  %1597 = vmax.xlane.f32.xlu0 %v1243
  %v1598 = vpop.xlane.xlu0 %1597
  %1599 = vmax.xlane.f32.xlu0 %v1425
  %v1600 = vpop.xlane.xlu0 %1599
  %1601 = vmax.xlane.f32.xlu0 %v1430
  %v1602 = vpop.xlane.xlu0 %1601
  %1603 = vmax.xlane.f32.xlu0 %v1435
  %v1604 = vpop.xlane.xlu0 %1603
  %1605 = vmax.xlane.f32.xlu0 %v1440
  %v1606 = vpop.xlane.xlu0 %1605
  %1607 = vmax.xlane.f32.xlu0 %v1445
  %v1608 = vpop.xlane.xlu0 %1607
  %1609 = vmax.xlane.f32.xlu0 %v1450
  %v1610 = vpop.xlane.xlu0 %1609
  %1611 = vmax.xlane.f32.xlu0 %v1455
  %v1612 = vpop.xlane.xlu0 %1611
  %1613 = vmax.xlane.f32.xlu0 %v1460
  %v1614 = vpop.xlane.xlu0 %1613
  %1615 = vmax.xlane.f32.xlu0 %v1465
  %v1616 = vpop.xlane.xlu0 %1615
  %1617 = vmax.xlane.f32.xlu0 %v1470
  %v1618 = vpop.xlane.xlu0 %1617
  %1619 = vmax.xlane.f32.xlu0 %v1475
  %v1620 = vpop.xlane.xlu0 %1619
  %1621 = vmax.xlane.f32.xlu0 %v1480
  %v1622 = vpop.xlane.xlu0 %1621
  %1623 = vmax.xlane.f32.xlu0 %v1485
  %v1624 = vpop.xlane.xlu0 %1623
  %1625 = vmax.xlane.f32.xlu0 %v1490
  %v1626 = vpop.xlane.xlu0 %1625
  %1627 = vmax.xlane.f32.xlu0 %v1495
  %v1628 = vpop.xlane.xlu0 %1627
  %1629 = vmax.xlane.f32.xlu0 %v1500
  %v1630 = vpop.xlane.xlu0 %1629
  %v1631 = vsub.f32 %v654, %v1504
  %v1632 = vsub.f32 %v659, %v1506
  %v1633 = vsub.f32 %v664, %v1508
  %v1634 = vsub.f32 %v669, %v1510
  %v1635 = vsub.f32 %v674, %v1512
  %v1636 = vsub.f32 %v679, %v1514
  %v1637 = vsub.f32 %v684, %v1516
  %v1638 = vsub.f32 %v689, %v1518
  %v1639 = vsub.f32 %v694, %v1520
  %v1640 = vsub.f32 %v699, %v1522
  %v1641 = vsub.f32 %v704, %v1524
  %v1642 = vsub.f32 %v709, %v1526
  %v1643 = vsub.f32 %v714, %v1528
  %v1644 = vsub.f32 %v719, %v1530
  %v1645 = vsub.f32 %v724, %v1532
  %v1646 = vsub.f32 %v729, %v1534
  %v1647 = vsub.f32 %v911, %v1536
  %v1648 = vsub.f32 %v916, %v1538
  %v1649 = vsub.f32 %v921, %v1540
  %v1650 = vsub.f32 %v926, %v1542
  %v1651 = vsub.f32 %v931, %v1544
  %v1652 = vsub.f32 %v936, %v1546
  %v1653 = vsub.f32 %v941, %v1548
  %v1654 = vsub.f32 %v946, %v1550
  %v1655 = vsub.f32 %v951, %v1552
  %v1656 = vsub.f32 %v956, %v1554
  %v1657 = vsub.f32 %v961, %v1556
  %v1658 = vsub.f32 %v966, %v1558
  %v1659 = vsub.f32 %v971, %v1560
  %v1660 = vsub.f32 %v976, %v1562
  %v1661 = vsub.f32 %v981, %v1564
  %v1662 = vsub.f32 %v986, %v1566
  %v1663 = vsub.f32 %v1168, %v1568
  %v1664 = vsub.f32 %v1173, %v1570
  %v1665 = vsub.f32 %v1178, %v1572
  %v1666 = vsub.f32 %v1183, %v1574
  %v1667 = vsub.f32 %v1188, %v1576
  %v1668 = vsub.f32 %v1193, %v1578
  %v1669 = vsub.f32 %v1198, %v1580
  %v1670 = vsub.f32 %v1203, %v1582
  %v1671 = vsub.f32 %v1208, %v1584
  %v1672 = vsub.f32 %v1213, %v1586
  %v1673 = vsub.f32 %v1218, %v1588
  %v1674 = vsub.f32 %v1223, %v1590
  %v1675 = vsub.f32 %v1228, %v1592
  %v1676 = vsub.f32 %v1233, %v1594
  %v1677 = vsub.f32 %v1238, %v1596
  %v1678 = vsub.f32 %v1243, %v1598
  %v1679 = vsub.f32 %v1425, %v1600
  %v1680 = vsub.f32 %v1430, %v1602
  %v1681 = vsub.f32 %v1435, %v1604
  %v1682 = vsub.f32 %v1440, %v1606
  %v1683 = vsub.f32 %v1445, %v1608
  %v1684 = vsub.f32 %v1450, %v1610
  %v1685 = vsub.f32 %v1455, %v1612
  %v1686 = vsub.f32 %v1460, %v1614
  %v1687 = vsub.f32 %v1465, %v1616
  %v1688 = vsub.f32 %v1470, %v1618
  %v1689 = vsub.f32 %v1475, %v1620
  %v1690 = vsub.f32 %v1480, %v1622
  %v1691 = vsub.f32 %v1485, %v1624
  %v1692 = vsub.f32 %v1490, %v1626
  %v1693 = vsub.f32 %v1495, %v1628
  %v1694 = vsub.f32 %v1500, %v1630
  %v1695 = vmul.f32 %v1631, 1.442695
  %v1696 = vpow.pop %v1695
  %v1697 = vmul.f32 %v1632, 1.442695
  %v1698 = vpow.pop %v1697
  %v1699 = vmul.f32 %v1633, 1.442695
  %v1700 = vpow.pop %v1699
  %v1701 = vmul.f32 %v1634, 1.442695
  %v1702 = vpow.pop %v1701
  %v1703 = vmul.f32 %v1635, 1.442695
  %v1704 = vpow.pop %v1703
  %v1705 = vmul.f32 %v1636, 1.442695
  %v1706 = vpow.pop %v1705
  %v1707 = vmul.f32 %v1637, 1.442695
  %v1708 = vpow.pop %v1707
  %v1709 = vmul.f32 %v1638, 1.442695
  %v1710 = vpow.pop %v1709
  %v1711 = vmul.f32 %v1639, 1.442695
  %v1712 = vpow.pop %v1711
  %v1713 = vmul.f32 %v1640, 1.442695
  %v1714 = vpow.pop %v1713
  %v1715 = vmul.f32 %v1641, 1.442695
  %v1716 = vpow.pop %v1715
  %v1717 = vmul.f32 %v1642, 1.442695
  %v1718 = vpow.pop %v1717
  %v1719 = vmul.f32 %v1643, 1.442695
  %v1720 = vpow.pop %v1719
  %v1721 = vmul.f32 %v1644, 1.442695
  %v1722 = vpow.pop %v1721
  %v1723 = vmul.f32 %v1645, 1.442695
  %v1724 = vpow.pop %v1723
  %v1725 = vmul.f32 %v1646, 1.442695
  %v1726 = vpow.pop %v1725
  %v1727 = vmul.f32 %v1647, 1.442695
  %v1728 = vpow.pop %v1727
  %v1729 = vmul.f32 %v1648, 1.442695
  %v1730 = vpow.pop %v1729
  %v1731 = vmul.f32 %v1649, 1.442695
  %v1732 = vpow.pop %v1731
  %v1733 = vmul.f32 %v1650, 1.442695
  %v1734 = vpow.pop %v1733
  %v1735 = vmul.f32 %v1651, 1.442695
  %v1736 = vpow.pop %v1735
  %v1737 = vmul.f32 %v1652, 1.442695
  %v1738 = vpow.pop %v1737
  %v1739 = vmul.f32 %v1653, 1.442695
  %v1740 = vpow.pop %v1739
  %v1741 = vmul.f32 %v1654, 1.442695
  %v1742 = vpow.pop %v1741
  %v1743 = vmul.f32 %v1655, 1.442695
  %v1744 = vpow.pop %v1743
  %v1745 = vmul.f32 %v1656, 1.442695
  %v1746 = vpow.pop %v1745
  %v1747 = vmul.f32 %v1657, 1.442695
  %v1748 = vpow.pop %v1747
  %v1749 = vmul.f32 %v1658, 1.442695
  %v1750 = vpow.pop %v1749
  %v1751 = vmul.f32 %v1659, 1.442695
  %v1752 = vpow.pop %v1751
  %v1753 = vmul.f32 %v1660, 1.442695
  %v1754 = vpow.pop %v1753
  %v1755 = vmul.f32 %v1661, 1.442695
  %v1756 = vpow.pop %v1755
  %v1757 = vmul.f32 %v1662, 1.442695
  %v1758 = vpow.pop %v1757
  %v1759 = vmul.f32 %v1663, 1.442695
  %v1760 = vpow.pop %v1759
  %v1761 = vmul.f32 %v1664, 1.442695
  %v1762 = vpow.pop %v1761
  %v1763 = vmul.f32 %v1665, 1.442695
  %v1764 = vpow.pop %v1763
  %v1765 = vmul.f32 %v1666, 1.442695
  %v1766 = vpow.pop %v1765
  %v1767 = vmul.f32 %v1667, 1.442695
  %v1768 = vpow.pop %v1767
  %v1769 = vmul.f32 %v1668, 1.442695
  %v1770 = vpow.pop %v1769
  %v1771 = vmul.f32 %v1669, 1.442695
  %v1772 = vpow.pop %v1771
  %v1773 = vmul.f32 %v1670, 1.442695
  %v1774 = vpow.pop %v1773
  %v1775 = vmul.f32 %v1671, 1.442695
  %v1776 = vpow.pop %v1775
  %v1777 = vmul.f32 %v1672, 1.442695
  %v1778 = vpow.pop %v1777
  %v1779 = vmul.f32 %v1673, 1.442695
  %v1780 = vpow.pop %v1779
  %v1781 = vmul.f32 %v1674, 1.442695
  %v1782 = vpow.pop %v1781
  %v1783 = vmul.f32 %v1675, 1.442695
  %v1784 = vpow.pop %v1783
  %v1785 = vmul.f32 %v1676, 1.442695
  %v1786 = vpow.pop %v1785
  %v1787 = vmul.f32 %v1677, 1.442695
  %v1788 = vpow.pop %v1787
  %v1789 = vmul.f32 %v1678, 1.442695
  %v1790 = vpow.pop %v1789
  %v1791 = vmul.f32 %v1679, 1.442695
  %v1792 = vpow.pop %v1791
  %v1793 = vmul.f32 %v1680, 1.442695
  %v1794 = vpow.pop %v1793
  %v1795 = vmul.f32 %v1681, 1.442695
  %v1796 = vpow.pop %v1795
  %v1797 = vmul.f32 %v1682, 1.442695
  %v1798 = vpow.pop %v1797
  %v1799 = vmul.f32 %v1683, 1.442695
  %v1800 = vpow.pop %v1799
  %v1801 = vmul.f32 %v1684, 1.442695
  %v1802 = vpow.pop %v1801
  %v1803 = vmul.f32 %v1685, 1.442695
  %v1804 = vpow.pop %v1803
  %v1805 = vmul.f32 %v1686, 1.442695
  %v1806 = vpow.pop %v1805
  %v1807 = vmul.f32 %v1687, 1.442695
  %v1808 = vpow.pop %v1807
  %v1809 = vmul.f32 %v1688, 1.442695
  %v1810 = vpow.pop %v1809
  %v1811 = vmul.f32 %v1689, 1.442695
  %v1812 = vpow.pop %v1811
  %v1813 = vmul.f32 %v1690, 1.442695
  %v1814 = vpow.pop %v1813
  %v1815 = vmul.f32 %v1691, 1.442695
  %v1816 = vpow.pop %v1815
  %v1817 = vmul.f32 %v1692, 1.442695
  %v1818 = vpow.pop %v1817
  %v1819 = vmul.f32 %v1693, 1.442695
  %v1820 = vpow.pop %v1819
  %v1821 = vmul.f32 %v1694, 1.442695
  %v1822 = vpow.pop %v1821
  %1823 = vadd.xlane.f32.xlu0 %v1696
  %v1824 = vpop.xlane.xlu0 %1823
  %1825 = vadd.xlane.f32.xlu0 %v1698
  %v1826 = vpop.xlane.xlu0 %1825
  %1827 = vadd.xlane.f32.xlu0 %v1700
  %v1828 = vpop.xlane.xlu0 %1827
  %1829 = vadd.xlane.f32.xlu0 %v1702
  %v1830 = vpop.xlane.xlu0 %1829
  %1831 = vadd.xlane.f32.xlu0 %v1704
  %v1832 = vpop.xlane.xlu0 %1831
  %1833 = vadd.xlane.f32.xlu0 %v1706
  %v1834 = vpop.xlane.xlu0 %1833
  %1835 = vadd.xlane.f32.xlu0 %v1708
  %v1836 = vpop.xlane.xlu0 %1835
  %1837 = vadd.xlane.f32.xlu0 %v1710
  %v1838 = vpop.xlane.xlu0 %1837
  %1839 = vadd.xlane.f32.xlu0 %v1712
  %v1840 = vpop.xlane.xlu0 %1839
  %1841 = vadd.xlane.f32.xlu0 %v1714
  %v1842 = vpop.xlane.xlu0 %1841
  %1843 = vadd.xlane.f32.xlu0 %v1716
  %v1844 = vpop.xlane.xlu0 %1843
  %1845 = vadd.xlane.f32.xlu0 %v1718
  %v1846 = vpop.xlane.xlu0 %1845
  %1847 = vadd.xlane.f32.xlu0 %v1720
  %v1848 = vpop.xlane.xlu0 %1847
  %1849 = vadd.xlane.f32.xlu0 %v1722
  %v1850 = vpop.xlane.xlu0 %1849
  %1851 = vadd.xlane.f32.xlu0 %v1724
  %v1852 = vpop.xlane.xlu0 %1851
  %1853 = vadd.xlane.f32.xlu0 %v1726
  %v1854 = vpop.xlane.xlu0 %1853
  %1855 = vadd.xlane.f32.xlu0 %v1728
  %v1856 = vpop.xlane.xlu0 %1855
  %1857 = vadd.xlane.f32.xlu0 %v1730
  %v1858 = vpop.xlane.xlu0 %1857
  %1859 = vadd.xlane.f32.xlu0 %v1732
  %v1860 = vpop.xlane.xlu0 %1859
  %1861 = vadd.xlane.f32.xlu0 %v1734
  %v1862 = vpop.xlane.xlu0 %1861
  %1863 = vadd.xlane.f32.xlu0 %v1736
  %v1864 = vpop.xlane.xlu0 %1863
  %1865 = vadd.xlane.f32.xlu0 %v1738
  %v1866 = vpop.xlane.xlu0 %1865
  %1867 = vadd.xlane.f32.xlu0 %v1740
  %v1868 = vpop.xlane.xlu0 %1867
  %1869 = vadd.xlane.f32.xlu0 %v1742
  %v1870 = vpop.xlane.xlu0 %1869
  %1871 = vadd.xlane.f32.xlu0 %v1744
  %v1872 = vpop.xlane.xlu0 %1871
  %1873 = vadd.xlane.f32.xlu0 %v1746
  %v1874 = vpop.xlane.xlu0 %1873
  %1875 = vadd.xlane.f32.xlu0 %v1748
  %v1876 = vpop.xlane.xlu0 %1875
  %1877 = vadd.xlane.f32.xlu0 %v1750
  %v1878 = vpop.xlane.xlu0 %1877
  %1879 = vadd.xlane.f32.xlu0 %v1752
  %v1880 = vpop.xlane.xlu0 %1879
  %1881 = vadd.xlane.f32.xlu0 %v1754
  %v1882 = vpop.xlane.xlu0 %1881
  %1883 = vadd.xlane.f32.xlu0 %v1756
  %v1884 = vpop.xlane.xlu0 %1883
  %1885 = vadd.xlane.f32.xlu0 %v1758
  %v1886 = vpop.xlane.xlu0 %1885
  %1887 = vadd.xlane.f32.xlu0 %v1760
  %v1888 = vpop.xlane.xlu0 %1887
  %1889 = vadd.xlane.f32.xlu0 %v1762
  %v1890 = vpop.xlane.xlu0 %1889
  %1891 = vadd.xlane.f32.xlu0 %v1764
  %v1892 = vpop.xlane.xlu0 %1891
  %1893 = vadd.xlane.f32.xlu0 %v1766
  %v1894 = vpop.xlane.xlu0 %1893
  %1895 = vadd.xlane.f32.xlu0 %v1768
  %v1896 = vpop.xlane.xlu0 %1895
  %1897 = vadd.xlane.f32.xlu0 %v1770
  %v1898 = vpop.xlane.xlu0 %1897
  %1899 = vadd.xlane.f32.xlu0 %v1772
  %v1900 = vpop.xlane.xlu0 %1899
  %1901 = vadd.xlane.f32.xlu0 %v1774
  %v1902 = vpop.xlane.xlu0 %1901
  %1903 = vadd.xlane.f32.xlu0 %v1776
  %v1904 = vpop.xlane.xlu0 %1903
  %1905 = vadd.xlane.f32.xlu0 %v1778
  %v1906 = vpop.xlane.xlu0 %1905
  %1907 = vadd.xlane.f32.xlu0 %v1780
  %v1908 = vpop.xlane.xlu0 %1907
  %1909 = vadd.xlane.f32.xlu0 %v1782
  %v1910 = vpop.xlane.xlu0 %1909
  %1911 = vadd.xlane.f32.xlu0 %v1784
  %v1912 = vpop.xlane.xlu0 %1911
  %1913 = vadd.xlane.f32.xlu0 %v1786
  %v1914 = vpop.xlane.xlu0 %1913
  %1915 = vadd.xlane.f32.xlu0 %v1788
  %v1916 = vpop.xlane.xlu0 %1915
  %1917 = vadd.xlane.f32.xlu0 %v1790
  %v1918 = vpop.xlane.xlu0 %1917
  %1919 = vadd.xlane.f32.xlu0 %v1792
  %v1920 = vpop.xlane.xlu0 %1919
  %1921 = vadd.xlane.f32.xlu0 %v1794
  %v1922 = vpop.xlane.xlu0 %1921
  %1923 = vadd.xlane.f32.xlu0 %v1796
  %v1924 = vpop.xlane.xlu0 %1923
  %1925 = vadd.xlane.f32.xlu0 %v1798
  %v1926 = vpop.xlane.xlu0 %1925
  %1927 = vadd.xlane.f32.xlu0 %v1800
  %v1928 = vpop.xlane.xlu0 %1927
  %1929 = vadd.xlane.f32.xlu0 %v1802
  %v1930 = vpop.xlane.xlu0 %1929
  %1931 = vadd.xlane.f32.xlu0 %v1804
  %v1932 = vpop.xlane.xlu0 %1931
  %1933 = vadd.xlane.f32.xlu0 %v1806
  %v1934 = vpop.xlane.xlu0 %1933
  %1935 = vadd.xlane.f32.xlu0 %v1808
  %v1936 = vpop.xlane.xlu0 %1935
  %1937 = vadd.xlane.f32.xlu0 %v1810
  %v1938 = vpop.xlane.xlu0 %1937
  %1939 = vadd.xlane.f32.xlu0 %v1812
  %v1940 = vpop.xlane.xlu0 %1939
  %1941 = vadd.xlane.f32.xlu0 %v1814
  %v1942 = vpop.xlane.xlu0 %1941
  %1943 = vadd.xlane.f32.xlu0 %v1816
  %v1944 = vpop.xlane.xlu0 %1943
  %1945 = vadd.xlane.f32.xlu0 %v1818
  %v1946 = vpop.xlane.xlu0 %1945
  %1947 = vadd.xlane.f32.xlu0 %v1820
  %v1948 = vpop.xlane.xlu0 %1947
  %1949 = vadd.xlane.f32.xlu0 %v1822
  %v1950 = vpop.xlane.xlu0 %1949
  %1951 = vrot.lane.b32.xlu0 %v156, 64
  %v1952 = vpop.permute.xlu0 %1951
  %1953 = vrot.lane.b32.xlu0 %v161, 64
  %v1954 = vpop.permute.xlu0 %1953
  %1955 = vrot.lane.b32.xlu0 %v166, 64
  %v1956 = vpop.permute.xlu0 %1955
  %1957 = vrot.lane.b32.xlu0 %v171, 64
  %v1958 = vpop.permute.xlu0 %1957
  %1959 = vrot.lane.b32.xlu0 %v176, 64
  %v1960 = vpop.permute.xlu0 %1959
  %1961 = vrot.lane.b32.xlu0 %v181, 64
  %v1962 = vpop.permute.xlu0 %1961
  %1963 = vrot.lane.b32.xlu0 %v186, 64
  %v1964 = vpop.permute.xlu0 %1963
  %1965 = vrot.lane.b32.xlu0 %v191, 64
  %v1966 = vpop.permute.xlu0 %1965
  %1967 = vrot.lane.b32.xlu0 %v196, 64
  %v1968 = vpop.permute.xlu0 %1967
  %1969 = vrot.lane.b32.xlu0 %v201, 64
  %v1970 = vpop.permute.xlu0 %1969
  %1971 = vrot.lane.b32.xlu0 %v206, 64
  %v1972 = vpop.permute.xlu0 %1971
  %1973 = vrot.lane.b32.xlu0 %v211, 64
  %v1974 = vpop.permute.xlu0 %1973
  %1975 = vrot.lane.b32.xlu0 %v216, 64
  %v1976 = vpop.permute.xlu0 %1975
  %1977 = vrot.lane.b32.xlu0 %v221, 64
  %v1978 = vpop.permute.xlu0 %1977
  %1979 = vrot.lane.b32.xlu0 %v226, 64
  %v1980 = vpop.permute.xlu0 %1979
  %1981 = vrot.lane.b32.xlu0 %v231, 64
  %v1982 = vpop.permute.xlu0 %1981
  %1999 = vmatprep.subr.mxu0 0.0
  %2000 = vmatpush1.msra.mxu0 %v1952
  %2001 = vmatprep.subr.mxu0 0.0
  %2002 = vmatpush1.msra.mxu0 %v1954
  %2003 = vmatprep.subr.mxu0 0.0
  %2004 = vmatpush1.msra.mxu0 %v1956
  %2005 = vmatprep.subr.mxu0 0.0
  %2006 = vmatpush1.msra.mxu0 %v1958
  %2007 = vmatprep.subr.mxu0 0.0
  %2008 = vmatpush1.msra.mxu0 %v1960
  %2009 = vmatprep.subr.mxu0 0.0
  %2010 = vmatpush1.msra.mxu0 %v1962
  %2011 = vmatprep.subr.mxu0 0.0
  %2012 = vmatpush1.msra.mxu0 %v1964
  %2013 = vmatprep.subr.mxu0 0.0
  %2014 = vmatpush1.msra.mxu0 %v1966
  %2015 = vmatprep.subr.mxu0 0.0
  %2016 = vmatpush1.msra.mxu0 %v1968
  %2017 = vmatprep.subr.mxu0 0.0
  %2018 = vmatpush1.msra.mxu0 %v1970
  %2019 = vmatprep.subr.mxu0 0.0
  %2020 = vmatpush1.msra.mxu0 %v1972
  %2021 = vmatprep.subr.mxu0 0.0
  %2022 = vmatpush1.msra.mxu0 %v1974
  %2023 = vmatprep.subr.mxu0 0.0
  %2024 = vmatpush1.msra.mxu0 %v1976
  %2025 = vmatprep.subr.mxu0 0.0
  %2026 = vmatpush1.msra.mxu0 %v1978
  %2027 = vmatprep.subr.mxu0 0.0
  %2028 = vmatpush1.msra.mxu0 %v1980
  %2029 = vmatprep.subr.mxu0 0.0
  %2030 = vmatpush1.msra.mxu0 %v1982
  %2031 = vmatprep.subr.mxu0 0.0
  %2032 = vmatpush1.msra.mxu0 0.0
  %2033 = vmatprep.subr.mxu0 0.0
  %2034 = vmatpush1.msra.mxu0 0.0
  %2035 = vmatprep.subr.mxu0 0.0
  %2036 = vmatpush1.msra.mxu0 0.0
  %2037 = vmatprep.subr.mxu0 0.0
  %2038 = vmatpush1.msra.mxu0 0.0
  %2039 = vmatprep.subr.mxu0 0.0
  %2040 = vmatpush1.msra.mxu0 0.0
  %2041 = vmatprep.subr.mxu0 0.0
  %2042 = vmatpush1.msra.mxu0 0.0
  %2043 = vmatprep.subr.mxu0 0.0
  %2044 = vmatpush1.msra.mxu0 0.0
  %2045 = vmatprep.subr.mxu0 0.0
  %2046 = vmatpush1.msra.mxu0 0.0
  %2047 = vmatprep.subr.mxu0 0.0
  %2048 = vmatpush1.msra.mxu0 0.0
  %2049 = vmatprep.subr.mxu0 0.0
  %2050 = vmatpush1.msra.mxu0 0.0
  %2051 = vmatprep.subr.mxu0 0.0
  %2052 = vmatpush1.msra.mxu0 0.0
  %2053 = vmatprep.subr.mxu0 0.0
  %2054 = vmatpush1.msra.mxu0 0.0
  %2055 = vmatprep.subr.mxu0 0.0
  %2056 = vmatpush1.msra.mxu0 0.0
  %2057 = vmatprep.subr.mxu0 0.0
  %2058 = vmatpush1.msra.mxu0 0.0
  %2059 = vmatprep.subr.mxu0 0.0
  %2060 = vmatpush1.msra.mxu0 0.0
  %2061 = vmatprep.subr.mxu0 0.0
  %2062 = vmatpush1.msra.mxu0 0.0
  %2063 = vmatprep.mubr.f32.mxu0 0.0
  %2064 = vmatmul.mubr.f32.gmra.mrb[0].mxu0 %v1696
  %v2065 = vpop.f32.mrb[0].mxu0
  %v2066 = vadd.f32 0.0, %v2065
  %v2067 = vpop.f32.mrb[0].mxu0
  %2068 = vmatprep.mubr.f32.mxu0 0.0
  %2069 = vmatmul.mubr.f32.gmra.mrb[0].mxu0 %v1698
  %v2070 = vpop.f32.mrb[0].mxu0
  %v2071 = vadd.f32 0.0, %v2070
  %v2072 = vpop.f32.mrb[0].mxu0
  %2073 = vmatprep.mubr.f32.mxu0 0.0
  %2074 = vmatmul.mubr.f32.gmra.mrb[0].mxu0 %v1700
  %v2075 = vpop.f32.mrb[0].mxu0
  %v2076 = vadd.f32 0.0, %v2075
  %v2077 = vpop.f32.mrb[0].mxu0
  %2078 = vmatprep.mubr.f32.mxu0 0.0
  %2079 = vmatmul.mubr.f32.gmra.mrb[0].mxu0 %v1702
  %v2080 = vpop.f32.mrb[0].mxu0
  %v2081 = vadd.f32 0.0, %v2080
  %v2082 = vpop.f32.mrb[0].mxu0
  %2083 = vmatprep.mubr.f32.mxu0 0.0
  %2084 = vmatmul.mubr.f32.gmra.mrb[0].mxu0 %v1704
  %v2085 = vpop.f32.mrb[0].mxu0
  %v2086 = vadd.f32 0.0, %v2085
  %v2087 = vpop.f32.mrb[0].mxu0
  %2088 = vmatprep.mubr.f32.mxu0 0.0
  %2089 = vmatmul.mubr.f32.gmra.mrb[0].mxu0 %v1706
  %v2090 = vpop.f32.mrb[0].mxu0
  %v2091 = vadd.f32 0.0, %v2090
  %v2092 = vpop.f32.mrb[0].mxu0
  %2093 = vmatprep.mubr.f32.mxu0 0.0
  %2094 = vmatmul.mubr.f32.gmra.mrb[0].mxu0 %v1708
  %v2095 = vpop.f32.mrb[0].mxu0
  %v2096 = vadd.f32 0.0, %v2095
  %v2097 = vpop.f32.mrb[0].mxu0
  %2098 = vmatprep.mubr.f32.mxu0 0.0
  %2099 = vmatmul.mubr.f32.gmra.mrb[0].mxu0 %v1710
  %v2100 = vpop.f32.mrb[0].mxu0
  %v2101 = vadd.f32 0.0, %v2100
  %v2102 = vpop.f32.mrb[0].mxu0
  %2103 = vmatprep.mubr.f32.mxu0 0.0
  %2104 = vmatmul.mubr.f32.gmra.mrb[0].mxu0 %v1712
  %v2105 = vpop.f32.mrb[0].mxu0
  %v2106 = vadd.f32 0.0, %v2105
  %v2107 = vpop.f32.mrb[0].mxu0
  %2108 = vmatprep.mubr.f32.mxu0 0.0
  %2109 = vmatmul.mubr.f32.gmra.mrb[0].mxu0 %v1714
  %v2110 = vpop.f32.mrb[0].mxu0
  %v2111 = vadd.f32 0.0, %v2110
  %v2112 = vpop.f32.mrb[0].mxu0
  %2113 = vmatprep.mubr.f32.mxu0 0.0
  %2114 = vmatmul.mubr.f32.gmra.mrb[0].mxu0 %v1716
  %v2115 = vpop.f32.mrb[0].mxu0
  %v2116 = vadd.f32 0.0, %v2115
  %v2117 = vpop.f32.mrb[0].mxu0
  %2118 = vmatprep.mubr.f32.mxu0 0.0
  %2119 = vmatmul.mubr.f32.gmra.mrb[0].mxu0 %v1718
  %v2120 = vpop.f32.mrb[0].mxu0
  %v2121 = vadd.f32 0.0, %v2120
  %v2122 = vpop.f32.mrb[0].mxu0
  %2123 = vmatprep.mubr.f32.mxu0 0.0
  %2124 = vmatmul.mubr.f32.gmra.mrb[0].mxu0 %v1720
  %v2125 = vpop.f32.mrb[0].mxu0
  %v2126 = vadd.f32 0.0, %v2125
  %v2127 = vpop.f32.mrb[0].mxu0
  %2128 = vmatprep.mubr.f32.mxu0 0.0
  %2129 = vmatmul.mubr.f32.gmra.mrb[0].mxu0 %v1722
  %v2130 = vpop.f32.mrb[0].mxu0
  %v2131 = vadd.f32 0.0, %v2130
  %v2132 = vpop.f32.mrb[0].mxu0
  %2133 = vmatprep.mubr.f32.mxu0 0.0
  %2134 = vmatmul.mubr.f32.gmra.mrb[0].mxu0 %v1724
  %v2135 = vpop.f32.mrb[0].mxu0
  %v2136 = vadd.f32 0.0, %v2135
  %v2137 = vpop.f32.mrb[0].mxu0
  %2138 = vmatprep.mubr.f32.mxu0 0.0
  %2139 = vmatmul.mubr.f32.gmra.mrb[0].mxu0 %v1726
  %v2140 = vpop.f32.mrb[0].mxu0
  %v2141 = vadd.f32 0.0, %v2140
  %v2142 = vpop.f32.mrb[0].mxu0
  %2143 = vdwg.mxu0
  %2144 = vrot.lane.b32.xlu0 %v251, 64
  %v2145 = vpop.permute.xlu0 %2144
  %2146 = vrot.lane.b32.xlu0 %v253, 64
  %v2147 = vpop.permute.xlu0 %2146
  %2148 = vrot.lane.b32.xlu0 %v255, 64
  %v2149 = vpop.permute.xlu0 %2148
  %2150 = vrot.lane.b32.xlu0 %v257, 64
  %v2151 = vpop.permute.xlu0 %2150
  %2152 = vrot.lane.b32.xlu0 %v259, 64
  %v2153 = vpop.permute.xlu0 %2152
  %2154 = vrot.lane.b32.xlu0 %v261, 64
  %v2155 = vpop.permute.xlu0 %2154
  %2156 = vrot.lane.b32.xlu0 %v263, 64
  %v2157 = vpop.permute.xlu0 %2156
  %2158 = vrot.lane.b32.xlu0 %v265, 64
  %v2159 = vpop.permute.xlu0 %2158
  %2160 = vrot.lane.b32.xlu0 %v267, 64
  %v2161 = vpop.permute.xlu0 %2160
  %2162 = vrot.lane.b32.xlu0 %v269, 64
  %v2163 = vpop.permute.xlu0 %2162
  %2164 = vrot.lane.b32.xlu0 %v271, 64
  %v2165 = vpop.permute.xlu0 %2164
  %2166 = vrot.lane.b32.xlu0 %v273, 64
  %v2167 = vpop.permute.xlu0 %2166
  %2168 = vrot.lane.b32.xlu0 %v275, 64
  %v2169 = vpop.permute.xlu0 %2168
  %2170 = vrot.lane.b32.xlu0 %v277, 64
  %v2171 = vpop.permute.xlu0 %2170
  %2172 = vrot.lane.b32.xlu0 %v279, 64
  %v2173 = vpop.permute.xlu0 %2172
  %2174 = vrot.lane.b32.xlu0 %v281, 64
  %v2175 = vpop.permute.xlu0 %2174
  %2192 = vmatprep.subr.mxu0 0.0
  %2193 = vmatpush1.msra.mxu0 %v2145
  %2194 = vmatprep.subr.mxu0 0.0
  %2195 = vmatpush1.msra.mxu0 %v2147
  %2196 = vmatprep.subr.mxu0 0.0
  %2197 = vmatpush1.msra.mxu0 %v2149
  %2198 = vmatprep.subr.mxu0 0.0
  %2199 = vmatpush1.msra.mxu0 %v2151
  %2200 = vmatprep.subr.mxu0 0.0
  %2201 = vmatpush1.msra.mxu0 %v2153
  %2202 = vmatprep.subr.mxu0 0.0
  %2203 = vmatpush1.msra.mxu0 %v2155
  %2204 = vmatprep.subr.mxu0 0.0
  %2205 = vmatpush1.msra.mxu0 %v2157
  %2206 = vmatprep.subr.mxu0 0.0
  %2207 = vmatpush1.msra.mxu0 %v2159
  %2208 = vmatprep.subr.mxu0 0.0
  %2209 = vmatpush1.msra.mxu0 %v2161
  %2210 = vmatprep.subr.mxu0 0.0
  %2211 = vmatpush1.msra.mxu0 %v2163
  %2212 = vmatprep.subr.mxu0 0.0
  %2213 = vmatpush1.msra.mxu0 %v2165
  %2214 = vmatprep.subr.mxu0 0.0
  %2215 = vmatpush1.msra.mxu0 %v2167
  %2216 = vmatprep.subr.mxu0 0.0
  %2217 = vmatpush1.msra.mxu0 %v2169
  %2218 = vmatprep.subr.mxu0 0.0
  %2219 = vmatpush1.msra.mxu0 %v2171
  %2220 = vmatprep.subr.mxu0 0.0
  %2221 = vmatpush1.msra.mxu0 %v2173
  %2222 = vmatprep.subr.mxu0 0.0
  %2223 = vmatpush1.msra.mxu0 %v2175
  %2224 = vmatprep.subr.mxu0 0.0
  %2225 = vmatpush1.msra.mxu0 0.0
  %2226 = vmatprep.subr.mxu0 0.0
  %2227 = vmatpush1.msra.mxu0 0.0
  %2228 = vmatprep.subr.mxu0 0.0
  %2229 = vmatpush1.msra.mxu0 0.0
  %2230 = vmatprep.subr.mxu0 0.0
  %2231 = vmatpush1.msra.mxu0 0.0
  %2232 = vmatprep.subr.mxu0 0.0
  %2233 = vmatpush1.msra.mxu0 0.0
  %2234 = vmatprep.subr.mxu0 0.0
  %2235 = vmatpush1.msra.mxu0 0.0
  %2236 = vmatprep.subr.mxu0 0.0
  %2237 = vmatpush1.msra.mxu0 0.0
  %2238 = vmatprep.subr.mxu0 0.0
  %2239 = vmatpush1.msra.mxu0 0.0
  %2240 = vmatprep.subr.mxu0 0.0
  %2241 = vmatpush1.msra.mxu0 0.0
  %2242 = vmatprep.subr.mxu0 0.0
  %2243 = vmatpush1.msra.mxu0 0.0
  %2244 = vmatprep.subr.mxu0 0.0
  %2245 = vmatpush1.msra.mxu0 0.0
  %2246 = vmatprep.subr.mxu0 0.0
  %2247 = vmatpush1.msra.mxu0 0.0
  %2248 = vmatprep.subr.mxu0 0.0
  %2249 = vmatpush1.msra.mxu0 0.0
  %2250 = vmatprep.subr.mxu0 0.0
  %2251 = vmatpush1.msra.mxu0 0.0
  %2252 = vmatprep.subr.mxu0 0.0
  %2253 = vmatpush1.msra.mxu0 0.0
  %2254 = vmatprep.subr.mxu0 0.0
  %2255 = vmatpush1.msra.mxu0 0.0
  %2256 = vmatprep.mubr.f32.mxu0 0.0
  %2257 = vmatmul.mubr.f32.gmra.mrb[0].mxu0 %v1728
  %v2258 = vpop.f32.mrb[0].mxu0
  %v2259 = vadd.f32 0.0, %v2258
  %v2260 = vpop.f32.mrb[0].mxu0
  %2261 = vmatprep.mubr.f32.mxu0 0.0
  %2262 = vmatmul.mubr.f32.gmra.mrb[0].mxu0 %v1730
  %v2263 = vpop.f32.mrb[0].mxu0
  %v2264 = vadd.f32 0.0, %v2263
  %v2265 = vpop.f32.mrb[0].mxu0
  %2266 = vmatprep.mubr.f32.mxu0 0.0
  %2267 = vmatmul.mubr.f32.gmra.mrb[0].mxu0 %v1732
  %v2268 = vpop.f32.mrb[0].mxu0
  %v2269 = vadd.f32 0.0, %v2268
  %v2270 = vpop.f32.mrb[0].mxu0
  %2271 = vmatprep.mubr.f32.mxu0 0.0
  %2272 = vmatmul.mubr.f32.gmra.mrb[0].mxu0 %v1734
  %v2273 = vpop.f32.mrb[0].mxu0
  %v2274 = vadd.f32 0.0, %v2273
  %v2275 = vpop.f32.mrb[0].mxu0
  %2276 = vmatprep.mubr.f32.mxu0 0.0
  %2277 = vmatmul.mubr.f32.gmra.mrb[0].mxu0 %v1736
  %v2278 = vpop.f32.mrb[0].mxu0
  %v2279 = vadd.f32 0.0, %v2278
  %v2280 = vpop.f32.mrb[0].mxu0
  %2281 = vmatprep.mubr.f32.mxu0 0.0
  %2282 = vmatmul.mubr.f32.gmra.mrb[0].mxu0 %v1738
  %v2283 = vpop.f32.mrb[0].mxu0
  %v2284 = vadd.f32 0.0, %v2283
  %v2285 = vpop.f32.mrb[0].mxu0
  %2286 = vmatprep.mubr.f32.mxu0 0.0
  %2287 = vmatmul.mubr.f32.gmra.mrb[0].mxu0 %v1740
  %v2288 = vpop.f32.mrb[0].mxu0
  %v2289 = vadd.f32 0.0, %v2288
  %v2290 = vpop.f32.mrb[0].mxu0
  %2291 = vmatprep.mubr.f32.mxu0 0.0
  %2292 = vmatmul.mubr.f32.gmra.mrb[0].mxu0 %v1742
  %v2293 = vpop.f32.mrb[0].mxu0
  %v2294 = vadd.f32 0.0, %v2293
  %v2295 = vpop.f32.mrb[0].mxu0
  %2296 = vmatprep.mubr.f32.mxu0 0.0
  %2297 = vmatmul.mubr.f32.gmra.mrb[0].mxu0 %v1744
  %v2298 = vpop.f32.mrb[0].mxu0
  %v2299 = vadd.f32 0.0, %v2298
  %v2300 = vpop.f32.mrb[0].mxu0
  %2301 = vmatprep.mubr.f32.mxu0 0.0
  %2302 = vmatmul.mubr.f32.gmra.mrb[0].mxu0 %v1746
  %v2303 = vpop.f32.mrb[0].mxu0
  %v2304 = vadd.f32 0.0, %v2303
  %v2305 = vpop.f32.mrb[0].mxu0
  %2306 = vmatprep.mubr.f32.mxu0 0.0
  %2307 = vmatmul.mubr.f32.gmra.mrb[0].mxu0 %v1748
  %v2308 = vpop.f32.mrb[0].mxu0
  %v2309 = vadd.f32 0.0, %v2308
  %v2310 = vpop.f32.mrb[0].mxu0
  %2311 = vmatprep.mubr.f32.mxu0 0.0
  %2312 = vmatmul.mubr.f32.gmra.mrb[0].mxu0 %v1750
  %v2313 = vpop.f32.mrb[0].mxu0
  %v2314 = vadd.f32 0.0, %v2313
  %v2315 = vpop.f32.mrb[0].mxu0
  %2316 = vmatprep.mubr.f32.mxu0 0.0
  %2317 = vmatmul.mubr.f32.gmra.mrb[0].mxu0 %v1752
  %v2318 = vpop.f32.mrb[0].mxu0
  %v2319 = vadd.f32 0.0, %v2318
  %v2320 = vpop.f32.mrb[0].mxu0
  %2321 = vmatprep.mubr.f32.mxu0 0.0
  %2322 = vmatmul.mubr.f32.gmra.mrb[0].mxu0 %v1754
  %v2323 = vpop.f32.mrb[0].mxu0
  %v2324 = vadd.f32 0.0, %v2323
  %v2325 = vpop.f32.mrb[0].mxu0
  %2326 = vmatprep.mubr.f32.mxu0 0.0
  %2327 = vmatmul.mubr.f32.gmra.mrb[0].mxu0 %v1756
  %v2328 = vpop.f32.mrb[0].mxu0
  %v2329 = vadd.f32 0.0, %v2328
  %v2330 = vpop.f32.mrb[0].mxu0
  %2331 = vmatprep.mubr.f32.mxu0 0.0
  %2332 = vmatmul.mubr.f32.gmra.mrb[0].mxu0 %v1758
  %v2333 = vpop.f32.mrb[0].mxu0
  %v2334 = vadd.f32 0.0, %v2333
  %v2335 = vpop.f32.mrb[0].mxu0
  %2336 = vdwg.mxu0
  %2337 = vrot.lane.b32.xlu0 %v299, 64
  %v2338 = vpop.permute.xlu0 %2337
  %2339 = vrot.lane.b32.xlu0 %v301, 64
  %v2340 = vpop.permute.xlu0 %2339
  %2341 = vrot.lane.b32.xlu0 %v303, 64
  %v2342 = vpop.permute.xlu0 %2341
  %2343 = vrot.lane.b32.xlu0 %v305, 64
  %v2344 = vpop.permute.xlu0 %2343
  %2345 = vrot.lane.b32.xlu0 %v307, 64
  %v2346 = vpop.permute.xlu0 %2345
  %2347 = vrot.lane.b32.xlu0 %v309, 64
  %v2348 = vpop.permute.xlu0 %2347
  %2349 = vrot.lane.b32.xlu0 %v311, 64
  %v2350 = vpop.permute.xlu0 %2349
  %2351 = vrot.lane.b32.xlu0 %v313, 64
  %v2352 = vpop.permute.xlu0 %2351
  %2353 = vrot.lane.b32.xlu0 %v315, 64
  %v2354 = vpop.permute.xlu0 %2353
  %2355 = vrot.lane.b32.xlu0 %v317, 64
  %v2356 = vpop.permute.xlu0 %2355
  %2357 = vrot.lane.b32.xlu0 %v319, 64
  %v2358 = vpop.permute.xlu0 %2357
  %2359 = vrot.lane.b32.xlu0 %v321, 64
  %v2360 = vpop.permute.xlu0 %2359
  %2361 = vrot.lane.b32.xlu0 %v323, 64
  %v2362 = vpop.permute.xlu0 %2361
  %2363 = vrot.lane.b32.xlu0 %v325, 64
  %v2364 = vpop.permute.xlu0 %2363
  %2365 = vrot.lane.b32.xlu0 %v327, 64
  %v2366 = vpop.permute.xlu0 %2365
  %2367 = vrot.lane.b32.xlu0 %v329, 64
  %v2368 = vpop.permute.xlu0 %2367
  %2385 = vmatprep.subr.mxu0 0.0
  %2386 = vmatpush1.msra.mxu0 %v2338
  %2387 = vmatprep.subr.mxu0 0.0
  %2388 = vmatpush1.msra.mxu0 %v2340
  %2389 = vmatprep.subr.mxu0 0.0
  %2390 = vmatpush1.msra.mxu0 %v2342
  %2391 = vmatprep.subr.mxu0 0.0
  %2392 = vmatpush1.msra.mxu0 %v2344
  %2393 = vmatprep.subr.mxu0 0.0
  %2394 = vmatpush1.msra.mxu0 %v2346
  %2395 = vmatprep.subr.mxu0 0.0
  %2396 = vmatpush1.msra.mxu0 %v2348
  %2397 = vmatprep.subr.mxu0 0.0
  %2398 = vmatpush1.msra.mxu0 %v2350
  %2399 = vmatprep.subr.mxu0 0.0
  %2400 = vmatpush1.msra.mxu0 %v2352
  %2401 = vmatprep.subr.mxu0 0.0
  %2402 = vmatpush1.msra.mxu0 %v2354
  %2403 = vmatprep.subr.mxu0 0.0
  %2404 = vmatpush1.msra.mxu0 %v2356
  %2405 = vmatprep.subr.mxu0 0.0
  %2406 = vmatpush1.msra.mxu0 %v2358
  %2407 = vmatprep.subr.mxu0 0.0
  %2408 = vmatpush1.msra.mxu0 %v2360
  %2409 = vmatprep.subr.mxu0 0.0
  %2410 = vmatpush1.msra.mxu0 %v2362
  %2411 = vmatprep.subr.mxu0 0.0
  %2412 = vmatpush1.msra.mxu0 %v2364
  %2413 = vmatprep.subr.mxu0 0.0
  %2414 = vmatpush1.msra.mxu0 %v2366
  %2415 = vmatprep.subr.mxu0 0.0
  %2416 = vmatpush1.msra.mxu0 %v2368
  %2417 = vmatprep.subr.mxu0 0.0
  %2418 = vmatpush1.msra.mxu0 0.0
  %2419 = vmatprep.subr.mxu0 0.0
  %2420 = vmatpush1.msra.mxu0 0.0
  %2421 = vmatprep.subr.mxu0 0.0
  %2422 = vmatpush1.msra.mxu0 0.0
  %2423 = vmatprep.subr.mxu0 0.0
  %2424 = vmatpush1.msra.mxu0 0.0
  %2425 = vmatprep.subr.mxu0 0.0
  %2426 = vmatpush1.msra.mxu0 0.0
  %2427 = vmatprep.subr.mxu0 0.0
  %2428 = vmatpush1.msra.mxu0 0.0
  %2429 = vmatprep.subr.mxu0 0.0
  %2430 = vmatpush1.msra.mxu0 0.0
  %2431 = vmatprep.subr.mxu0 0.0
  %2432 = vmatpush1.msra.mxu0 0.0
  %2433 = vmatprep.subr.mxu0 0.0
  %2434 = vmatpush1.msra.mxu0 0.0
  %2435 = vmatprep.subr.mxu0 0.0
  %2436 = vmatpush1.msra.mxu0 0.0
  %2437 = vmatprep.subr.mxu0 0.0
  %2438 = vmatpush1.msra.mxu0 0.0
  %2439 = vmatprep.subr.mxu0 0.0
  %2440 = vmatpush1.msra.mxu0 0.0
  %2441 = vmatprep.subr.mxu0 0.0
  %2442 = vmatpush1.msra.mxu0 0.0
  %2443 = vmatprep.subr.mxu0 0.0
  %2444 = vmatpush1.msra.mxu0 0.0
  %2445 = vmatprep.subr.mxu0 0.0
  %2446 = vmatpush1.msra.mxu0 0.0
  %2447 = vmatprep.subr.mxu0 0.0
  %2448 = vmatpush1.msra.mxu0 0.0
  %2449 = vmatprep.mubr.f32.mxu0 0.0
  %2450 = vmatmul.mubr.f32.gmra.mrb[0].mxu0 %v1760
  %v2451 = vpop.f32.mrb[0].mxu0
  %v2452 = vadd.f32 0.0, %v2451
  %v2453 = vpop.f32.mrb[0].mxu0
  %2454 = vmatprep.mubr.f32.mxu0 0.0
  %2455 = vmatmul.mubr.f32.gmra.mrb[0].mxu0 %v1762
  %v2456 = vpop.f32.mrb[0].mxu0
  %v2457 = vadd.f32 0.0, %v2456
  %v2458 = vpop.f32.mrb[0].mxu0
  %2459 = vmatprep.mubr.f32.mxu0 0.0
  %2460 = vmatmul.mubr.f32.gmra.mrb[0].mxu0 %v1764
  %v2461 = vpop.f32.mrb[0].mxu0
  %v2462 = vadd.f32 0.0, %v2461
  %v2463 = vpop.f32.mrb[0].mxu0
  %2464 = vmatprep.mubr.f32.mxu0 0.0
  %2465 = vmatmul.mubr.f32.gmra.mrb[0].mxu0 %v1766
  %v2466 = vpop.f32.mrb[0].mxu0
  %v2467 = vadd.f32 0.0, %v2466
  %v2468 = vpop.f32.mrb[0].mxu0
  %2469 = vmatprep.mubr.f32.mxu0 0.0
  %2470 = vmatmul.mubr.f32.gmra.mrb[0].mxu0 %v1768
  %v2471 = vpop.f32.mrb[0].mxu0
  %v2472 = vadd.f32 0.0, %v2471
  %v2473 = vpop.f32.mrb[0].mxu0
  %2474 = vmatprep.mubr.f32.mxu0 0.0
  %2475 = vmatmul.mubr.f32.gmra.mrb[0].mxu0 %v1770
  %v2476 = vpop.f32.mrb[0].mxu0
  %v2477 = vadd.f32 0.0, %v2476
  %v2478 = vpop.f32.mrb[0].mxu0
  %2479 = vmatprep.mubr.f32.mxu0 0.0
  %2480 = vmatmul.mubr.f32.gmra.mrb[0].mxu0 %v1772
  %v2481 = vpop.f32.mrb[0].mxu0
  %v2482 = vadd.f32 0.0, %v2481
  %v2483 = vpop.f32.mrb[0].mxu0
  %2484 = vmatprep.mubr.f32.mxu0 0.0
  %2485 = vmatmul.mubr.f32.gmra.mrb[0].mxu0 %v1774
  %v2486 = vpop.f32.mrb[0].mxu0
  %v2487 = vadd.f32 0.0, %v2486
  %v2488 = vpop.f32.mrb[0].mxu0
  %2489 = vmatprep.mubr.f32.mxu0 0.0
  %2490 = vmatmul.mubr.f32.gmra.mrb[0].mxu0 %v1776
  %v2491 = vpop.f32.mrb[0].mxu0
  %v2492 = vadd.f32 0.0, %v2491
  %v2493 = vpop.f32.mrb[0].mxu0
  %2494 = vmatprep.mubr.f32.mxu0 0.0
  %2495 = vmatmul.mubr.f32.gmra.mrb[0].mxu0 %v1778
  %v2496 = vpop.f32.mrb[0].mxu0
  %v2497 = vadd.f32 0.0, %v2496
  %v2498 = vpop.f32.mrb[0].mxu0
  %2499 = vmatprep.mubr.f32.mxu0 0.0
  %2500 = vmatmul.mubr.f32.gmra.mrb[0].mxu0 %v1780
  %v2501 = vpop.f32.mrb[0].mxu0
  %v2502 = vadd.f32 0.0, %v2501
  %v2503 = vpop.f32.mrb[0].mxu0
  %2504 = vmatprep.mubr.f32.mxu0 0.0
  %2505 = vmatmul.mubr.f32.gmra.mrb[0].mxu0 %v1782
  %v2506 = vpop.f32.mrb[0].mxu0
  %v2507 = vadd.f32 0.0, %v2506
  %v2508 = vpop.f32.mrb[0].mxu0
  %2509 = vmatprep.mubr.f32.mxu0 0.0
  %2510 = vmatmul.mubr.f32.gmra.mrb[0].mxu0 %v1784
  %v2511 = vpop.f32.mrb[0].mxu0
  %v2512 = vadd.f32 0.0, %v2511
  %v2513 = vpop.f32.mrb[0].mxu0
  %2514 = vmatprep.mubr.f32.mxu0 0.0
  %2515 = vmatmul.mubr.f32.gmra.mrb[0].mxu0 %v1786
  %v2516 = vpop.f32.mrb[0].mxu0
  %v2517 = vadd.f32 0.0, %v2516
  %v2518 = vpop.f32.mrb[0].mxu0
  %2519 = vmatprep.mubr.f32.mxu0 0.0
  %2520 = vmatmul.mubr.f32.gmra.mrb[0].mxu0 %v1788
  %v2521 = vpop.f32.mrb[0].mxu0
  %v2522 = vadd.f32 0.0, %v2521
  %v2523 = vpop.f32.mrb[0].mxu0
  %2524 = vmatprep.mubr.f32.mxu0 0.0
  %2525 = vmatmul.mubr.f32.gmra.mrb[0].mxu0 %v1790
  %v2526 = vpop.f32.mrb[0].mxu0
  %v2527 = vadd.f32 0.0, %v2526
  %v2528 = vpop.f32.mrb[0].mxu0
  %2529 = vdwg.mxu0
  %2530 = vrot.lane.b32.xlu0 %v347, 64
  %v2531 = vpop.permute.xlu0 %2530
  %2532 = vrot.lane.b32.xlu0 %v349, 64
  %v2533 = vpop.permute.xlu0 %2532
  %2534 = vrot.lane.b32.xlu0 %v351, 64
  %v2535 = vpop.permute.xlu0 %2534
  %2536 = vrot.lane.b32.xlu0 %v353, 64
  %v2537 = vpop.permute.xlu0 %2536
  %2538 = vrot.lane.b32.xlu0 %v355, 64
  %v2539 = vpop.permute.xlu0 %2538
  %2540 = vrot.lane.b32.xlu0 %v357, 64
  %v2541 = vpop.permute.xlu0 %2540
  %2542 = vrot.lane.b32.xlu0 %v359, 64
  %v2543 = vpop.permute.xlu0 %2542
  %2544 = vrot.lane.b32.xlu0 %v361, 64
  %v2545 = vpop.permute.xlu0 %2544
  %2546 = vrot.lane.b32.xlu0 %v363, 64
  %v2547 = vpop.permute.xlu0 %2546
  %2548 = vrot.lane.b32.xlu0 %v365, 64
  %v2549 = vpop.permute.xlu0 %2548
  %2550 = vrot.lane.b32.xlu0 %v367, 64
  %v2551 = vpop.permute.xlu0 %2550
  %2552 = vrot.lane.b32.xlu0 %v369, 64
  %v2553 = vpop.permute.xlu0 %2552
  %2554 = vrot.lane.b32.xlu0 %v371, 64
  %v2555 = vpop.permute.xlu0 %2554
  %2556 = vrot.lane.b32.xlu0 %v373, 64
  %v2557 = vpop.permute.xlu0 %2556
  %2558 = vrot.lane.b32.xlu0 %v375, 64
  %v2559 = vpop.permute.xlu0 %2558
  %2560 = vrot.lane.b32.xlu0 %v377, 64
  %v2561 = vpop.permute.xlu0 %2560
  %2578 = vmatprep.subr.mxu0 0.0
  %2579 = vmatpush1.msra.mxu0 %v2531
  %2580 = vmatprep.subr.mxu0 0.0
  %2581 = vmatpush1.msra.mxu0 %v2533
  %2582 = vmatprep.subr.mxu0 0.0
  %2583 = vmatpush1.msra.mxu0 %v2535
  %2584 = vmatprep.subr.mxu0 0.0
  %2585 = vmatpush1.msra.mxu0 %v2537
  %2586 = vmatprep.subr.mxu0 0.0
  %2587 = vmatpush1.msra.mxu0 %v2539
  %2588 = vmatprep.subr.mxu0 0.0
  %2589 = vmatpush1.msra.mxu0 %v2541
  %2590 = vmatprep.subr.mxu0 0.0
  %2591 = vmatpush1.msra.mxu0 %v2543
  %2592 = vmatprep.subr.mxu0 0.0
  %2593 = vmatpush1.msra.mxu0 %v2545
  %2594 = vmatprep.subr.mxu0 0.0
  %2595 = vmatpush1.msra.mxu0 %v2547
  %2596 = vmatprep.subr.mxu0 0.0
  %2597 = vmatpush1.msra.mxu0 %v2549
  %2598 = vmatprep.subr.mxu0 0.0
  %2599 = vmatpush1.msra.mxu0 %v2551
  %2600 = vmatprep.subr.mxu0 0.0
  %2601 = vmatpush1.msra.mxu0 %v2553
  %2602 = vmatprep.subr.mxu0 0.0
  %2603 = vmatpush1.msra.mxu0 %v2555
  %2604 = vmatprep.subr.mxu0 0.0
  %2605 = vmatpush1.msra.mxu0 %v2557
  %2606 = vmatprep.subr.mxu0 0.0
  %2607 = vmatpush1.msra.mxu0 %v2559
  %2608 = vmatprep.subr.mxu0 0.0
  %2609 = vmatpush1.msra.mxu0 %v2561
  %2610 = vmatprep.subr.mxu0 0.0
  %2611 = vmatpush1.msra.mxu0 0.0
  %2612 = vmatprep.subr.mxu0 0.0
  %2613 = vmatpush1.msra.mxu0 0.0
  %2614 = vmatprep.subr.mxu0 0.0
  %2615 = vmatpush1.msra.mxu0 0.0
  %2616 = vmatprep.subr.mxu0 0.0
  %2617 = vmatpush1.msra.mxu0 0.0
  %2618 = vmatprep.subr.mxu0 0.0
  %2619 = vmatpush1.msra.mxu0 0.0
  %2620 = vmatprep.subr.mxu0 0.0
  %2621 = vmatpush1.msra.mxu0 0.0
  %2622 = vmatprep.subr.mxu0 0.0
  %2623 = vmatpush1.msra.mxu0 0.0
  %2624 = vmatprep.subr.mxu0 0.0
  %2625 = vmatpush1.msra.mxu0 0.0
  %2626 = vmatprep.subr.mxu0 0.0
  %2627 = vmatpush1.msra.mxu0 0.0
  %2628 = vmatprep.subr.mxu0 0.0
  %2629 = vmatpush1.msra.mxu0 0.0
  %2630 = vmatprep.subr.mxu0 0.0
  %2631 = vmatpush1.msra.mxu0 0.0
  %2632 = vmatprep.subr.mxu0 0.0
  %2633 = vmatpush1.msra.mxu0 0.0
  %2634 = vmatprep.subr.mxu0 0.0
  %2635 = vmatpush1.msra.mxu0 0.0
  %2636 = vmatprep.subr.mxu0 0.0
  %2637 = vmatpush1.msra.mxu0 0.0
  %2638 = vmatprep.subr.mxu0 0.0
  %2639 = vmatpush1.msra.mxu0 0.0
  %2640 = vmatprep.subr.mxu0 0.0
  %2641 = vmatpush1.msra.mxu0 0.0
  %2642 = vmatprep.mubr.f32.mxu0 0.0
  %2643 = vmatmul.mubr.f32.gmra.mrb[0].mxu0 %v1792
  %v2644 = vpop.f32.mrb[0].mxu0
  %v2645 = vadd.f32 0.0, %v2644
  %v2646 = vpop.f32.mrb[0].mxu0
  %2647 = vmatprep.mubr.f32.mxu0 0.0
  %2648 = vmatmul.mubr.f32.gmra.mrb[0].mxu0 %v1794
  %v2649 = vpop.f32.mrb[0].mxu0
  %v2650 = vadd.f32 0.0, %v2649
  %v2651 = vpop.f32.mrb[0].mxu0
  %2652 = vmatprep.mubr.f32.mxu0 0.0
  %2653 = vmatmul.mubr.f32.gmra.mrb[0].mxu0 %v1796
  %v2654 = vpop.f32.mrb[0].mxu0
  %v2655 = vadd.f32 0.0, %v2654
  %v2656 = vpop.f32.mrb[0].mxu0
  %2657 = vmatprep.mubr.f32.mxu0 0.0
  %2658 = vmatmul.mubr.f32.gmra.mrb[0].mxu0 %v1798
  %v2659 = vpop.f32.mrb[0].mxu0
  %v2660 = vadd.f32 0.0, %v2659
  %v2661 = vpop.f32.mrb[0].mxu0
  %2662 = vmatprep.mubr.f32.mxu0 0.0
  %2663 = vmatmul.mubr.f32.gmra.mrb[0].mxu0 %v1800
  %v2664 = vpop.f32.mrb[0].mxu0
  %v2665 = vadd.f32 0.0, %v2664
  %v2666 = vpop.f32.mrb[0].mxu0
  %2667 = vmatprep.mubr.f32.mxu0 0.0
  %2668 = vmatmul.mubr.f32.gmra.mrb[0].mxu0 %v1802
  %v2669 = vpop.f32.mrb[0].mxu0
  %v2670 = vadd.f32 0.0, %v2669
  %v2671 = vpop.f32.mrb[0].mxu0
  %2672 = vmatprep.mubr.f32.mxu0 0.0
  %2673 = vmatmul.mubr.f32.gmra.mrb[0].mxu0 %v1804
  %v2674 = vpop.f32.mrb[0].mxu0
  %v2675 = vadd.f32 0.0, %v2674
  %v2676 = vpop.f32.mrb[0].mxu0
  %2677 = vmatprep.mubr.f32.mxu0 0.0
  %2678 = vmatmul.mubr.f32.gmra.mrb[0].mxu0 %v1806
  %v2679 = vpop.f32.mrb[0].mxu0
  %v2680 = vadd.f32 0.0, %v2679
  %v2681 = vpop.f32.mrb[0].mxu0
  %2682 = vmatprep.mubr.f32.mxu0 0.0
  %2683 = vmatmul.mubr.f32.gmra.mrb[0].mxu0 %v1808
  %v2684 = vpop.f32.mrb[0].mxu0
  %v2685 = vadd.f32 0.0, %v2684
  %v2686 = vpop.f32.mrb[0].mxu0
  %2687 = vmatprep.mubr.f32.mxu0 0.0
  %2688 = vmatmul.mubr.f32.gmra.mrb[0].mxu0 %v1810
  %v2689 = vpop.f32.mrb[0].mxu0
  %v2690 = vadd.f32 0.0, %v2689
  %v2691 = vpop.f32.mrb[0].mxu0
  %2692 = vmatprep.mubr.f32.mxu0 0.0
  %2693 = vmatmul.mubr.f32.gmra.mrb[0].mxu0 %v1812
  %v2694 = vpop.f32.mrb[0].mxu0
  %v2695 = vadd.f32 0.0, %v2694
  %v2696 = vpop.f32.mrb[0].mxu0
  %2697 = vmatprep.mubr.f32.mxu0 0.0
  %2698 = vmatmul.mubr.f32.gmra.mrb[0].mxu0 %v1814
  %v2699 = vpop.f32.mrb[0].mxu0
  %v2700 = vadd.f32 0.0, %v2699
  %v2701 = vpop.f32.mrb[0].mxu0
  %2702 = vmatprep.mubr.f32.mxu0 0.0
  %2703 = vmatmul.mubr.f32.gmra.mrb[0].mxu0 %v1816
  %v2704 = vpop.f32.mrb[0].mxu0
  %v2705 = vadd.f32 0.0, %v2704
  %v2706 = vpop.f32.mrb[0].mxu0
  %2707 = vmatprep.mubr.f32.mxu0 0.0
  %2708 = vmatmul.mubr.f32.gmra.mrb[0].mxu0 %v1818
  %v2709 = vpop.f32.mrb[0].mxu0
  %v2710 = vadd.f32 0.0, %v2709
  %v2711 = vpop.f32.mrb[0].mxu0
  %2712 = vmatprep.mubr.f32.mxu0 0.0
  %2713 = vmatmul.mubr.f32.gmra.mrb[0].mxu0 %v1820
  %v2714 = vpop.f32.mrb[0].mxu0
  %v2715 = vadd.f32 0.0, %v2714
  %v2716 = vpop.f32.mrb[0].mxu0
  %2717 = vmatprep.mubr.f32.mxu0 0.0
  %2718 = vmatmul.mubr.f32.gmra.mrb[0].mxu0 %v1822
  %v2719 = vpop.f32.mrb[0].mxu0
  %v2720 = vadd.f32 0.0, %v2719
  %v2721 = vpop.f32.mrb[0].mxu0
  %2722 = vdwg.mxu0
  %v2723 = vrcp.pop %v1824
  %v2724 = vrcp.pop %v1826
  %v2725 = vrcp.pop %v1828
  %v2726 = vrcp.pop %v1830
  %v2727 = vrcp.pop %v1832
  %v2728 = vrcp.pop %v1834
  %v2729 = vrcp.pop %v1836
  %v2730 = vrcp.pop %v1838
  %v2731 = vrcp.pop %v1840
  %v2732 = vrcp.pop %v1842
  %v2733 = vrcp.pop %v1844
  %v2734 = vrcp.pop %v1846
  %v2735 = vrcp.pop %v1848
  %v2736 = vrcp.pop %v1850
  %v2737 = vrcp.pop %v1852
  %v2738 = vrcp.pop %v1854
  %v2739 = vrcp.pop %v1856
  %v2740 = vrcp.pop %v1858
  %v2741 = vrcp.pop %v1860
  %v2742 = vrcp.pop %v1862
  %v2743 = vrcp.pop %v1864
  %v2744 = vrcp.pop %v1866
  %v2745 = vrcp.pop %v1868
  %v2746 = vrcp.pop %v1870
  %v2747 = vrcp.pop %v1872
  %v2748 = vrcp.pop %v1874
  %v2749 = vrcp.pop %v1876
  %v2750 = vrcp.pop %v1878
  %v2751 = vrcp.pop %v1880
  %v2752 = vrcp.pop %v1882
  %v2753 = vrcp.pop %v1884
  %v2754 = vrcp.pop %v1886
  %v2755 = vrcp.pop %v1888
  %v2756 = vrcp.pop %v1890
  %v2757 = vrcp.pop %v1892
  %v2758 = vrcp.pop %v1894
  %v2759 = vrcp.pop %v1896
  %v2760 = vrcp.pop %v1898
  %v2761 = vrcp.pop %v1900
  %v2762 = vrcp.pop %v1902
  %v2763 = vrcp.pop %v1904
  %v2764 = vrcp.pop %v1906
  %v2765 = vrcp.pop %v1908
  %v2766 = vrcp.pop %v1910
  %v2767 = vrcp.pop %v1912
  %v2768 = vrcp.pop %v1914
  %v2769 = vrcp.pop %v1916
  %v2770 = vrcp.pop %v1918
  %v2771 = vrcp.pop %v1920
  %v2772 = vrcp.pop %v1922
  %v2773 = vrcp.pop %v1924
  %v2774 = vrcp.pop %v1926
  %v2775 = vrcp.pop %v1928
  %v2776 = vrcp.pop %v1930
  %v2777 = vrcp.pop %v1932
  %v2778 = vrcp.pop %v1934
  %v2779 = vrcp.pop %v1936
  %v2780 = vrcp.pop %v1938
  %v2781 = vrcp.pop %v1940
  %v2782 = vrcp.pop %v1942
  %v2783 = vrcp.pop %v1944
  %v2784 = vrcp.pop %v1946
  %v2785 = vrcp.pop %v1948
  %v2786 = vrcp.pop %v1950
  %v2787 = vmul.f32 %v2066, %v2723
  %v2788 = vmul.f32 %v2071, %v2724
  %v2789 = vmul.f32 %v2076, %v2725
  %v2790 = vmul.f32 %v2081, %v2726
  %v2791 = vmul.f32 %v2086, %v2727
  %v2792 = vmul.f32 %v2091, %v2728
  %v2793 = vmul.f32 %v2096, %v2729
  %v2794 = vmul.f32 %v2101, %v2730
  %v2795 = vmul.f32 %v2106, %v2731
  %v2796 = vmul.f32 %v2111, %v2732
  %v2797 = vmul.f32 %v2116, %v2733
  %v2798 = vmul.f32 %v2121, %v2734
  %v2799 = vmul.f32 %v2126, %v2735
  %v2800 = vmul.f32 %v2131, %v2736
  %v2801 = vmul.f32 %v2136, %v2737
  %v2802 = vmul.f32 %v2141, %v2738
  %v2803 = vmul.f32 %v2259, %v2739
  %v2804 = vmul.f32 %v2264, %v2740
  %v2805 = vmul.f32 %v2269, %v2741
  %v2806 = vmul.f32 %v2274, %v2742
  %v2807 = vmul.f32 %v2279, %v2743
  %v2808 = vmul.f32 %v2284, %v2744
  %v2809 = vmul.f32 %v2289, %v2745
  %v2810 = vmul.f32 %v2294, %v2746
  %v2811 = vmul.f32 %v2299, %v2747
  %v2812 = vmul.f32 %v2304, %v2748
  %v2813 = vmul.f32 %v2309, %v2749
  %v2814 = vmul.f32 %v2314, %v2750
  %v2815 = vmul.f32 %v2319, %v2751
  %v2816 = vmul.f32 %v2324, %v2752
  %v2817 = vmul.f32 %v2329, %v2753
  %v2818 = vmul.f32 %v2334, %v2754
  %v2819 = vmul.f32 %v2452, %v2755
  %v2820 = vmul.f32 %v2457, %v2756
  %v2821 = vmul.f32 %v2462, %v2757
  %v2822 = vmul.f32 %v2467, %v2758
  %v2823 = vmul.f32 %v2472, %v2759
  %v2824 = vmul.f32 %v2477, %v2760
  %v2825 = vmul.f32 %v2482, %v2761
  %v2826 = vmul.f32 %v2487, %v2762
  %v2827 = vmul.f32 %v2492, %v2763
  %v2828 = vmul.f32 %v2497, %v2764
  %v2829 = vmul.f32 %v2502, %v2765
  %v2830 = vmul.f32 %v2507, %v2766
  %v2831 = vmul.f32 %v2512, %v2767
  %v2832 = vmul.f32 %v2517, %v2768
  %v2833 = vmul.f32 %v2522, %v2769
  %v2834 = vmul.f32 %v2527, %v2770
  %v2835 = vmul.f32 %v2645, %v2771
  %v2836 = vmul.f32 %v2650, %v2772
  %v2837 = vmul.f32 %v2655, %v2773
  %v2838 = vmul.f32 %v2660, %v2774
  %v2839 = vmul.f32 %v2665, %v2775
  %v2840 = vmul.f32 %v2670, %v2776
  %v2841 = vmul.f32 %v2675, %v2777
  %v2842 = vmul.f32 %v2680, %v2778
  %v2843 = vmul.f32 %v2685, %v2779
  %v2844 = vmul.f32 %v2690, %v2780
  %v2845 = vmul.f32 %v2695, %v2781
  %v2846 = vmul.f32 %v2700, %v2782
  %v2847 = vmul.f32 %v2705, %v2783
  %v2848 = vmul.f32 %v2710, %v2784
  %v2849 = vmul.f32 %v2715, %v2785
  %v2850 = vmul.f32 %v2720, %v2786
  %v2851 = vld [vmem:[%s3] sm:$0xff]
  %v2852 = vld [vmem:[%s3 + $0x8] sm:$0xff]
  %v2853 = vld [vmem:[%s3 + $0x10] sm:$0xff]
  %v2854 = vld [vmem:[%s3 + $0x18] sm:$0xff]
  %v2856 = vsel %vm506, %v2787, 0
  %v2859 = vsel %vm506, %v2788, 0
  %v2862 = vsel %vm506, %v2789, 0
  %v2865 = vsel %vm506, %v2790, 0
  %v2868 = vsel %vm506, %v2791, 0
  %v2871 = vsel %vm506, %v2792, 0
  %v2874 = vsel %vm506, %v2793, 0
  %v2877 = vsel %vm506, %v2794, 0
  %v2880 = vsel %vm506, %v2795, 0
  %v2883 = vsel %vm506, %v2796, 0
  %v2886 = vsel %vm506, %v2797, 0
  %v2889 = vsel %vm506, %v2798, 0
  %v2892 = vsel %vm506, %v2799, 0
  %v2895 = vsel %vm506, %v2800, 0
  %v2898 = vsel %vm506, %v2801, 0
  %v2901 = vsel %vm506, %v2802, 0
  %2903 = vmatprep.subr.mxu0 0.0
  %2904 = vmatpush1.msra.mxu0 %v2851
  %2905 = vmatprep.subr.mxu0 0.0
  %2906 = vmatpush1.msra.mxu0 0.0
  %2907 = vmatprep.subr.mxu0 0.0
  %2908 = vmatpush1.msra.mxu0 0.0
  %2909 = vmatprep.subr.mxu0 0.0
  %2910 = vmatpush1.msra.mxu0 0.0
  %2911 = vmatprep.subr.mxu0 0.0
  %2912 = vmatpush1.msra.mxu0 0.0
  %2913 = vmatprep.subr.mxu0 0.0
  %2914 = vmatpush1.msra.mxu0 0.0
  %2915 = vmatprep.subr.mxu0 0.0
  %2916 = vmatpush1.msra.mxu0 0.0
  %2917 = vmatprep.subr.mxu0 0.0
  %2918 = vmatpush1.msra.mxu0 0.0
  %2919 = vmatprep.subr.mxu0 0.0
  %2920 = vmatpush1.msra.mxu0 0.0
  %2921 = vmatprep.subr.mxu0 0.0
  %2922 = vmatpush1.msra.mxu0 0.0
  %2923 = vmatprep.subr.mxu0 0.0
  %2924 = vmatpush1.msra.mxu0 0.0
  %2925 = vmatprep.subr.mxu0 0.0
  %2926 = vmatpush1.msra.mxu0 0.0
  %2927 = vmatprep.subr.mxu0 0.0
  %2928 = vmatpush1.msra.mxu0 0.0
  %2929 = vmatprep.subr.mxu0 0.0
  %2930 = vmatpush1.msra.mxu0 0.0
  %2931 = vmatprep.subr.mxu0 0.0
  %2932 = vmatpush1.msra.mxu0 0.0
  %2933 = vmatprep.subr.mxu0 0.0
  %2934 = vmatpush1.msra.mxu0 0.0
  %2935 = vmatprep.subr.mxu0 0.0
  %2936 = vmatpush1.msra.mxu0 0.0
  %2937 = vmatprep.subr.mxu0 0.0
  %2938 = vmatpush1.msra.mxu0 0.0
  %2939 = vmatprep.subr.mxu0 0.0
  %2940 = vmatpush1.msra.mxu0 0.0
  %2941 = vmatprep.subr.mxu0 0.0
  %2942 = vmatpush1.msra.mxu0 0.0
  %2943 = vmatprep.subr.mxu0 0.0
  %2944 = vmatpush1.msra.mxu0 0.0
  %2945 = vmatprep.subr.mxu0 0.0
  %2946 = vmatpush1.msra.mxu0 0.0
  %2947 = vmatprep.subr.mxu0 0.0
  %2948 = vmatpush1.msra.mxu0 0.0
  %2949 = vmatprep.subr.mxu0 0.0
  %2950 = vmatpush1.msra.mxu0 0.0
  %2951 = vmatprep.subr.mxu0 0.0
  %2952 = vmatpush1.msra.mxu0 0.0
  %2953 = vmatprep.subr.mxu0 0.0
  %2954 = vmatpush1.msra.mxu0 0.0
  %2955 = vmatprep.subr.mxu0 0.0
  %2956 = vmatpush1.msra.mxu0 0.0
  %2957 = vmatprep.subr.mxu0 0.0
  %2958 = vmatpush1.msra.mxu0 0.0
  %2959 = vmatprep.subr.mxu0 0.0
  %2960 = vmatpush1.msra.mxu0 0.0
  %2961 = vmatprep.subr.mxu0 0.0
  %2962 = vmatpush1.msra.mxu0 0.0
  %2963 = vmatprep.subr.mxu0 0.0
  %2964 = vmatpush1.msra.mxu0 0.0
  %2965 = vmatprep.subr.mxu0 0.0
  %2966 = vmatpush1.msra.mxu0 0.0
  %2967 = vmatprep.mubr.f32.mxu0 0.0
  %2968 = vmatmul.mubr.f32.gmra.mrb[0].mxu0 %v2856
  %v2969 = vpop.f32.mrb[0].mxu0
  %v2970 = vadd.f32 0.0, %v2969
  %v2971 = vpop.f32.mrb[0].mxu0
  %2972 = vmatprep.mubr.f32.mxu0 0.0
  %2973 = vmatmul.mubr.f32.gmra.mrb[0].mxu0 %v2859
  %v2974 = vpop.f32.mrb[0].mxu0
  %v2975 = vadd.f32 0.0, %v2974
  %v2976 = vpop.f32.mrb[0].mxu0
  %2977 = vmatprep.mubr.f32.mxu0 0.0
  %2978 = vmatmul.mubr.f32.gmra.mrb[0].mxu0 %v2862
  %v2979 = vpop.f32.mrb[0].mxu0
  %v2980 = vadd.f32 0.0, %v2979
  %v2981 = vpop.f32.mrb[0].mxu0
  %2982 = vmatprep.mubr.f32.mxu0 0.0
  %2983 = vmatmul.mubr.f32.gmra.mrb[0].mxu0 %v2865
  %v2984 = vpop.f32.mrb[0].mxu0
  %v2985 = vadd.f32 0.0, %v2984
  %v2986 = vpop.f32.mrb[0].mxu0
  %2987 = vmatprep.mubr.f32.mxu0 0.0
  %2988 = vmatmul.mubr.f32.gmra.mrb[0].mxu0 %v2868
  %v2989 = vpop.f32.mrb[0].mxu0
  %v2990 = vadd.f32 0.0, %v2989
  %v2991 = vpop.f32.mrb[0].mxu0
  %2992 = vmatprep.mubr.f32.mxu0 0.0
  %2993 = vmatmul.mubr.f32.gmra.mrb[0].mxu0 %v2871
  %v2994 = vpop.f32.mrb[0].mxu0
  %v2995 = vadd.f32 0.0, %v2994
  %v2996 = vpop.f32.mrb[0].mxu0
  %2997 = vmatprep.mubr.f32.mxu0 0.0
  %2998 = vmatmul.mubr.f32.gmra.mrb[0].mxu0 %v2874
  %v2999 = vpop.f32.mrb[0].mxu0
  %v3000 = vadd.f32 0.0, %v2999
  %v3001 = vpop.f32.mrb[0].mxu0
  %3002 = vmatprep.mubr.f32.mxu0 0.0
  %3003 = vmatmul.mubr.f32.gmra.mrb[0].mxu0 %v2877
  %v3004 = vpop.f32.mrb[0].mxu0
  %v3005 = vadd.f32 0.0, %v3004
  %v3006 = vpop.f32.mrb[0].mxu0
  %3007 = vmatprep.mubr.f32.mxu0 0.0
  %3008 = vmatmul.mubr.f32.gmra.mrb[0].mxu0 %v2880
  %v3009 = vpop.f32.mrb[0].mxu0
  %v3010 = vadd.f32 0.0, %v3009
  %v3011 = vpop.f32.mrb[0].mxu0
  %3012 = vmatprep.mubr.f32.mxu0 0.0
  %3013 = vmatmul.mubr.f32.gmra.mrb[0].mxu0 %v2883
  %v3014 = vpop.f32.mrb[0].mxu0
  %v3015 = vadd.f32 0.0, %v3014
  %v3016 = vpop.f32.mrb[0].mxu0
  %3017 = vmatprep.mubr.f32.mxu0 0.0
  %3018 = vmatmul.mubr.f32.gmra.mrb[0].mxu0 %v2886
  %v3019 = vpop.f32.mrb[0].mxu0
  %v3020 = vadd.f32 0.0, %v3019
  %v3021 = vpop.f32.mrb[0].mxu0
  %3022 = vmatprep.mubr.f32.mxu0 0.0
  %3023 = vmatmul.mubr.f32.gmra.mrb[0].mxu0 %v2889
  %v3024 = vpop.f32.mrb[0].mxu0
  %v3025 = vadd.f32 0.0, %v3024
  %v3026 = vpop.f32.mrb[0].mxu0
  %3027 = vmatprep.mubr.f32.mxu0 0.0
  %3028 = vmatmul.mubr.f32.gmra.mrb[0].mxu0 %v2892
  %v3029 = vpop.f32.mrb[0].mxu0
  %v3030 = vadd.f32 0.0, %v3029
  %v3031 = vpop.f32.mrb[0].mxu0
  %3032 = vmatprep.mubr.f32.mxu0 0.0
  %3033 = vmatmul.mubr.f32.gmra.mrb[0].mxu0 %v2895
  %v3034 = vpop.f32.mrb[0].mxu0
  %v3035 = vadd.f32 0.0, %v3034
  %v3036 = vpop.f32.mrb[0].mxu0
  %3037 = vmatprep.mubr.f32.mxu0 0.0
  %3038 = vmatmul.mubr.f32.gmra.mrb[0].mxu0 %v2898
  %v3039 = vpop.f32.mrb[0].mxu0
  %v3040 = vadd.f32 0.0, %v3039
  %v3041 = vpop.f32.mrb[0].mxu0
  %3042 = vmatprep.mubr.f32.mxu0 0.0
  %3043 = vmatmul.mubr.f32.gmra.mrb[0].mxu0 %v2901
  %v3044 = vpop.f32.mrb[0].mxu0
  %v3045 = vadd.f32 0.0, %v3044
  %v3046 = vpop.f32.mrb[0].mxu0
  %3047 = vdwg.mxu0
  %v3049 = vsel %vm506, %v2803, 0
  %v3052 = vsel %vm506, %v2804, 0
  %v3055 = vsel %vm506, %v2805, 0
  %v3058 = vsel %vm506, %v2806, 0
  %v3061 = vsel %vm506, %v2807, 0
  %v3064 = vsel %vm506, %v2808, 0
  %v3067 = vsel %vm506, %v2809, 0
  %v3070 = vsel %vm506, %v2810, 0
  %v3073 = vsel %vm506, %v2811, 0
  %v3076 = vsel %vm506, %v2812, 0
  %v3079 = vsel %vm506, %v2813, 0
  %v3082 = vsel %vm506, %v2814, 0
  %v3085 = vsel %vm506, %v2815, 0
  %v3088 = vsel %vm506, %v2816, 0
  %v3091 = vsel %vm506, %v2817, 0
  %v3094 = vsel %vm506, %v2818, 0
  %3096 = vmatprep.subr.mxu0 0.0
  %3097 = vmatpush1.msra.mxu0 %v2852
  %3098 = vmatprep.subr.mxu0 0.0
  %3099 = vmatpush1.msra.mxu0 0.0
  %3100 = vmatprep.subr.mxu0 0.0
  %3101 = vmatpush1.msra.mxu0 0.0
  %3102 = vmatprep.subr.mxu0 0.0
  %3103 = vmatpush1.msra.mxu0 0.0
  %3104 = vmatprep.subr.mxu0 0.0
  %3105 = vmatpush1.msra.mxu0 0.0
  %3106 = vmatprep.subr.mxu0 0.0
  %3107 = vmatpush1.msra.mxu0 0.0
  %3108 = vmatprep.subr.mxu0 0.0
  %3109 = vmatpush1.msra.mxu0 0.0
  %3110 = vmatprep.subr.mxu0 0.0
  %3111 = vmatpush1.msra.mxu0 0.0
  %3112 = vmatprep.subr.mxu0 0.0
  %3113 = vmatpush1.msra.mxu0 0.0
  %3114 = vmatprep.subr.mxu0 0.0
  %3115 = vmatpush1.msra.mxu0 0.0
  %3116 = vmatprep.subr.mxu0 0.0
  %3117 = vmatpush1.msra.mxu0 0.0
  %3118 = vmatprep.subr.mxu0 0.0
  %3119 = vmatpush1.msra.mxu0 0.0
  %3120 = vmatprep.subr.mxu0 0.0
  %3121 = vmatpush1.msra.mxu0 0.0
  %3122 = vmatprep.subr.mxu0 0.0
  %3123 = vmatpush1.msra.mxu0 0.0
  %3124 = vmatprep.subr.mxu0 0.0
  %3125 = vmatpush1.msra.mxu0 0.0
  %3126 = vmatprep.subr.mxu0 0.0
  %3127 = vmatpush1.msra.mxu0 0.0
  %3128 = vmatprep.subr.mxu0 0.0
  %3129 = vmatpush1.msra.mxu0 0.0
  %3130 = vmatprep.subr.mxu0 0.0
  %3131 = vmatpush1.msra.mxu0 0.0
  %3132 = vmatprep.subr.mxu0 0.0
  %3133 = vmatpush1.msra.mxu0 0.0
  %3134 = vmatprep.subr.mxu0 0.0
  %3135 = vmatpush1.msra.mxu0 0.0
  %3136 = vmatprep.subr.mxu0 0.0
  %3137 = vmatpush1.msra.mxu0 0.0
  %3138 = vmatprep.subr.mxu0 0.0
  %3139 = vmatpush1.msra.mxu0 0.0
  %3140 = vmatprep.subr.mxu0 0.0
  %3141 = vmatpush1.msra.mxu0 0.0
  %3142 = vmatprep.subr.mxu0 0.0
  %3143 = vmatpush1.msra.mxu0 0.0
  %3144 = vmatprep.subr.mxu0 0.0
  %3145 = vmatpush1.msra.mxu0 0.0
  %3146 = vmatprep.subr.mxu0 0.0
  %3147 = vmatpush1.msra.mxu0 0.0
  %3148 = vmatprep.subr.mxu0 0.0
  %3149 = vmatpush1.msra.mxu0 0.0
  %3150 = vmatprep.subr.mxu0 0.0
  %3151 = vmatpush1.msra.mxu0 0.0
  %3152 = vmatprep.subr.mxu0 0.0
  %3153 = vmatpush1.msra.mxu0 0.0
  %3154 = vmatprep.subr.mxu0 0.0
  %3155 = vmatpush1.msra.mxu0 0.0
  %3156 = vmatprep.subr.mxu0 0.0
  %3157 = vmatpush1.msra.mxu0 0.0
  %3158 = vmatprep.subr.mxu0 0.0
  %3159 = vmatpush1.msra.mxu0 0.0
  %3160 = vmatprep.mubr.f32.mxu0 0.0
  %3161 = vmatmul.mubr.f32.gmra.mrb[0].mxu0 %v3049
  %v3162 = vpop.f32.mrb[0].mxu0
  %v3163 = vadd.f32 0.0, %v3162
  %v3164 = vpop.f32.mrb[0].mxu0
  %3165 = vmatprep.mubr.f32.mxu0 0.0
  %3166 = vmatmul.mubr.f32.gmra.mrb[0].mxu0 %v3052
  %v3167 = vpop.f32.mrb[0].mxu0
  %v3168 = vadd.f32 0.0, %v3167
  %v3169 = vpop.f32.mrb[0].mxu0
  %3170 = vmatprep.mubr.f32.mxu0 0.0
  %3171 = vmatmul.mubr.f32.gmra.mrb[0].mxu0 %v3055
  %v3172 = vpop.f32.mrb[0].mxu0
  %v3173 = vadd.f32 0.0, %v3172
  %v3174 = vpop.f32.mrb[0].mxu0
  %3175 = vmatprep.mubr.f32.mxu0 0.0
  %3176 = vmatmul.mubr.f32.gmra.mrb[0].mxu0 %v3058
  %v3177 = vpop.f32.mrb[0].mxu0
  %v3178 = vadd.f32 0.0, %v3177
  %v3179 = vpop.f32.mrb[0].mxu0
  %3180 = vmatprep.mubr.f32.mxu0 0.0
  %3181 = vmatmul.mubr.f32.gmra.mrb[0].mxu0 %v3061
  %v3182 = vpop.f32.mrb[0].mxu0
  %v3183 = vadd.f32 0.0, %v3182
  %v3184 = vpop.f32.mrb[0].mxu0
  %3185 = vmatprep.mubr.f32.mxu0 0.0
  %3186 = vmatmul.mubr.f32.gmra.mrb[0].mxu0 %v3064
  %v3187 = vpop.f32.mrb[0].mxu0
  %v3188 = vadd.f32 0.0, %v3187
  %v3189 = vpop.f32.mrb[0].mxu0
  %3190 = vmatprep.mubr.f32.mxu0 0.0
  %3191 = vmatmul.mubr.f32.gmra.mrb[0].mxu0 %v3067
  %v3192 = vpop.f32.mrb[0].mxu0
  %v3193 = vadd.f32 0.0, %v3192
  %v3194 = vpop.f32.mrb[0].mxu0
  %3195 = vmatprep.mubr.f32.mxu0 0.0
  %3196 = vmatmul.mubr.f32.gmra.mrb[0].mxu0 %v3070
  %v3197 = vpop.f32.mrb[0].mxu0
  %v3198 = vadd.f32 0.0, %v3197
  %v3199 = vpop.f32.mrb[0].mxu0
  %3200 = vmatprep.mubr.f32.mxu0 0.0
  %3201 = vmatmul.mubr.f32.gmra.mrb[0].mxu0 %v3073
  %v3202 = vpop.f32.mrb[0].mxu0
  %v3203 = vadd.f32 0.0, %v3202
  %v3204 = vpop.f32.mrb[0].mxu0
  %3205 = vmatprep.mubr.f32.mxu0 0.0
  %3206 = vmatmul.mubr.f32.gmra.mrb[0].mxu0 %v3076
  %v3207 = vpop.f32.mrb[0].mxu0
  %v3208 = vadd.f32 0.0, %v3207
  %v3209 = vpop.f32.mrb[0].mxu0
  %3210 = vmatprep.mubr.f32.mxu0 0.0
  %3211 = vmatmul.mubr.f32.gmra.mrb[0].mxu0 %v3079
  %v3212 = vpop.f32.mrb[0].mxu0
  %v3213 = vadd.f32 0.0, %v3212
  %v3214 = vpop.f32.mrb[0].mxu0
  %3215 = vmatprep.mubr.f32.mxu0 0.0
  %3216 = vmatmul.mubr.f32.gmra.mrb[0].mxu0 %v3082
  %v3217 = vpop.f32.mrb[0].mxu0
  %v3218 = vadd.f32 0.0, %v3217
  %v3219 = vpop.f32.mrb[0].mxu0
  %3220 = vmatprep.mubr.f32.mxu0 0.0
  %3221 = vmatmul.mubr.f32.gmra.mrb[0].mxu0 %v3085
  %v3222 = vpop.f32.mrb[0].mxu0
  %v3223 = vadd.f32 0.0, %v3222
  %v3224 = vpop.f32.mrb[0].mxu0
  %3225 = vmatprep.mubr.f32.mxu0 0.0
  %3226 = vmatmul.mubr.f32.gmra.mrb[0].mxu0 %v3088
  %v3227 = vpop.f32.mrb[0].mxu0
  %v3228 = vadd.f32 0.0, %v3227
  %v3229 = vpop.f32.mrb[0].mxu0
  %3230 = vmatprep.mubr.f32.mxu0 0.0
  %3231 = vmatmul.mubr.f32.gmra.mrb[0].mxu0 %v3091
  %v3232 = vpop.f32.mrb[0].mxu0
  %v3233 = vadd.f32 0.0, %v3232
  %v3234 = vpop.f32.mrb[0].mxu0
  %3235 = vmatprep.mubr.f32.mxu0 0.0
  %3236 = vmatmul.mubr.f32.gmra.mrb[0].mxu0 %v3094
  %v3237 = vpop.f32.mrb[0].mxu0
  %v3238 = vadd.f32 0.0, %v3237
  %v3239 = vpop.f32.mrb[0].mxu0
  %3240 = vdwg.mxu0
  %v3242 = vsel %vm506, %v2819, 0
  %v3245 = vsel %vm506, %v2820, 0
  %v3248 = vsel %vm506, %v2821, 0
  %v3251 = vsel %vm506, %v2822, 0
  %v3254 = vsel %vm506, %v2823, 0
  %v3257 = vsel %vm506, %v2824, 0
  %v3260 = vsel %vm506, %v2825, 0
  %v3263 = vsel %vm506, %v2826, 0
  %v3266 = vsel %vm506, %v2827, 0
  %v3269 = vsel %vm506, %v2828, 0
  %v3272 = vsel %vm506, %v2829, 0
  %v3275 = vsel %vm506, %v2830, 0
  %v3278 = vsel %vm506, %v2831, 0
  %v3281 = vsel %vm506, %v2832, 0
  %v3284 = vsel %vm506, %v2833, 0
  %v3287 = vsel %vm506, %v2834, 0
  %3289 = vmatprep.subr.mxu0 0.0
  %3290 = vmatpush1.msra.mxu0 %v2853
  %3291 = vmatprep.subr.mxu0 0.0
  %3292 = vmatpush1.msra.mxu0 0.0
  %3293 = vmatprep.subr.mxu0 0.0
  %3294 = vmatpush1.msra.mxu0 0.0
  %3295 = vmatprep.subr.mxu0 0.0
  %3296 = vmatpush1.msra.mxu0 0.0
  %3297 = vmatprep.subr.mxu0 0.0
  %3298 = vmatpush1.msra.mxu0 0.0
  %3299 = vmatprep.subr.mxu0 0.0
  %3300 = vmatpush1.msra.mxu0 0.0
  %3301 = vmatprep.subr.mxu0 0.0
  %3302 = vmatpush1.msra.mxu0 0.0
  %3303 = vmatprep.subr.mxu0 0.0
  %3304 = vmatpush1.msra.mxu0 0.0
  %3305 = vmatprep.subr.mxu0 0.0
  %3306 = vmatpush1.msra.mxu0 0.0
  %3307 = vmatprep.subr.mxu0 0.0
  %3308 = vmatpush1.msra.mxu0 0.0
  %3309 = vmatprep.subr.mxu0 0.0
  %3310 = vmatpush1.msra.mxu0 0.0
  %3311 = vmatprep.subr.mxu0 0.0
  %3312 = vmatpush1.msra.mxu0 0.0
  %3313 = vmatprep.subr.mxu0 0.0
  %3314 = vmatpush1.msra.mxu0 0.0
  %3315 = vmatprep.subr.mxu0 0.0
  %3316 = vmatpush1.msra.mxu0 0.0
  %3317 = vmatprep.subr.mxu0 0.0
  %3318 = vmatpush1.msra.mxu0 0.0
  %3319 = vmatprep.subr.mxu0 0.0
  %3320 = vmatpush1.msra.mxu0 0.0
  %3321 = vmatprep.subr.mxu0 0.0
  %3322 = vmatpush1.msra.mxu0 0.0
  %3323 = vmatprep.subr.mxu0 0.0
  %3324 = vmatpush1.msra.mxu0 0.0
  %3325 = vmatprep.subr.mxu0 0.0
  %3326 = vmatpush1.msra.mxu0 0.0
  %3327 = vmatprep.subr.mxu0 0.0
  %3328 = vmatpush1.msra.mxu0 0.0
  %3329 = vmatprep.subr.mxu0 0.0
  %3330 = vmatpush1.msra.mxu0 0.0
  %3331 = vmatprep.subr.mxu0 0.0
  %3332 = vmatpush1.msra.mxu0 0.0
  %3333 = vmatprep.subr.mxu0 0.0
  %3334 = vmatpush1.msra.mxu0 0.0
  %3335 = vmatprep.subr.mxu0 0.0
  %3336 = vmatpush1.msra.mxu0 0.0
  %3337 = vmatprep.subr.mxu0 0.0
  %3338 = vmatpush1.msra.mxu0 0.0
  %3339 = vmatprep.subr.mxu0 0.0
  %3340 = vmatpush1.msra.mxu0 0.0
  %3341 = vmatprep.subr.mxu0 0.0
  %3342 = vmatpush1.msra.mxu0 0.0
  %3343 = vmatprep.subr.mxu0 0.0
  %3344 = vmatpush1.msra.mxu0 0.0
  %3345 = vmatprep.subr.mxu0 0.0
  %3346 = vmatpush1.msra.mxu0 0.0
  %3347 = vmatprep.subr.mxu0 0.0
  %3348 = vmatpush1.msra.mxu0 0.0
  %3349 = vmatprep.subr.mxu0 0.0
  %3350 = vmatpush1.msra.mxu0 0.0
  %3351 = vmatprep.subr.mxu0 0.0
  %3352 = vmatpush1.msra.mxu0 0.0
  %3353 = vmatprep.mubr.f32.mxu0 0.0
  %3354 = vmatmul.mubr.f32.gmra.mrb[0].mxu0 %v3242
  %v3355 = vpop.f32.mrb[0].mxu0
  %v3356 = vadd.f32 0.0, %v3355
  %v3357 = vpop.f32.mrb[0].mxu0
  %3358 = vmatprep.mubr.f32.mxu0 0.0
  %3359 = vmatmul.mubr.f32.gmra.mrb[0].mxu0 %v3245
  %v3360 = vpop.f32.mrb[0].mxu0
  %v3361 = vadd.f32 0.0, %v3360
  %v3362 = vpop.f32.mrb[0].mxu0
  %3363 = vmatprep.mubr.f32.mxu0 0.0
  %3364 = vmatmul.mubr.f32.gmra.mrb[0].mxu0 %v3248
  %v3365 = vpop.f32.mrb[0].mxu0
  %v3366 = vadd.f32 0.0, %v3365
  %v3367 = vpop.f32.mrb[0].mxu0
  %3368 = vmatprep.mubr.f32.mxu0 0.0
  %3369 = vmatmul.mubr.f32.gmra.mrb[0].mxu0 %v3251
  %v3370 = vpop.f32.mrb[0].mxu0
  %v3371 = vadd.f32 0.0, %v3370
  %v3372 = vpop.f32.mrb[0].mxu0
  %3373 = vmatprep.mubr.f32.mxu0 0.0
  %3374 = vmatmul.mubr.f32.gmra.mrb[0].mxu0 %v3254
  %v3375 = vpop.f32.mrb[0].mxu0
  %v3376 = vadd.f32 0.0, %v3375
  %v3377 = vpop.f32.mrb[0].mxu0
  %3378 = vmatprep.mubr.f32.mxu0 0.0
  %3379 = vmatmul.mubr.f32.gmra.mrb[0].mxu0 %v3257
  %v3380 = vpop.f32.mrb[0].mxu0
  %v3381 = vadd.f32 0.0, %v3380
  %v3382 = vpop.f32.mrb[0].mxu0
  %3383 = vmatprep.mubr.f32.mxu0 0.0
  %3384 = vmatmul.mubr.f32.gmra.mrb[0].mxu0 %v3260
  %v3385 = vpop.f32.mrb[0].mxu0
  %v3386 = vadd.f32 0.0, %v3385
  %v3387 = vpop.f32.mrb[0].mxu0
  %3388 = vmatprep.mubr.f32.mxu0 0.0
  %3389 = vmatmul.mubr.f32.gmra.mrb[0].mxu0 %v3263
  %v3390 = vpop.f32.mrb[0].mxu0
  %v3391 = vadd.f32 0.0, %v3390
  %v3392 = vpop.f32.mrb[0].mxu0
  %3393 = vmatprep.mubr.f32.mxu0 0.0
  %3394 = vmatmul.mubr.f32.gmra.mrb[0].mxu0 %v3266
  %v3395 = vpop.f32.mrb[0].mxu0
  %v3396 = vadd.f32 0.0, %v3395
  %v3397 = vpop.f32.mrb[0].mxu0
  %3398 = vmatprep.mubr.f32.mxu0 0.0
  %3399 = vmatmul.mubr.f32.gmra.mrb[0].mxu0 %v3269
  %v3400 = vpop.f32.mrb[0].mxu0
  %v3401 = vadd.f32 0.0, %v3400
  %v3402 = vpop.f32.mrb[0].mxu0
  %3403 = vmatprep.mubr.f32.mxu0 0.0
  %3404 = vmatmul.mubr.f32.gmra.mrb[0].mxu0 %v3272
  %v3405 = vpop.f32.mrb[0].mxu0
  %v3406 = vadd.f32 0.0, %v3405
  %v3407 = vpop.f32.mrb[0].mxu0
  %3408 = vmatprep.mubr.f32.mxu0 0.0
  %3409 = vmatmul.mubr.f32.gmra.mrb[0].mxu0 %v3275
  %v3410 = vpop.f32.mrb[0].mxu0
  %v3411 = vadd.f32 0.0, %v3410
  %v3412 = vpop.f32.mrb[0].mxu0
  %3413 = vmatprep.mubr.f32.mxu0 0.0
  %3414 = vmatmul.mubr.f32.gmra.mrb[0].mxu0 %v3278
  %v3415 = vpop.f32.mrb[0].mxu0
  %v3416 = vadd.f32 0.0, %v3415
  %v3417 = vpop.f32.mrb[0].mxu0
  %3418 = vmatprep.mubr.f32.mxu0 0.0
  %3419 = vmatmul.mubr.f32.gmra.mrb[0].mxu0 %v3281
  %v3420 = vpop.f32.mrb[0].mxu0
  %v3421 = vadd.f32 0.0, %v3420
  %v3422 = vpop.f32.mrb[0].mxu0
  %3423 = vmatprep.mubr.f32.mxu0 0.0
  %3424 = vmatmul.mubr.f32.gmra.mrb[0].mxu0 %v3284
  %v3425 = vpop.f32.mrb[0].mxu0
  %v3426 = vadd.f32 0.0, %v3425
  %v3427 = vpop.f32.mrb[0].mxu0
  %3428 = vmatprep.mubr.f32.mxu0 0.0
  %3429 = vmatmul.mubr.f32.gmra.mrb[0].mxu0 %v3287
  %v3430 = vpop.f32.mrb[0].mxu0
  %v3431 = vadd.f32 0.0, %v3430
  %v3432 = vpop.f32.mrb[0].mxu0
  %3433 = vdwg.mxu0
  %v3435 = vsel %vm506, %v2835, 0
  %v3438 = vsel %vm506, %v2836, 0
  %v3441 = vsel %vm506, %v2837, 0
  %v3444 = vsel %vm506, %v2838, 0
  %v3447 = vsel %vm506, %v2839, 0
  %v3450 = vsel %vm506, %v2840, 0
  %v3453 = vsel %vm506, %v2841, 0
  %v3456 = vsel %vm506, %v2842, 0
  %v3459 = vsel %vm506, %v2843, 0
  %v3462 = vsel %vm506, %v2844, 0
  %v3465 = vsel %vm506, %v2845, 0
  %v3468 = vsel %vm506, %v2846, 0
  %v3471 = vsel %vm506, %v2847, 0
  %v3474 = vsel %vm506, %v2848, 0
  %v3477 = vsel %vm506, %v2849, 0
  %v3480 = vsel %vm506, %v2850, 0
  %3482 = vmatprep.subr.mxu0 0.0
  %3483 = vmatpush1.msra.mxu0 %v2854
  %3484 = vmatprep.subr.mxu0 0.0
  %3485 = vmatpush1.msra.mxu0 0.0
  %3486 = vmatprep.subr.mxu0 0.0
  %3487 = vmatpush1.msra.mxu0 0.0
  %3488 = vmatprep.subr.mxu0 0.0
  %3489 = vmatpush1.msra.mxu0 0.0
  %3490 = vmatprep.subr.mxu0 0.0
  %3491 = vmatpush1.msra.mxu0 0.0
  %3492 = vmatprep.subr.mxu0 0.0
  %3493 = vmatpush1.msra.mxu0 0.0
  %3494 = vmatprep.subr.mxu0 0.0
  %3495 = vmatpush1.msra.mxu0 0.0
  %3496 = vmatprep.subr.mxu0 0.0
  %3497 = vmatpush1.msra.mxu0 0.0
  %3498 = vmatprep.subr.mxu0 0.0
  %3499 = vmatpush1.msra.mxu0 0.0
  %3500 = vmatprep.subr.mxu0 0.0
  %3501 = vmatpush1.msra.mxu0 0.0
  %3502 = vmatprep.subr.mxu0 0.0
  %3503 = vmatpush1.msra.mxu0 0.0
  %3504 = vmatprep.subr.mxu0 0.0
  %3505 = vmatpush1.msra.mxu0 0.0
  %3506 = vmatprep.subr.mxu0 0.0
  %3507 = vmatpush1.msra.mxu0 0.0
  %3508 = vmatprep.subr.mxu0 0.0
  %3509 = vmatpush1.msra.mxu0 0.0
  %3510 = vmatprep.subr.mxu0 0.0
  %3511 = vmatpush1.msra.mxu0 0.0
  %3512 = vmatprep.subr.mxu0 0.0
  %3513 = vmatpush1.msra.mxu0 0.0
  %3514 = vmatprep.subr.mxu0 0.0
  %3515 = vmatpush1.msra.mxu0 0.0
  %3516 = vmatprep.subr.mxu0 0.0
  %3517 = vmatpush1.msra.mxu0 0.0
  %3518 = vmatprep.subr.mxu0 0.0
  %3519 = vmatpush1.msra.mxu0 0.0
  %3520 = vmatprep.subr.mxu0 0.0
  %3521 = vmatpush1.msra.mxu0 0.0
  %3522 = vmatprep.subr.mxu0 0.0
  %3523 = vmatpush1.msra.mxu0 0.0
  %3524 = vmatprep.subr.mxu0 0.0
  %3525 = vmatpush1.msra.mxu0 0.0
  %3526 = vmatprep.subr.mxu0 0.0
  %3527 = vmatpush1.msra.mxu0 0.0
  %3528 = vmatprep.subr.mxu0 0.0
  %3529 = vmatpush1.msra.mxu0 0.0
  %3530 = vmatprep.subr.mxu0 0.0
  %3531 = vmatpush1.msra.mxu0 0.0
  %3532 = vmatprep.subr.mxu0 0.0
  %3533 = vmatpush1.msra.mxu0 0.0
  %3534 = vmatprep.subr.mxu0 0.0
  %3535 = vmatpush1.msra.mxu0 0.0
  %3536 = vmatprep.subr.mxu0 0.0
  %3537 = vmatpush1.msra.mxu0 0.0
  %3538 = vmatprep.subr.mxu0 0.0
  %3539 = vmatpush1.msra.mxu0 0.0
  %3540 = vmatprep.subr.mxu0 0.0
  %3541 = vmatpush1.msra.mxu0 0.0
  %3542 = vmatprep.subr.mxu0 0.0
  %3543 = vmatpush1.msra.mxu0 0.0
  %3544 = vmatprep.subr.mxu0 0.0
  %3545 = vmatpush1.msra.mxu0 0.0
  %3546 = vmatprep.mubr.f32.mxu0 0.0
  %3547 = vmatmul.mubr.f32.gmra.mrb[0].mxu0 %v3435
  %v3548 = vpop.f32.mrb[0].mxu0
  %v3549 = vadd.f32 0.0, %v3548
  %v3550 = vpop.f32.mrb[0].mxu0
  %3551 = vmatprep.mubr.f32.mxu0 0.0
  %3552 = vmatmul.mubr.f32.gmra.mrb[0].mxu0 %v3438
  %v3553 = vpop.f32.mrb[0].mxu0
  %v3554 = vadd.f32 0.0, %v3553
  %v3555 = vpop.f32.mrb[0].mxu0
  %3556 = vmatprep.mubr.f32.mxu0 0.0
  %3557 = vmatmul.mubr.f32.gmra.mrb[0].mxu0 %v3441
  %v3558 = vpop.f32.mrb[0].mxu0
  %v3559 = vadd.f32 0.0, %v3558
  %v3560 = vpop.f32.mrb[0].mxu0
  %3561 = vmatprep.mubr.f32.mxu0 0.0
  %3562 = vmatmul.mubr.f32.gmra.mrb[0].mxu0 %v3444
  %v3563 = vpop.f32.mrb[0].mxu0
  %v3564 = vadd.f32 0.0, %v3563
  %v3565 = vpop.f32.mrb[0].mxu0
  %3566 = vmatprep.mubr.f32.mxu0 0.0
  %3567 = vmatmul.mubr.f32.gmra.mrb[0].mxu0 %v3447
  %v3568 = vpop.f32.mrb[0].mxu0
  %v3569 = vadd.f32 0.0, %v3568
  %v3570 = vpop.f32.mrb[0].mxu0
  %3571 = vmatprep.mubr.f32.mxu0 0.0
  %3572 = vmatmul.mubr.f32.gmra.mrb[0].mxu0 %v3450
  %v3573 = vpop.f32.mrb[0].mxu0
  %v3574 = vadd.f32 0.0, %v3573
  %v3575 = vpop.f32.mrb[0].mxu0
  %3576 = vmatprep.mubr.f32.mxu0 0.0
  %3577 = vmatmul.mubr.f32.gmra.mrb[0].mxu0 %v3453
  %v3578 = vpop.f32.mrb[0].mxu0
  %v3579 = vadd.f32 0.0, %v3578
  %v3580 = vpop.f32.mrb[0].mxu0
  %3581 = vmatprep.mubr.f32.mxu0 0.0
  %3582 = vmatmul.mubr.f32.gmra.mrb[0].mxu0 %v3456
  %v3583 = vpop.f32.mrb[0].mxu0
  %v3584 = vadd.f32 0.0, %v3583
  %v3585 = vpop.f32.mrb[0].mxu0
  %3586 = vmatprep.mubr.f32.mxu0 0.0
  %3587 = vmatmul.mubr.f32.gmra.mrb[0].mxu0 %v3459
  %v3588 = vpop.f32.mrb[0].mxu0
  %v3589 = vadd.f32 0.0, %v3588
  %v3590 = vpop.f32.mrb[0].mxu0
  %3591 = vmatprep.mubr.f32.mxu0 0.0
  %3592 = vmatmul.mubr.f32.gmra.mrb[0].mxu0 %v3462
  %v3593 = vpop.f32.mrb[0].mxu0
  %v3594 = vadd.f32 0.0, %v3593
  %v3595 = vpop.f32.mrb[0].mxu0
  %3596 = vmatprep.mubr.f32.mxu0 0.0
  %3597 = vmatmul.mubr.f32.gmra.mrb[0].mxu0 %v3465
  %v3598 = vpop.f32.mrb[0].mxu0
  %v3599 = vadd.f32 0.0, %v3598
  %v3600 = vpop.f32.mrb[0].mxu0
  %3601 = vmatprep.mubr.f32.mxu0 0.0
  %3602 = vmatmul.mubr.f32.gmra.mrb[0].mxu0 %v3468
  %v3603 = vpop.f32.mrb[0].mxu0
  %v3604 = vadd.f32 0.0, %v3603
  %v3605 = vpop.f32.mrb[0].mxu0
  %3606 = vmatprep.mubr.f32.mxu0 0.0
  %3607 = vmatmul.mubr.f32.gmra.mrb[0].mxu0 %v3471
  %v3608 = vpop.f32.mrb[0].mxu0
  %v3609 = vadd.f32 0.0, %v3608
  %v3610 = vpop.f32.mrb[0].mxu0
  %3611 = vmatprep.mubr.f32.mxu0 0.0
  %3612 = vmatmul.mubr.f32.gmra.mrb[0].mxu0 %v3474
  %v3613 = vpop.f32.mrb[0].mxu0
  %v3614 = vadd.f32 0.0, %v3613
  %v3615 = vpop.f32.mrb[0].mxu0
  %3616 = vmatprep.mubr.f32.mxu0 0.0
  %3617 = vmatmul.mubr.f32.gmra.mrb[0].mxu0 %v3477
  %v3618 = vpop.f32.mrb[0].mxu0
  %v3619 = vadd.f32 0.0, %v3618
  %v3620 = vpop.f32.mrb[0].mxu0
  %3621 = vmatprep.mubr.f32.mxu0 0.0
  %3622 = vmatmul.mubr.f32.gmra.mrb[0].mxu0 %v3480
  %v3623 = vpop.f32.mrb[0].mxu0
  %v3624 = vadd.f32 0.0, %v3623
  %v3625 = vpop.f32.mrb[0].mxu0
  %3626 = vdwg.mxu0
  %v3627 = vsel %vm40, %v2970, 0.0
  %v3628 = vsel %vm40, %v3163, 0.0
  %v3629 = vadd.f32 %v3627, %v3628
  %v3630 = vsel %vm40, %v3356, 0.0
  %v3631 = vadd.f32 %v3629, %v3630
  %v3632 = vsel %vm40, %v3549, 0.0
  %v3633 = vadd.f32 %v3631, %v3632
  %v3634 = vsel %vm40, %v2975, 0.0
  %v3635 = vsel %vm40, %v3168, 0.0
  %v3636 = vadd.f32 %v3634, %v3635
  %v3637 = vsel %vm40, %v3361, 0.0
  %v3638 = vadd.f32 %v3636, %v3637
  %v3639 = vsel %vm40, %v3554, 0.0
  %v3640 = vadd.f32 %v3638, %v3639
  %v3641 = vsel %vm40, %v2980, 0.0
  %v3642 = vsel %vm40, %v3173, 0.0
  %v3643 = vadd.f32 %v3641, %v3642
  %v3644 = vsel %vm40, %v3366, 0.0
  %v3645 = vadd.f32 %v3643, %v3644
  %v3646 = vsel %vm40, %v3559, 0.0
  %v3647 = vadd.f32 %v3645, %v3646
  %v3648 = vsel %vm40, %v2985, 0.0
  %v3649 = vsel %vm40, %v3178, 0.0
  %v3650 = vadd.f32 %v3648, %v3649
  %v3651 = vsel %vm40, %v3371, 0.0
  %v3652 = vadd.f32 %v3650, %v3651
  %v3653 = vsel %vm40, %v3564, 0.0
  %v3654 = vadd.f32 %v3652, %v3653
  %v3655 = vsel %vm40, %v2990, 0.0
  %v3656 = vsel %vm40, %v3183, 0.0
  %v3657 = vadd.f32 %v3655, %v3656
  %v3658 = vsel %vm40, %v3376, 0.0
  %v3659 = vadd.f32 %v3657, %v3658
  %v3660 = vsel %vm40, %v3569, 0.0
  %v3661 = vadd.f32 %v3659, %v3660
  %v3662 = vsel %vm40, %v2995, 0.0
  %v3663 = vsel %vm40, %v3188, 0.0
  %v3664 = vadd.f32 %v3662, %v3663
  %v3665 = vsel %vm40, %v3381, 0.0
  %v3666 = vadd.f32 %v3664, %v3665
  %v3667 = vsel %vm40, %v3574, 0.0
  %v3668 = vadd.f32 %v3666, %v3667
  %v3669 = vsel %vm40, %v3000, 0.0
  %v3670 = vsel %vm40, %v3193, 0.0
  %v3671 = vadd.f32 %v3669, %v3670
  %v3672 = vsel %vm40, %v3386, 0.0
  %v3673 = vadd.f32 %v3671, %v3672
  %v3674 = vsel %vm40, %v3579, 0.0
  %v3675 = vadd.f32 %v3673, %v3674
  %v3676 = vsel %vm40, %v3005, 0.0
  %v3677 = vsel %vm40, %v3198, 0.0
  %v3678 = vadd.f32 %v3676, %v3677
  %v3679 = vsel %vm40, %v3391, 0.0
  %v3680 = vadd.f32 %v3678, %v3679
  %v3681 = vsel %vm40, %v3584, 0.0
  %v3682 = vadd.f32 %v3680, %v3681
  %v3683 = vsel %vm40, %v3010, 0.0
  %v3684 = vsel %vm40, %v3203, 0.0
  %v3685 = vadd.f32 %v3683, %v3684
  %v3686 = vsel %vm40, %v3396, 0.0
  %v3687 = vadd.f32 %v3685, %v3686
  %v3688 = vsel %vm40, %v3589, 0.0
  %v3689 = vadd.f32 %v3687, %v3688
  %v3690 = vsel %vm40, %v3015, 0.0
  %v3691 = vsel %vm40, %v3208, 0.0
  %v3692 = vadd.f32 %v3690, %v3691
  %v3693 = vsel %vm40, %v3401, 0.0
  %v3694 = vadd.f32 %v3692, %v3693
  %v3695 = vsel %vm40, %v3594, 0.0
  %v3696 = vadd.f32 %v3694, %v3695
  %v3697 = vsel %vm40, %v3020, 0.0
  %v3698 = vsel %vm40, %v3213, 0.0
  %v3699 = vadd.f32 %v3697, %v3698
  %v3700 = vsel %vm40, %v3406, 0.0
  %v3701 = vadd.f32 %v3699, %v3700
  %v3702 = vsel %vm40, %v3599, 0.0
  %v3703 = vadd.f32 %v3701, %v3702
  %v3704 = vsel %vm40, %v3025, 0.0
  %v3705 = vsel %vm40, %v3218, 0.0
  %v3706 = vadd.f32 %v3704, %v3705
  %v3707 = vsel %vm40, %v3411, 0.0
  %v3708 = vadd.f32 %v3706, %v3707
  %v3709 = vsel %vm40, %v3604, 0.0
  %v3710 = vadd.f32 %v3708, %v3709
  %v3711 = vsel %vm40, %v3030, 0.0
  %v3712 = vsel %vm40, %v3223, 0.0
  %v3713 = vadd.f32 %v3711, %v3712
  %v3714 = vsel %vm40, %v3416, 0.0
  %v3715 = vadd.f32 %v3713, %v3714
  %v3716 = vsel %vm40, %v3609, 0.0
  %v3717 = vadd.f32 %v3715, %v3716
  %v3718 = vsel %vm40, %v3035, 0.0
  %v3719 = vsel %vm40, %v3228, 0.0
  %v3720 = vadd.f32 %v3718, %v3719
  %v3721 = vsel %vm40, %v3421, 0.0
  %v3722 = vadd.f32 %v3720, %v3721
  %v3723 = vsel %vm40, %v3614, 0.0
  %v3724 = vadd.f32 %v3722, %v3723
  %v3725 = vsel %vm40, %v3040, 0.0
  %v3726 = vsel %vm40, %v3233, 0.0
  %v3727 = vadd.f32 %v3725, %v3726
  %v3728 = vsel %vm40, %v3426, 0.0
  %v3729 = vadd.f32 %v3727, %v3728
  %v3730 = vsel %vm40, %v3619, 0.0
  %v3731 = vadd.f32 %v3729, %v3730
  %v3732 = vsel %vm40, %v3045, 0.0
  %v3733 = vsel %vm40, %v3238, 0.0
  %v3734 = vadd.f32 %v3732, %v3733
  %v3735 = vsel %vm40, %v3431, 0.0
  %v3736 = vadd.f32 %v3734, %v3735
  %v3737 = vsel %vm40, %v3624, 0.0
  %v3738 = vadd.f32 %v3736, %v3737
  %v3739 = vld [vmem:[%s4] sm:$0x1]
  %v3741 = vlaneseq
  %v3742 = vshrl.u32 %v3741, 7
  %v3743 = vsub.s32 0, %v3742
  %v3744 = vrot.slane %v3739, %v3743
  %v3746 = vadd.f32 %v3633, %v3744
  %v3747 = vadd.f32 %v3640, %v3744
  %v3748 = vadd.f32 %v3647, %v3744
  %v3749 = vadd.f32 %v3654, %v3744
  %v3750 = vadd.f32 %v3661, %v3744
  %v3751 = vadd.f32 %v3668, %v3744
  %v3752 = vadd.f32 %v3675, %v3744
  %v3753 = vadd.f32 %v3682, %v3744
  %v3754 = vadd.f32 %v3689, %v3744
  %v3755 = vadd.f32 %v3696, %v3744
  %v3756 = vadd.f32 %v3703, %v3744
  %v3757 = vadd.f32 %v3710, %v3744
  %v3758 = vadd.f32 %v3717, %v3744
  %v3759 = vadd.f32 %v3724, %v3744
  %v3760 = vadd.f32 %v3731, %v3744
  %v3761 = vadd.f32 %v3738, %v3744
  %3762 = vst.msk [vmem:[%s5] sm:$0xff] %vm40, %v3746
  %3763 = vst.msk [vmem:[%s5 + $0x8] sm:$0xff] %vm40, %v3747
  %3764 = vst.msk [vmem:[%s5 + $0x10] sm:$0xff] %vm40, %v3748
  %3765 = vst.msk [vmem:[%s5 + $0x18] sm:$0xff] %vm40, %v3749
  %3766 = vst.msk [vmem:[%s5 + $0x20] sm:$0xff] %vm40, %v3750
  %3767 = vst.msk [vmem:[%s5 + $0x28] sm:$0xff] %vm40, %v3751
  %3768 = vst.msk [vmem:[%s5 + $0x30] sm:$0xff] %vm40, %v3752
  %3769 = vst.msk [vmem:[%s5 + $0x38] sm:$0xff] %vm40, %v3753
  %3770 = vst.msk [vmem:[%s5 + $0x40] sm:$0xff] %vm40, %v3754
  %3771 = vst.msk [vmem:[%s5 + $0x48] sm:$0xff] %vm40, %v3755
  %3772 = vst.msk [vmem:[%s5 + $0x50] sm:$0xff] %vm40, %v3756
  %3773 = vst.msk [vmem:[%s5 + $0x58] sm:$0xff] %vm40, %v3757
  %3774 = vst.msk [vmem:[%s5 + $0x60] sm:$0xff] %vm40, %v3758
  %3775 = vst.msk [vmem:[%s5 + $0x68] sm:$0xff] %vm40, %v3759
  %3776 = vst.msk [vmem:[%s5 + $0x70] sm:$0xff] %vm40, %v3760
  %3777 = vst.msk [vmem:[%s5 + $0x78] sm:$0xff] %vm40, %v3761
  // Predicated region
  $region22: #{tpu_custom_call.1} parent=0 // pred_check
    _
  $region23: #{tpu_custom_call.1} parent=0 // pred_check_branch
    %3779 = sbr.rel (0) target = $region25
  $region24: #{tpu_custom_call.1} parent=0 // pred_region
    _
  $region25: #{tpu_custom_call.1} parent=0 // pred_fallthru
    _
  // Predicated region
  $region26: #{tpu_custom_call.1} parent=0 // pred_check
    _
  $region27: #{tpu_custom_call.1} parent=0 // pred_check_branch
    %3781 = sbr.rel (0) target = $region29
  $region28: #{tpu_custom_call.1} parent=0 // pred_region
    _
  $region29: #{tpu_custom_call.1} parent=0 // pred_fallthru
    _

</llo_original>
